<compile_context>
chip_gen: v5e
topology: v5e:2x2
jax: 0.10.0
libtpu: 0.0.40
codegen_flags: <defaults>
</compile_context>

<pallas_src>
import functools

import jax
import jax.numpy as jnp
from jax import lax
from jax.experimental import pallas as pl
from jax.experimental.pallas import tpu as pltpu


def _pick_block_batch(bs, cap):
    """Largest divisor of bs (<= cap) that still leaves a grid of >= 2 steps
    (so v7x's two TensorCores both get work); falls back to the largest
    divisor.  Divisor-based so every block is full (no ragged tail)."""
    divisors = [d for d in range(1, min(bs, cap) + 1) if bs % d == 0]
    two_step = [d for d in divisors if bs // d >= 2]
    return max(two_step) if two_step else max(divisors)


# ----------------------------------------------------------------------------
# Kernel 1 (fused): conv1+BN1 -> conv2+BN2 -> E2R covariances -> SPDTransform.
# One grid step per `bb` batch elements; the im2col slab is rebuilt in a VMEM
# scratch (never touches HBM); intermediates stay in VMEM/vregs.  The only HBM
# writeback is the (bs, 3, m, 12, 12) Q/K/V stack.
# ----------------------------------------------------------------------------
def _feature_kernel(x_ref, a_ref, bias_ref, w_ref, qkv_ref, slab_ref, *,
                    bb, kw, cin, t_out, patch_lens, c, d):
    a = a_ref[...]                                   # (c, kw*cin) = (15, 288)
    bias = bias_ref[...]                             # (c, t_out)
    heads = (w_ref[0], w_ref[1], w_ref[2])           # each (d, c) = (12, 15)
    eye = (lax.broadcasted_iota(jnp.int32, (c, c), 0)
           == lax.broadcasted_iota(jnp.int32, (c, c), 1)).astype(jnp.float32)

    # static patch offsets
    offs = []
    o = 0
    for length in patch_lens:
        offs.append(o)
        o += length

    for b in range(bb):                              # static unroll over block batch
        # ---- build im2col slab in VMEM: slab[k*8+h, j] = x_pad[b, h, j+k] ----
        for k in range(kw):
            slab_ref[k * cin:(k + 1) * cin, :] = x_ref[b, :, k:k + t_out]

        # ---- fused conv1+BN1+conv2+BN2 as a single K=288 matmul + bias ------
        h2 = jnp.dot(a, slab_ref[...],
                     preferred_element_type=jnp.float32) + bias          # (c, t_out)

        # ---- per-patch E2R covariance + SPDTransform (Q/K/V) ----------------
        for p, (off, length) in enumerate(zip(offs, patch_lens)):
            seg = h2[:, off:off + length]                                # (c, L)
            xc = seg - jnp.mean(seg, axis=-1, keepdims=True)
            cov = lax.dot_general(xc, xc, (((1,), (1,)), ((), ())),
                                  preferred_element_type=jnp.float32)    # (c, c)
            # trace(X X^T) == ||X||_F^2; the reference's 1/(L-1) factors cancel
            # between cov and its trace.  Epsilon is added AFTER normalization,
            # matching signal2spd.
            tra = jnp.sum(xc * xc)
            spd = cov / tra + 1e-5 * eye

            # Direct per-head bilinear maps: (12,15)@(15,15) then @(15,12).
            for qi in range(3):
                w = heads[qi]
                tmp = jnp.dot(w, spd, preferred_element_type=jnp.float32)  # (d, c)
                head = lax.dot_general(tmp, w, (((1,), (1,)), ((), ())),
                                       preferred_element_type=jnp.float32)  # (d, d)
                qkv_ref[b, qi, p, :, :] = head


def feature_qkv(x_pad, a_flat, bias_full, wqkv, *, patch_lens, d, bb):
    bs, cin, t_pad = x_pad.shape
    c, kc = a_flat.shape
    kw = kc // cin
    t_out = bias_full.shape[1]
    m = len(patch_lens)
    kern = functools.partial(_feature_kernel, bb=bb, kw=kw, cin=cin,
                             t_out=t_out, patch_lens=tuple(patch_lens),
                             c=c, d=d)
    return pl.pallas_call(
        kern,
        out_shape=jax.ShapeDtypeStruct((bs, 3, m, d, d), jnp.float32),
        grid=(bs // bb,),
        in_specs=[
            pl.BlockSpec((bb, cin, t_pad), lambda i: (i, 0, 0)),   # raw padded input
            pl.BlockSpec((c, kc), lambda i: (0, 0)),               # folded conv weight
            pl.BlockSpec((c, t_out), lambda i: (0, 0)),            # folded conv bias
            pl.BlockSpec((3, d, c), lambda i: (0, 0, 0)),          # Q/K/V Stiefel weights
        ],
        out_specs=pl.BlockSpec((bb, 3, m, d, d), lambda i: (i, 0, 0, 0, 0)),
        scratch_shapes=[pltpu.VMEM((kc, t_out), jnp.float32)],     # im2col slab
        compiler_params=pltpu.CompilerParams(
            dimension_semantics=("parallel",)),
    )(x_pad, a_flat, bias_full, wqkv)


# ----------------------------------------------------------------------------
# Kernel 2: attention energy + softmax + log-Euclidean weighted mean.
# Inputs are flattened matrix logs (bs, m, d*d).  Energy via the expansion
#   ||lq_j - lk_i||_F^2 = ||lq_j||^2 + ||lk_i||^2 - 2 <lq_j, lk_i>
# so the O(m^2 * dd) work is a single batched MXU matmul.
#   prob[b, j, i] = softmax_i( 1 / (1 + log(1 + energy[b, j, i])) )
#   out[b, j]     = sum_i prob[b, j, i] * lv[b, i]
# (matches the reference Softmax(dim=-2) followed by permute(0,2,1)).
# ----------------------------------------------------------------------------
def _attention_kernel(lq_ref, lk_ref, lv_ref, o_ref):
    lq = lq_ref[...]                                                   # (bb, m, dd)
    lk = lk_ref[...]
    lv = lv_ref[...]
    gram = jnp.einsum("bjd,bid->bji", lq, lk,
                      preferred_element_type=jnp.float32)              # (bb, m, m)
    qn = jnp.sum(lq * lq, axis=-1, keepdims=True)                      # (bb, m, 1)
    kn = jnp.sum(lk * lk, axis=-1)[:, None, :]                         # (bb, 1, m)
    energy = jnp.maximum(qn + kn - 2.0 * gram, 0.0)                    # clamp cancellation
    f = 1.0 / (1.0 + jnp.log(1.0 + energy))
    # f in (0, 1] so exp cannot overflow: no max-shift needed (saves an XLU
    # cross-lane reduce).  EUP reciprocal for the softmax denominator.
    e = jnp.exp(f)
    prob = e * pl.reciprocal(jnp.sum(e, axis=-1, keepdims=True), approx=True)
    o_ref[...] = jnp.einsum("bji,bid->bjd", prob, lv,
                            preferred_element_type=jnp.float32)


def attention_mean(lq, lk, lv, *, bb):
    bs, m, dd = lq.shape
    spec = pl.BlockSpec((bb, m, dd), lambda i: (i, 0, 0))
    return pl.pallas_call(
        _attention_kernel,
        out_shape=jax.ShapeDtypeStruct((bs, m, dd), jnp.float32),
        grid=(bs // bb,),
        in_specs=[spec, spec, spec],
        out_specs=spec,
        compiler_params=pltpu.CompilerParams(
            dimension_semantics=("parallel",)),
    )(lq, lk, lv)


# ----------------------------------------------------------------------------
# Plain-JAX glue: symmetric matrix functions (eigh-based) — no Pallas eigh.
# ----------------------------------------------------------------------------
def sym_mat_fn(mat, fn):
    s, u = jnp.linalg.eigh(mat)
    return jnp.einsum("...ij,...j,...kj->...ik", u, fn(s), u)


# ----------------------------------------------------------------------------
# Full forward pass of mAtt_mamem.
# ----------------------------------------------------------------------------
@functools.partial(jax.jit, static_argnums=(2,))
def matt_mamem_forward(x, params, epochs):
    bs = x.shape[0]
    t = x.shape[-1]
    cin1, cout2, d_out = 8, 15, 12
    kw, pad = 36, 18
    t_out = t + 2 * pad - kw + 1                                # == t + 1
    x2 = x.reshape(bs, cin1, t).astype(jnp.float32)

    # ---- fold BN1/BN2 scales into the conv weights (wrapper-side) ----------
    w1s = params["w1"] * params["s1"]                           # (125, 8)
    sh1 = params["t1"]                                          # (125, 1)
    w2s = params["w2"] * params["s2"][None, :, :]               # (36, 15, 125)
    sh2 = params["t2"]                                          # (15, 1)

    # collapse conv1∘conv2 into a single (15, 36*8) weight on the raw input
    a_flat = jnp.einsum("koc,ch->okh", w2s, w1s).reshape(cout2, kw * cin1)

    # position-dependent bias from the zero padding of conv2's input
    kk = jnp.arange(kw)[:, None]
    tt = jnp.arange(t_out)[None, :]
    valid = ((tt + kk >= pad) & (tt + kk < t + pad)).astype(jnp.float32)   # (36, t_out)
    cbias = jnp.einsum("koc,c->ok", w2s, sh1[:, 0])                        # (15, 36)
    bias_full = cbias @ valid + sh2                                        # (15, t_out)

    # raw input, zero-padded in time only — NO 36x im2col blowup in HBM; the
    # im2col slab is rebuilt in VMEM inside the kernel.
    x_pad = jnp.pad(x2, ((0, 0), (0, 0), (pad, pad)))                      # (bs, 8, t+36)

    # ---- E2R patch lengths (on the conv2 output length) --------------------
    base = t_out // epochs
    lens = [base + (1 if i < t_out - base * epochs else 0) for i in range(epochs)]
    m = epochs

    wqkv = jnp.stack([params["wq"], params["wk"], params["wv"]], axis=0)   # (3, 12, 15)

    # ---- fused Pallas kernel: conv -> covariances -> Q/K/V ------------------
    bb1 = _pick_block_batch(bs, cap=8)
    qkv = feature_qkv(x_pad, a_flat, bias_full, wqkv,
                      patch_lens=tuple(lens), d=d_out, bb=bb1)  # (bs, 3, m, 12, 12)

    # ---- matrix logs of Q/K/V (single batched eigh) -------------------------
    # TODO(synk): torch.linalg.svd/eigh matrix log/exp have no Pallas equivalent.
    logs = sym_mat_fn(qkv, jnp.log).reshape(bs, 3, m, d_out * d_out)
    lq, lk, lv = logs[:, 0], logs[:, 1], logs[:, 2]

    # ---- attention + log-Euclidean weighted mean (Pallas) -------------------
    bb2 = _pick_block_batch(bs, cap=64)
    out_log = attention_mean(lq, lk, lv, bb=bb2)                # (bs, m, 144)

    # ---- tensor_exp -> SPDRectified(1e-4) -> matrix log: one eigh -----------
    # log(max(exp(s), eps)) == max(s, log(eps)) on the shared eigenbasis.
    s, u = jnp.linalg.eigh(out_log.reshape(bs * m, d_out, d_out))
    s = jnp.maximum(s, jnp.log(1e-4))
    log_r = jnp.einsum("...ij,...j,...kj->...ik", u, s, u)

    # ---- SPDTangentSpace: upper-triangular vectorization + linear head ------
    r_idx, c_idx = jnp.triu_indices(d_out)
    feat = log_r[:, r_idx, c_idx].reshape(bs, m * (d_out * (d_out + 1) // 2))
    return feat @ params["wl_t"] + params["bl"]                 # (bs, 5), plain jnp


# ----------------------------------------------------------------------------
# Deterministic parameter initialization (synthetic, no checkpoint).
# ----------------------------------------------------------------------------
def init_params(key, epochs):
    ks = jax.random.split(key, 16)

    def bn_fold(kg, kb, km, kv, c, conv_bias):
        gamma = jax.random.uniform(kg, (c,), jnp.float32, 0.5, 1.5)
        beta = 0.1 * jax.random.normal(kb, (c,), jnp.float32)
        rmean = 0.1 * jax.random.normal(km, (c,), jnp.float32)
        rvar = jax.random.uniform(kv, (c,), jnp.float32, 0.5, 1.5)
        s = gamma / jnp.sqrt(rvar + 1e-5)
        t = beta - rmean * s
        return s.reshape(c, 1), (conv_bias * s + t).reshape(c, 1)

    w1 = 0.1 * jax.random.normal(ks[0], (125, 8), jnp.float32)             # conv1 (125,1,8,1)
    b1 = 0.1 * jax.random.normal(ks[1], (125,), jnp.float32)
    s1, t1 = bn_fold(ks[2], ks[3], ks[4], ks[5], 125, b1)

    w2_nchw = 0.05 * jax.random.normal(ks[6], (15, 125, 36), jnp.float32)  # conv2 (15,125,1,36)
    w2 = jnp.transpose(w2_nchw, (2, 0, 1))                                 # (36,15,125)
    b2 = 0.1 * jax.random.normal(ks[7], (15,), jnp.float32)
    s2, t2 = bn_fold(ks[8], ks[9], ks[10], ks[11], 15, b2)

    def stiefel(k, d_in, d_out):
        a = jax.random.normal(k, (d_in, d_out), jnp.float32)
        qm, _ = jnp.linalg.qr(a)
        return qm.T                                                        # (d_out,d_in)

    wq = stiefel(ks[12], 15, 12)
    wk = stiefel(ks[13], 15, 12)
    wv = stiefel(ks[14], 15, 12)

    fin = 6 * 13 * epochs                                                  # 78 * epochs
    kl1, kl2 = jax.random.split(ks[15])
    wl = 0.05 * jax.random.normal(kl1, (5, fin), jnp.float32)
    bl = 0.05 * jax.random.normal(kl2, (5,), jnp.float32)

    return dict(w1=w1, s1=s1, t1=t1, w2=w2, s2=s2, t2=t2,
                wq=wq, wk=wk, wv=wv, wl_t=wl.T, bl=bl.reshape(1, 5))


if __name__ == "__main__":
    epochs = 3
    bs, T = 2, 64
    key = jax.random.PRNGKey(0)
    kx, kp = jax.random.split(key)
    x = jax.random.normal(kx, (bs, 1, 8, T), jnp.float32)   # NCHW input
    params = init_params(kp, epochs)

    out = matt_mamem_forward(x, params, epochs)
    out = jax.block_until_ready(out)
    assert out.shape == (bs, 5), out.shape
    assert bool(jnp.all(jnp.isfinite(out)))
    print("KERNEL_OK")
</pallas_src>

<mosaic_0001>
module attributes {stable_mosaic.version = 11 : i64} {
  func.func @_feature_kernel(%arg0: i32, %arg1: memref<1x8x100xf32, #tpu.memory_space<vmem>>, %arg2: memref<15x288xf32, #tpu.memory_space<vmem>>, %arg3: memref<15x65xf32, #tpu.memory_space<vmem>>, %arg4: memref<3x12x15xf32, #tpu.memory_space<vmem>>, %arg5: memref<1x3x3x12x12xf32, #tpu.memory_space<vmem>>, %arg6: memref<288x65xf32, #tpu.memory_space<vmem>>) attributes {dimension_semantics = [#tpu.dimension_semantics<parallel>], iteration_bounds = array<i64: 2>, scalar_prefetch = 0 : i64, scratch_operands = 1 : i64, tpu.core_type = #tpu.core_type<tc>, window_params = [{transform_indices = @transform_0, window_bounds = array<i64: 1, 8, 100>}, {pipeline_mode = #tpu.pipeline_mode<synchronous>, transform_indices = @transform_1, window_bounds = array<i64: 15, 288>}, {pipeline_mode = #tpu.pipeline_mode<synchronous>, transform_indices = @transform_2, window_bounds = array<i64: 15, 65>}, {pipeline_mode = #tpu.pipeline_mode<synchronous>, transform_indices = @transform_3, window_bounds = array<i64: 3, 12, 15>}, {transform_indices = @transform_4, window_bounds = array<i64: 1, 3, 3, 12, 12>}]} {
    %c0 = arith.constant 0 : index
    %c0_0 = arith.constant 0 : index
    %0 = vector.load %arg2[%c0, %c0_0] : memref<15x288xf32, #tpu.memory_space<vmem>>, vector<15x288xf32>
    %c0_1 = arith.constant 0 : index
    %c0_2 = arith.constant 0 : index
    %1 = vector.load %arg3[%c0_1, %c0_2] : memref<15x65xf32, #tpu.memory_space<vmem>>, vector<15x65xf32>
    %c0_3 = arith.constant 0 : index
    %c0_4 = arith.constant 0 : index
    %c0_5 = arith.constant 0 : index
    %2 = vector.load %arg4[%c0_3, %c0_4, %c0_5] : memref<3x12x15xf32, #tpu.memory_space<vmem>>, vector<1x12x15xf32>
    %3 = vector.shape_cast %2 : vector<1x12x15xf32> to vector<12x15xf32>
    %c1 = arith.constant 1 : index
    %c0_6 = arith.constant 0 : index
    %c0_7 = arith.constant 0 : index
    %4 = vector.load %arg4[%c1, %c0_6, %c0_7] : memref<3x12x15xf32, #tpu.memory_space<vmem>>, vector<1x12x15xf32>
    %5 = vector.shape_cast %4 : vector<1x12x15xf32> to vector<12x15xf32>
    %c2 = arith.constant 2 : index
    %c0_8 = arith.constant 0 : index
    %c0_9 = arith.constant 0 : index
    %6 = vector.load %arg4[%c2, %c0_8, %c0_9] : memref<3x12x15xf32, #tpu.memory_space<vmem>>, vector<1x12x15xf32>
    %7 = vector.shape_cast %6 : vector<1x12x15xf32> to vector<12x15xf32>
    %8 = tpu.iota {dimensions = array<i32: 0>} : vector<15x15xi32>
    %9 = tpu.iota {dimensions = array<i32: 1>} : vector<15x15xi32>
    %10 = arith.cmpi eq, %8, %9 : vector<15x15xi32>
    %11 = arith.extui %10 : vector<15x15xi1> to vector<15x15xi32>
    %12 = arith.sitofp %11 : vector<15x15xi32> to vector<15x15xf32>
    %c0_10 = arith.constant 0 : index
    %c0_11 = arith.constant 0 : index
    %c0_12 = arith.constant 0 : index
    %13 = vector.load %arg1[%c0_10, %c0_11, %c0_12] : memref<1x8x100xf32, #tpu.memory_space<vmem>>, vector<1x8x65xf32>
    %14 = vector.shape_cast %13 : vector<1x8x65xf32> to vector<8x65xf32>
    %c0_13 = arith.constant 0 : index
    %c0_14 = arith.constant 0 : index
    %15 = vector.load %arg6[%c0_13, %c0_14] : memref<288x65xf32, #tpu.memory_space<vmem>>, vector<8x65xf32>
    tpu.vector_store %arg6[%c0_13, %c0_14], %14 {strides = array<i32>} : memref<288x65xf32, #tpu.memory_space<vmem>>, vector<8x65xf32>,
    %c0_15 = arith.constant 0 : index
    %c0_16 = arith.constant 0 : index
    %c1_17 = arith.constant 1 : index
    %16 = vector.load %arg1[%c0_15, %c0_16, %c1_17] : memref<1x8x100xf32, #tpu.memory_space<vmem>>, vector<1x8x65xf32>
    %17 = vector.shape_cast %16 : vector<1x8x65xf32> to vector<8x65xf32>
    %c8 = arith.constant 8 : index
    %c0_18 = arith.constant 0 : index
    %18 = vector.load %arg6[%c8, %c0_18] : memref<288x65xf32, #tpu.memory_space<vmem>>, vector<8x65xf32>
    tpu.vector_store %arg6[%c8, %c0_18], %17 {strides = array<i32>} : memref<288x65xf32, #tpu.memory_space<vmem>>, vector<8x65xf32>,
    %c0_19 = arith.constant 0 : index
    %c0_20 = arith.constant 0 : index
    %c2_21 = arith.constant 2 : index
    %19 = vector.load %arg1[%c0_19, %c0_20, %c2_21] : memref<1x8x100xf32, #tpu.memory_space<vmem>>, vector<1x8x65xf32>
    %20 = vector.shape_cast %19 : vector<1x8x65xf32> to vector<8x65xf32>
    %c16 = arith.constant 16 : index
    %c0_22 = arith.constant 0 : index
    %21 = vector.load %arg6[%c16, %c0_22] : memref<288x65xf32, #tpu.memory_space<vmem>>, vector<8x65xf32>
    tpu.vector_store %arg6[%c16, %c0_22], %20 {strides = array<i32>} : memref<288x65xf32, #tpu.memory_space<vmem>>, vector<8x65xf32>,
    %c0_23 = arith.constant 0 : index
    %c0_24 = arith.constant 0 : index
    %c3 = arith.constant 3 : index
    %22 = vector.load %arg1[%c0_23, %c0_24, %c3] : memref<1x8x100xf32, #tpu.memory_space<vmem>>, vector<1x8x65xf32>
    %23 = vector.shape_cast %22 : vector<1x8x65xf32> to vector<8x65xf32>
    %c24 = arith.constant 24 : index
    %c0_25 = arith.constant 0 : index
    %24 = vector.load %arg6[%c24, %c0_25] : memref<288x65xf32, #tpu.memory_space<vmem>>, vector<8x65xf32>
    tpu.vector_store %arg6[%c24, %c0_25], %23 {strides = array<i32>} : memref<288x65xf32, #tpu.memory_space<vmem>>, vector<8x65xf32>,
    %c0_26 = arith.constant 0 : index
    %c0_27 = arith.constant 0 : index
    %c4 = arith.constant 4 : index
    %25 = vector.load %arg1[%c0_26, %c0_27, %c4] : memref<1x8x100xf32, #tpu.memory_space<vmem>>, vector<1x8x65xf32>
    %26 = vector.shape_cast %25 : vector<1x8x65xf32> to vector<8x65xf32>
    %c32 = arith.constant 32 : index
    %c0_28 = arith.constant 0 : index
    %27 = vector.load %arg6[%c32, %c0_28] : memref<288x65xf32, #tpu.memory_space<vmem>>, vector<8x65xf32>
    tpu.vector_store %arg6[%c32, %c0_28], %26 {strides = array<i32>} : memref<288x65xf32, #tpu.memory_space<vmem>>, vector<8x65xf32>,
    %c0_29 = arith.constant 0 : index
    %c0_30 = arith.constant 0 : index
    %c5 = arith.constant 5 : index
    %28 = vector.load %arg1[%c0_29, %c0_30, %c5] : memref<1x8x100xf32, #tpu.memory_space<vmem>>, vector<1x8x65xf32>
    %29 = vector.shape_cast %28 : vector<1x8x65xf32> to vector<8x65xf32>
    %c40 = arith.constant 40 : index
    %c0_31 = arith.constant 0 : index
    %30 = vector.load %arg6[%c40, %c0_31] : memref<288x65xf32, #tpu.memory_space<vmem>>, vector<8x65xf32>
    tpu.vector_store %arg6[%c40, %c0_31], %29 {strides = array<i32>} : memref<288x65xf32, #tpu.memory_space<vmem>>, vector<8x65xf32>,
    %c0_32 = arith.constant 0 : index
    %c0_33 = arith.constant 0 : index
    %c6 = arith.constant 6 : index
    %31 = vector.load %arg1[%c0_32, %c0_33, %c6] : memref<1x8x100xf32, #tpu.memory_space<vmem>>, vector<1x8x65xf32>
    %32 = vector.shape_cast %31 : vector<1x8x65xf32> to vector<8x65xf32>
    %c48 = arith.constant 48 : index
    %c0_34 = arith.constant 0 : index
    %33 = vector.load %arg6[%c48, %c0_34] : memref<288x65xf32, #tpu.memory_space<vmem>>, vector<8x65xf32>
    tpu.vector_store %arg6[%c48, %c0_34], %32 {strides = array<i32>} : memref<288x65xf32, #tpu.memory_space<vmem>>, vector<8x65xf32>,
    %c0_35 = arith.constant 0 : index
    %c0_36 = arith.constant 0 : index
    %c7 = arith.constant 7 : index
    %34 = vector.load %arg1[%c0_35, %c0_36, %c7] : memref<1x8x100xf32, #tpu.memory_space<vmem>>, vector<1x8x65xf32>
    %35 = vector.shape_cast %34 : vector<1x8x65xf32> to vector<8x65xf32>
    %c56 = arith.constant 56 : index
    %c0_37 = arith.constant 0 : index
    %36 = vector.load %arg6[%c56, %c0_37] : memref<288x65xf32, #tpu.memory_space<vmem>>, vector<8x65xf32>
    tpu.vector_store %arg6[%c56, %c0_37], %35 {strides = array<i32>} : memref<288x65xf32, #tpu.memory_space<vmem>>, vector<8x65xf32>,
    %c0_38 = arith.constant 0 : index
    %c0_39 = arith.constant 0 : index
    %c8_40 = arith.constant 8 : index
    %37 = vector.load %arg1[%c0_38, %c0_39, %c8_40] : memref<1x8x100xf32, #tpu.memory_space<vmem>>, vector<1x8x65xf32>
    %38 = vector.shape_cast %37 : vector<1x8x65xf32> to vector<8x65xf32>
    %c64 = arith.constant 64 : index
    %c0_41 = arith.constant 0 : index
    %39 = vector.load %arg6[%c64, %c0_41] : memref<288x65xf32, #tpu.memory_space<vmem>>, vector<8x65xf32>
    tpu.vector_store %arg6[%c64, %c0_41], %38 {strides = array<i32>} : memref<288x65xf32, #tpu.memory_space<vmem>>, vector<8x65xf32>,
    %c0_42 = arith.constant 0 : index
    %c0_43 = arith.constant 0 : index
    %c9 = arith.constant 9 : index
    %40 = vector.load %arg1[%c0_42, %c0_43, %c9] : memref<1x8x100xf32, #tpu.memory_space<vmem>>, vector<1x8x65xf32>
    %41 = vector.shape_cast %40 : vector<1x8x65xf32> to vector<8x65xf32>
    %c72 = arith.constant 72 : index
    %c0_44 = arith.constant 0 : index
    %42 = vector.load %arg6[%c72, %c0_44] : memref<288x65xf32, #tpu.memory_space<vmem>>, vector<8x65xf32>
    tpu.vector_store %arg6[%c72, %c0_44], %41 {strides = array<i32>} : memref<288x65xf32, #tpu.memory_space<vmem>>, vector<8x65xf32>,
    %c0_45 = arith.constant 0 : index
    %c0_46 = arith.constant 0 : index
    %c10 = arith.constant 10 : index
    %43 = vector.load %arg1[%c0_45, %c0_46, %c10] : memref<1x8x100xf32, #tpu.memory_space<vmem>>, vector<1x8x65xf32>
    %44 = vector.shape_cast %43 : vector<1x8x65xf32> to vector<8x65xf32>
    %c80 = arith.constant 80 : index
    %c0_47 = arith.constant 0 : index
    %45 = vector.load %arg6[%c80, %c0_47] : memref<288x65xf32, #tpu.memory_space<vmem>>, vector<8x65xf32>
    tpu.vector_store %arg6[%c80, %c0_47], %44 {strides = array<i32>} : memref<288x65xf32, #tpu.memory_space<vmem>>, vector<8x65xf32>,
    %c0_48 = arith.constant 0 : index
    %c0_49 = arith.constant 0 : index
    %c11 = arith.constant 11 : index
    %46 = vector.load %arg1[%c0_48, %c0_49, %c11] : memref<1x8x100xf32, #tpu.memory_space<vmem>>, vector<1x8x65xf32>
    %47 = vector.shape_cast %46 : vector<1x8x65xf32> to vector<8x65xf32>
    %c88 = arith.constant 88 : index
    %c0_50 = arith.constant 0 : index
    %48 = vector.load %arg6[%c88, %c0_50] : memref<288x65xf32, #tpu.memory_space<vmem>>, vector<8x65xf32>
    tpu.vector_store %arg6[%c88, %c0_50], %47 {strides = array<i32>} : memref<288x65xf32, #tpu.memory_space<vmem>>, vector<8x65xf32>,
    %c0_51 = arith.constant 0 : index
    %c0_52 = arith.constant 0 : index
    %c12 = arith.constant 12 : index
    %49 = vector.load %arg1[%c0_51, %c0_52, %c12] : memref<1x8x100xf32, #tpu.memory_space<vmem>>, vector<1x8x65xf32>
    %50 = vector.shape_cast %49 : vector<1x8x65xf32> to vector<8x65xf32>
    %c96 = arith.constant 96 : index
    %c0_53 = arith.constant 0 : index
    %51 = vector.load %arg6[%c96, %c0_53] : memref<288x65xf32, #tpu.memory_space<vmem>>, vector<8x65xf32>
    tpu.vector_store %arg6[%c96, %c0_53], %50 {strides = array<i32>} : memref<288x65xf32, #tpu.memory_space<vmem>>, vector<8x65xf32>,
    %c0_54 = arith.constant 0 : index
    %c0_55 = arith.constant 0 : index
    %c13 = arith.constant 13 : index
    %52 = vector.load %arg1[%c0_54, %c0_55, %c13] : memref<1x8x100xf32, #tpu.memory_space<vmem>>, vector<1x8x65xf32>
    %53 = vector.shape_cast %52 : vector<1x8x65xf32> to vector<8x65xf32>
    %c104 = arith.constant 104 : index
    %c0_56 = arith.constant 0 : index
    %54 = vector.load %arg6[%c104, %c0_56] : memref<288x65xf32, #tpu.memory_space<vmem>>, vector<8x65xf32>
    tpu.vector_store %arg6[%c104, %c0_56], %53 {strides = array<i32>} : memref<288x65xf32, #tpu.memory_space<vmem>>, vector<8x65xf32>,
    %c0_57 = arith.constant 0 : index
    %c0_58 = arith.constant 0 : index
    %c14 = arith.constant 14 : index
    %55 = vector.load %arg1[%c0_57, %c0_58, %c14] : memref<1x8x100xf32, #tpu.memory_space<vmem>>, vector<1x8x65xf32>
    %56 = vector.shape_cast %55 : vector<1x8x65xf32> to vector<8x65xf32>
    %c112 = arith.constant 112 : index
    %c0_59 = arith.constant 0 : index
    %57 = vector.load %arg6[%c112, %c0_59] : memref<288x65xf32, #tpu.memory_space<vmem>>, vector<8x65xf32>
    tpu.vector_store %arg6[%c112, %c0_59], %56 {strides = array<i32>} : memref<288x65xf32, #tpu.memory_space<vmem>>, vector<8x65xf32>,
    %c0_60 = arith.constant 0 : index
    %c0_61 = arith.constant 0 : index
    %c15 = arith.constant 15 : index
    %58 = vector.load %arg1[%c0_60, %c0_61, %c15] : memref<1x8x100xf32, #tpu.memory_space<vmem>>, vector<1x8x65xf32>
    %59 = vector.shape_cast %58 : vector<1x8x65xf32> to vector<8x65xf32>
    %c120 = arith.constant 120 : index
    %c0_62 = arith.constant 0 : index
    %60 = vector.load %arg6[%c120, %c0_62] : memref<288x65xf32, #tpu.memory_space<vmem>>, vector<8x65xf32>
    tpu.vector_store %arg6[%c120, %c0_62], %59 {strides = array<i32>} : memref<288x65xf32, #tpu.memory_space<vmem>>, vector<8x65xf32>,
    %c0_63 = arith.constant 0 : index
    %c0_64 = arith.constant 0 : index
    %c16_65 = arith.constant 16 : index
    %61 = vector.load %arg1[%c0_63, %c0_64, %c16_65] : memref<1x8x100xf32, #tpu.memory_space<vmem>>, vector<1x8x65xf32>
    %62 = vector.shape_cast %61 : vector<1x8x65xf32> to vector<8x65xf32>
    %c128 = arith.constant 128 : index
    %c0_66 = arith.constant 0 : index
    %63 = vector.load %arg6[%c128, %c0_66] : memref<288x65xf32, #tpu.memory_space<vmem>>, vector<8x65xf32>
    tpu.vector_store %arg6[%c128, %c0_66], %62 {strides = array<i32>} : memref<288x65xf32, #tpu.memory_space<vmem>>, vector<8x65xf32>,
    %c0_67 = arith.constant 0 : index
    %c0_68 = arith.constant 0 : index
    %c17 = arith.constant 17 : index
    %64 = vector.load %arg1[%c0_67, %c0_68, %c17] : memref<1x8x100xf32, #tpu.memory_space<vmem>>, vector<1x8x65xf32>
    %65 = vector.shape_cast %64 : vector<1x8x65xf32> to vector<8x65xf32>
    %c136 = arith.constant 136 : index
    %c0_69 = arith.constant 0 : index
    %66 = vector.load %arg6[%c136, %c0_69] : memref<288x65xf32, #tpu.memory_space<vmem>>, vector<8x65xf32>
    tpu.vector_store %arg6[%c136, %c0_69], %65 {strides = array<i32>} : memref<288x65xf32, #tpu.memory_space<vmem>>, vector<8x65xf32>,
    %c0_70 = arith.constant 0 : index
    %c0_71 = arith.constant 0 : index
    %c18 = arith.constant 18 : index
    %67 = vector.load %arg1[%c0_70, %c0_71, %c18] : memref<1x8x100xf32, #tpu.memory_space<vmem>>, vector<1x8x65xf32>
    %68 = vector.shape_cast %67 : vector<1x8x65xf32> to vector<8x65xf32>
    %c144 = arith.constant 144 : index
    %c0_72 = arith.constant 0 : index
    %69 = vector.load %arg6[%c144, %c0_72] : memref<288x65xf32, #tpu.memory_space<vmem>>, vector<8x65xf32>
    tpu.vector_store %arg6[%c144, %c0_72], %68 {strides = array<i32>} : memref<288x65xf32, #tpu.memory_space<vmem>>, vector<8x65xf32>,
    %c0_73 = arith.constant 0 : index
    %c0_74 = arith.constant 0 : index
    %c19 = arith.constant 19 : index
    %70 = vector.load %arg1[%c0_73, %c0_74, %c19] : memref<1x8x100xf32, #tpu.memory_space<vmem>>, vector<1x8x65xf32>
    %71 = vector.shape_cast %70 : vector<1x8x65xf32> to vector<8x65xf32>
    %c152 = arith.constant 152 : index
    %c0_75 = arith.constant 0 : index
    %72 = vector.load %arg6[%c152, %c0_75] : memref<288x65xf32, #tpu.memory_space<vmem>>, vector<8x65xf32>
    tpu.vector_store %arg6[%c152, %c0_75], %71 {strides = array<i32>} : memref<288x65xf32, #tpu.memory_space<vmem>>, vector<8x65xf32>,
    %c0_76 = arith.constant 0 : index
    %c0_77 = arith.constant 0 : index
    %c20 = arith.constant 20 : index
    %73 = vector.load %arg1[%c0_76, %c0_77, %c20] : memref<1x8x100xf32, #tpu.memory_space<vmem>>, vector<1x8x65xf32>
    %74 = vector.shape_cast %73 : vector<1x8x65xf32> to vector<8x65xf32>
    %c160 = arith.constant 160 : index
    %c0_78 = arith.constant 0 : index
    %75 = vector.load %arg6[%c160, %c0_78] : memref<288x65xf32, #tpu.memory_space<vmem>>, vector<8x65xf32>
    tpu.vector_store %arg6[%c160, %c0_78], %74 {strides = array<i32>} : memref<288x65xf32, #tpu.memory_space<vmem>>, vector<8x65xf32>,
    %c0_79 = arith.constant 0 : index
    %c0_80 = arith.constant 0 : index
    %c21 = arith.constant 21 : index
    %76 = vector.load %arg1[%c0_79, %c0_80, %c21] : memref<1x8x100xf32, #tpu.memory_space<vmem>>, vector<1x8x65xf32>
    %77 = vector.shape_cast %76 : vector<1x8x65xf32> to vector<8x65xf32>
    %c168 = arith.constant 168 : index
    %c0_81 = arith.constant 0 : index
    %78 = vector.load %arg6[%c168, %c0_81] : memref<288x65xf32, #tpu.memory_space<vmem>>, vector<8x65xf32>
    tpu.vector_store %arg6[%c168, %c0_81], %77 {strides = array<i32>} : memref<288x65xf32, #tpu.memory_space<vmem>>, vector<8x65xf32>,
    %c0_82 = arith.constant 0 : index
    %c0_83 = arith.constant 0 : index
    %c22 = arith.constant 22 : index
    %79 = vector.load %arg1[%c0_82, %c0_83, %c22] : memref<1x8x100xf32, #tpu.memory_space<vmem>>, vector<1x8x65xf32>
    %80 = vector.shape_cast %79 : vector<1x8x65xf32> to vector<8x65xf32>
    %c176 = arith.constant 176 : index
    %c0_84 = arith.constant 0 : index
    %81 = vector.load %arg6[%c176, %c0_84] : memref<288x65xf32, #tpu.memory_space<vmem>>, vector<8x65xf32>
    tpu.vector_store %arg6[%c176, %c0_84], %80 {strides = array<i32>} : memref<288x65xf32, #tpu.memory_space<vmem>>, vector<8x65xf32>,
    %c0_85 = arith.constant 0 : index
    %c0_86 = arith.constant 0 : index
    %c23 = arith.constant 23 : index
    %82 = vector.load %arg1[%c0_85, %c0_86, %c23] : memref<1x8x100xf32, #tpu.memory_space<vmem>>, vector<1x8x65xf32>
    %83 = vector.shape_cast %82 : vector<1x8x65xf32> to vector<8x65xf32>
    %c184 = arith.constant 184 : index
    %c0_87 = arith.constant 0 : index
    %84 = vector.load %arg6[%c184, %c0_87] : memref<288x65xf32, #tpu.memory_space<vmem>>, vector<8x65xf32>
    tpu.vector_store %arg6[%c184, %c0_87], %83 {strides = array<i32>} : memref<288x65xf32, #tpu.memory_space<vmem>>, vector<8x65xf32>,
    %c0_88 = arith.constant 0 : index
    %c0_89 = arith.constant 0 : index
    %c24_90 = arith.constant 24 : index
    %85 = vector.load %arg1[%c0_88, %c0_89, %c24_90] : memref<1x8x100xf32, #tpu.memory_space<vmem>>, vector<1x8x65xf32>
    %86 = vector.shape_cast %85 : vector<1x8x65xf32> to vector<8x65xf32>
    %c192 = arith.constant 192 : index
    %c0_91 = arith.constant 0 : index
    %87 = vector.load %arg6[%c192, %c0_91] : memref<288x65xf32, #tpu.memory_space<vmem>>, vector<8x65xf32>
    tpu.vector_store %arg6[%c192, %c0_91], %86 {strides = array<i32>} : memref<288x65xf32, #tpu.memory_space<vmem>>, vector<8x65xf32>,
    %c0_92 = arith.constant 0 : index
    %c0_93 = arith.constant 0 : index
    %c25 = arith.constant 25 : index
    %88 = vector.load %arg1[%c0_92, %c0_93, %c25] : memref<1x8x100xf32, #tpu.memory_space<vmem>>, vector<1x8x65xf32>
    %89 = vector.shape_cast %88 : vector<1x8x65xf32> to vector<8x65xf32>
    %c200 = arith.constant 200 : index
    %c0_94 = arith.constant 0 : index
    %90 = vector.load %arg6[%c200, %c0_94] : memref<288x65xf32, #tpu.memory_space<vmem>>, vector<8x65xf32>
    tpu.vector_store %arg6[%c200, %c0_94], %89 {strides = array<i32>} : memref<288x65xf32, #tpu.memory_space<vmem>>, vector<8x65xf32>,
    %c0_95 = arith.constant 0 : index
    %c0_96 = arith.constant 0 : index
    %c26 = arith.constant 26 : index
    %91 = vector.load %arg1[%c0_95, %c0_96, %c26] : memref<1x8x100xf32, #tpu.memory_space<vmem>>, vector<1x8x65xf32>
    %92 = vector.shape_cast %91 : vector<1x8x65xf32> to vector<8x65xf32>
    %c208 = arith.constant 208 : index
    %c0_97 = arith.constant 0 : index
    %93 = vector.load %arg6[%c208, %c0_97] : memref<288x65xf32, #tpu.memory_space<vmem>>, vector<8x65xf32>
    tpu.vector_store %arg6[%c208, %c0_97], %92 {strides = array<i32>} : memref<288x65xf32, #tpu.memory_space<vmem>>, vector<8x65xf32>,
    %c0_98 = arith.constant 0 : index
    %c0_99 = arith.constant 0 : index
    %c27 = arith.constant 27 : index
    %94 = vector.load %arg1[%c0_98, %c0_99, %c27] : memref<1x8x100xf32, #tpu.memory_space<vmem>>, vector<1x8x65xf32>
    %95 = vector.shape_cast %94 : vector<1x8x65xf32> to vector<8x65xf32>
    %c216 = arith.constant 216 : index
    %c0_100 = arith.constant 0 : index
    %96 = vector.load %arg6[%c216, %c0_100] : memref<288x65xf32, #tpu.memory_space<vmem>>, vector<8x65xf32>
    tpu.vector_store %arg6[%c216, %c0_100], %95 {strides = array<i32>} : memref<288x65xf32, #tpu.memory_space<vmem>>, vector<8x65xf32>,
    %c0_101 = arith.constant 0 : index
    %c0_102 = arith.constant 0 : index
    %c28 = arith.constant 28 : index
    %97 = vector.load %arg1[%c0_101, %c0_102, %c28] : memref<1x8x100xf32, #tpu.memory_space<vmem>>, vector<1x8x65xf32>
    %98 = vector.shape_cast %97 : vector<1x8x65xf32> to vector<8x65xf32>
    %c224 = arith.constant 224 : index
    %c0_103 = arith.constant 0 : index
    %99 = vector.load %arg6[%c224, %c0_103] : memref<288x65xf32, #tpu.memory_space<vmem>>, vector<8x65xf32>
    tpu.vector_store %arg6[%c224, %c0_103], %98 {strides = array<i32>} : memref<288x65xf32, #tpu.memory_space<vmem>>, vector<8x65xf32>,
    %c0_104 = arith.constant 0 : index
    %c0_105 = arith.constant 0 : index
    %c29 = arith.constant 29 : index
    %100 = vector.load %arg1[%c0_104, %c0_105, %c29] : memref<1x8x100xf32, #tpu.memory_space<vmem>>, vector<1x8x65xf32>
    %101 = vector.shape_cast %100 : vector<1x8x65xf32> to vector<8x65xf32>
    %c232 = arith.constant 232 : index
    %c0_106 = arith.constant 0 : index
    %102 = vector.load %arg6[%c232, %c0_106] : memref<288x65xf32, #tpu.memory_space<vmem>>, vector<8x65xf32>
    tpu.vector_store %arg6[%c232, %c0_106], %101 {strides = array<i32>} : memref<288x65xf32, #tpu.memory_space<vmem>>, vector<8x65xf32>,
    %c0_107 = arith.constant 0 : index
    %c0_108 = arith.constant 0 : index
    %c30 = arith.constant 30 : index
    %103 = vector.load %arg1[%c0_107, %c0_108, %c30] : memref<1x8x100xf32, #tpu.memory_space<vmem>>, vector<1x8x65xf32>
    %104 = vector.shape_cast %103 : vector<1x8x65xf32> to vector<8x65xf32>
    %c240 = arith.constant 240 : index
    %c0_109 = arith.constant 0 : index
    %105 = vector.load %arg6[%c240, %c0_109] : memref<288x65xf32, #tpu.memory_space<vmem>>, vector<8x65xf32>
    tpu.vector_store %arg6[%c240, %c0_109], %104 {strides = array<i32>} : memref<288x65xf32, #tpu.memory_space<vmem>>, vector<8x65xf32>,
    %c0_110 = arith.constant 0 : index
    %c0_111 = arith.constant 0 : index
    %c31 = arith.constant 31 : index
    %106 = vector.load %arg1[%c0_110, %c0_111, %c31] : memref<1x8x100xf32, #tpu.memory_space<vmem>>, vector<1x8x65xf32>
    %107 = vector.shape_cast %106 : vector<1x8x65xf32> to vector<8x65xf32>
    %c248 = arith.constant 248 : index
    %c0_112 = arith.constant 0 : index
    %108 = vector.load %arg6[%c248, %c0_112] : memref<288x65xf32, #tpu.memory_space<vmem>>, vector<8x65xf32>
    tpu.vector_store %arg6[%c248, %c0_112], %107 {strides = array<i32>} : memref<288x65xf32, #tpu.memory_space<vmem>>, vector<8x65xf32>,
    %c0_113 = arith.constant 0 : index
    %c0_114 = arith.constant 0 : index
    %c32_115 = arith.constant 32 : index
    %109 = vector.load %arg1[%c0_113, %c0_114, %c32_115] : memref<1x8x100xf32, #tpu.memory_space<vmem>>, vector<1x8x65xf32>
    %110 = vector.shape_cast %109 : vector<1x8x65xf32> to vector<8x65xf32>
    %c256 = arith.constant 256 : index
    %c0_116 = arith.constant 0 : index
    %111 = vector.load %arg6[%c256, %c0_116] : memref<288x65xf32, #tpu.memory_space<vmem>>, vector<8x65xf32>
    tpu.vector_store %arg6[%c256, %c0_116], %110 {strides = array<i32>} : memref<288x65xf32, #tpu.memory_space<vmem>>, vector<8x65xf32>,
    %c0_117 = arith.constant 0 : index
    %c0_118 = arith.constant 0 : index
    %c33 = arith.constant 33 : index
    %112 = vector.load %arg1[%c0_117, %c0_118, %c33] : memref<1x8x100xf32, #tpu.memory_space<vmem>>, vector<1x8x65xf32>
    %113 = vector.shape_cast %112 : vector<1x8x65xf32> to vector<8x65xf32>
    %c264 = arith.constant 264 : index
    %c0_119 = arith.constant 0 : index
    %114 = vector.load %arg6[%c264, %c0_119] : memref<288x65xf32, #tpu.memory_space<vmem>>, vector<8x65xf32>
    tpu.vector_store %arg6[%c264, %c0_119], %113 {strides = array<i32>} : memref<288x65xf32, #tpu.memory_space<vmem>>, vector<8x65xf32>,
    %c0_120 = arith.constant 0 : index
    %c0_121 = arith.constant 0 : index
    %c34 = arith.constant 34 : index
    %115 = vector.load %arg1[%c0_120, %c0_121, %c34] : memref<1x8x100xf32, #tpu.memory_space<vmem>>, vector<1x8x65xf32>
    %116 = vector.shape_cast %115 : vector<1x8x65xf32> to vector<8x65xf32>
    %c272 = arith.constant 272 : index
    %c0_122 = arith.constant 0 : index
    %117 = vector.load %arg6[%c272, %c0_122] : memref<288x65xf32, #tpu.memory_space<vmem>>, vector<8x65xf32>
    tpu.vector_store %arg6[%c272, %c0_122], %116 {strides = array<i32>} : memref<288x65xf32, #tpu.memory_space<vmem>>, vector<8x65xf32>,
    %c0_123 = arith.constant 0 : index
    %c0_124 = arith.constant 0 : index
    %c35 = arith.constant 35 : index
    %118 = vector.load %arg1[%c0_123, %c0_124, %c35] : memref<1x8x100xf32, #tpu.memory_space<vmem>>, vector<1x8x65xf32>
    %119 = vector.shape_cast %118 : vector<1x8x65xf32> to vector<8x65xf32>
    %c280 = arith.constant 280 : index
    %c0_125 = arith.constant 0 : index
    %120 = vector.load %arg6[%c280, %c0_125] : memref<288x65xf32, #tpu.memory_space<vmem>>, vector<8x65xf32>
    tpu.vector_store %arg6[%c280, %c0_125], %119 {strides = array<i32>} : memref<288x65xf32, #tpu.memory_space<vmem>>, vector<8x65xf32>,
    %c0_126 = arith.constant 0 : index
    %c0_127 = arith.constant 0 : index
    %121 = vector.load %arg6[%c0_126, %c0_127] : memref<288x65xf32, #tpu.memory_space<vmem>>, vector<288x65xf32>
    %cst = arith.constant dense<0.000000e+00> : vector<15x65xf32>
    %122 = tpu.matmul %0, %121, %cst {dimension_numbers = #tpu.dot_dimension_numbers<[1], [0], [0], [1], [0, 0, 1, 1], [], []>} : vector<15x288xf32>, vector<288x65xf32>, vector<15x65xf32> -> vector<15x65xf32>
    %123 = arith.addf %122, %1 : vector<15x65xf32>
    %124 = vector.extract_strided_slice %123 {offsets = [0, 0], sizes = [15, 22], strides = [1, 1]} : vector<15x65xf32> to vector<15x22xf32>
    %cst_128 = arith.constant dense<0.000000e+00> : vector<15xf32>
    %125 = vector.multi_reduction <add>, %124, %cst_128 [1] : vector<15x22xf32> to vector<15xf32>
    %126 = vector.shape_cast %125 : vector<15xf32> to vector<15x1xf32>
    %cst_129 = arith.constant 2.200000e+01 : f32
    %127 = vector.broadcast %cst_129 : f32 to vector<15x1xf32>
    %128 = arith.divf %126, %127 : vector<15x1xf32>
    %129 = vector.broadcast %128 : vector<15x1xf32> to vector<15x22xf32>
    %130 = arith.subf %124, %129 : vector<15x22xf32>
    %cst_130 = arith.constant dense<0.000000e+00> : vector<15x15xf32>
    %131 = tpu.matmul %130, %130, %cst_130 {dimension_numbers = #tpu.dot_dimension_numbers<[1], [1], [0], [0], [0, 0, 1, 0], [], []>} : vector<15x22xf32>, vector<15x22xf32>, vector<15x15xf32> -> vector<15x15xf32>
    %132 = arith.mulf %130, %130 : vector<15x22xf32>
    %133 = vector.shape_cast %132 : vector<15x22xf32> to vector<1x15x22xf32>
    %cst_131 = arith.constant dense<0.000000e+00> : vector<1xf32>
    %134 = vector.multi_reduction <add>, %133, %cst_131 [1, 2] : vector<1x15x22xf32> to vector<1xf32>
    %135 = vector.shape_cast %134 : vector<1xf32> to vector<1x1x1xf32>
    %136 = vector.extract %135[0, 0, 0] : f32 from vector<1x1x1xf32>
    %137 = vector.broadcast %136 : f32 to vector<15x15xf32>
    %138 = arith.divf %131, %137 : vector<15x15xf32>
    %cst_132 = arith.constant 9.99999974E-6 : f32
    %139 = vector.broadcast %cst_132 : f32 to vector<15x15xf32>
    %140 = arith.mulf %139, %12 : vector<15x15xf32>
    %141 = arith.addf %138, %140 : vector<15x15xf32>
    %cst_133 = arith.constant dense<0.000000e+00> : vector<12x15xf32>
    %142 = tpu.matmul %3, %141, %cst_133 {dimension_numbers = #tpu.dot_dimension_numbers<[1], [0], [0], [1], [0, 0, 1, 1], [], []>} : vector<12x15xf32>, vector<15x15xf32>, vector<12x15xf32> -> vector<12x15xf32>
    %cst_134 = arith.constant dense<0.000000e+00> : vector<12x12xf32>
    %143 = tpu.matmul %142, %3, %cst_134 {dimension_numbers = #tpu.dot_dimension_numbers<[1], [1], [0], [0], [0, 0, 1, 0], [], []>} : vector<12x15xf32>, vector<12x15xf32>, vector<12x12xf32> -> vector<12x12xf32>
    %c0_135 = arith.constant 0 : index
    %c0_136 = arith.constant 0 : index
    %c0_137 = arith.constant 0 : index
    %c0_138 = arith.constant 0 : index
    %c0_139 = arith.constant 0 : index
    %144 = vector.load %arg5[%c0_135, %c0_136, %c0_137, %c0_138, %c0_139] : memref<1x3x3x12x12xf32, #tpu.memory_space<vmem>>, vector<1x1x1x12x12xf32>
    %145 = vector.shape_cast %144 : vector<1x1x1x12x12xf32> to vector<12x12xf32>
    %146 = vector.shape_cast %143 : vector<12x12xf32> to vector<1x1x1x12x12xf32>
    tpu.vector_store %arg5[%c0_135, %c0_136, %c0_137, %c0_138, %c0_139], %146 {strides = array<i32>} : memref<1x3x3x12x12xf32, #tpu.memory_space<vmem>>, vector<1x1x1x12x12xf32>,
    %cst_140 = arith.constant dense<0.000000e+00> : vector<12x15xf32>
    %147 = tpu.matmul %5, %141, %cst_140 {dimension_numbers = #tpu.dot_dimension_numbers<[1], [0], [0], [1], [0, 0, 1, 1], [], []>} : vector<12x15xf32>, vector<15x15xf32>, vector<12x15xf32> -> vector<12x15xf32>
    %cst_141 = arith.constant dense<0.000000e+00> : vector<12x12xf32>
    %148 = tpu.matmul %147, %5, %cst_141 {dimension_numbers = #tpu.dot_dimension_numbers<[1], [1], [0], [0], [0, 0, 1, 0], [], []>} : vector<12x15xf32>, vector<12x15xf32>, vector<12x12xf32> -> vector<12x12xf32>
    %c0_142 = arith.constant 0 : index
    %c1_143 = arith.constant 1 : index
    %c0_144 = arith.constant 0 : index
    %c0_145 = arith.constant 0 : index
    %c0_146 = arith.constant 0 : index
    %149 = vector.load %arg5[%c0_142, %c1_143, %c0_144, %c0_145, %c0_146] : memref<1x3x3x12x12xf32, #tpu.memory_space<vmem>>, vector<1x1x1x12x12xf32>
    %150 = vector.shape_cast %149 : vector<1x1x1x12x12xf32> to vector<12x12xf32>
    %151 = vector.shape_cast %148 : vector<12x12xf32> to vector<1x1x1x12x12xf32>
    tpu.vector_store %arg5[%c0_142, %c1_143, %c0_144, %c0_145, %c0_146], %151 {strides = array<i32>} : memref<1x3x3x12x12xf32, #tpu.memory_space<vmem>>, vector<1x1x1x12x12xf32>,
    %cst_147 = arith.constant dense<0.000000e+00> : vector<12x15xf32>
    %152 = tpu.matmul %7, %141, %cst_147 {dimension_numbers = #tpu.dot_dimension_numbers<[1], [0], [0], [1], [0, 0, 1, 1], [], []>} : vector<12x15xf32>, vector<15x15xf32>, vector<12x15xf32> -> vector<12x15xf32>
    %cst_148 = arith.constant dense<0.000000e+00> : vector<12x12xf32>
    %153 = tpu.matmul %152, %7, %cst_148 {dimension_numbers = #tpu.dot_dimension_numbers<[1], [1], [0], [0], [0, 0, 1, 0], [], []>} : vector<12x15xf32>, vector<12x15xf32>, vector<12x12xf32> -> vector<12x12xf32>
    %c0_149 = arith.constant 0 : index
    %c2_150 = arith.constant 2 : index
    %c0_151 = arith.constant 0 : index
    %c0_152 = arith.constant 0 : index
    %c0_153 = arith.constant 0 : index
    %154 = vector.load %arg5[%c0_149, %c2_150, %c0_151, %c0_152, %c0_153] : memref<1x3x3x12x12xf32, #tpu.memory_space<vmem>>, vector<1x1x1x12x12xf32>
    %155 = vector.shape_cast %154 : vector<1x1x1x12x12xf32> to vector<12x12xf32>
    %156 = vector.shape_cast %153 : vector<12x12xf32> to vector<1x1x1x12x12xf32>
    tpu.vector_store %arg5[%c0_149, %c2_150, %c0_151, %c0_152, %c0_153], %156 {strides = array<i32>} : memref<1x3x3x12x12xf32, #tpu.memory_space<vmem>>, vector<1x1x1x12x12xf32>,
    %157 = vector.extract_strided_slice %123 {offsets = [0, 22], sizes = [15, 22], strides = [1, 1]} : vector<15x65xf32> to vector<15x22xf32>
    %cst_154 = arith.constant dense<0.000000e+00> : vector<15xf32>
    %158 = vector.multi_reduction <add>, %157, %cst_154 [1] : vector<15x22xf32> to vector<15xf32>
    %159 = vector.shape_cast %158 : vector<15xf32> to vector<15x1xf32>
    %cst_155 = arith.constant 2.200000e+01 : f32
    %160 = vector.broadcast %cst_155 : f32 to vector<15x1xf32>
    %161 = arith.divf %159, %160 : vector<15x1xf32>
    %162 = vector.broadcast %161 : vector<15x1xf32> to vector<15x22xf32>
    %163 = arith.subf %157, %162 : vector<15x22xf32>
    %cst_156 = arith.constant dense<0.000000e+00> : vector<15x15xf32>
    %164 = tpu.matmul %163, %163, %cst_156 {dimension_numbers = #tpu.dot_dimension_numbers<[1], [1], [0], [0], [0, 0, 1, 0], [], []>} : vector<15x22xf32>, vector<15x22xf32>, vector<15x15xf32> -> vector<15x15xf32>
    %165 = arith.mulf %163, %163 : vector<15x22xf32>
    %166 = vector.shape_cast %165 : vector<15x22xf32> to vector<1x15x22xf32>
    %cst_157 = arith.constant dense<0.000000e+00> : vector<1xf32>
    %167 = vector.multi_reduction <add>, %166, %cst_157 [1, 2] : vector<1x15x22xf32> to vector<1xf32>
    %168 = vector.shape_cast %167 : vector<1xf32> to vector<1x1x1xf32>
    %169 = vector.extract %168[0, 0, 0] : f32 from vector<1x1x1xf32>
    %170 = vector.broadcast %169 : f32 to vector<15x15xf32>
    %171 = arith.divf %164, %170 : vector<15x15xf32>
    %cst_158 = arith.constant 9.99999974E-6 : f32
    %172 = vector.broadcast %cst_158 : f32 to vector<15x15xf32>
    %173 = arith.mulf %172, %12 : vector<15x15xf32>
    %174 = arith.addf %171, %173 : vector<15x15xf32>
    %cst_159 = arith.constant dense<0.000000e+00> : vector<12x15xf32>
    %175 = tpu.matmul %3, %174, %cst_159 {dimension_numbers = #tpu.dot_dimension_numbers<[1], [0], [0], [1], [0, 0, 1, 1], [], []>} : vector<12x15xf32>, vector<15x15xf32>, vector<12x15xf32> -> vector<12x15xf32>
    %cst_160 = arith.constant dense<0.000000e+00> : vector<12x12xf32>
    %176 = tpu.matmul %175, %3, %cst_160 {dimension_numbers = #tpu.dot_dimension_numbers<[1], [1], [0], [0], [0, 0, 1, 0], [], []>} : vector<12x15xf32>, vector<12x15xf32>, vector<12x12xf32> -> vector<12x12xf32>
    %c0_161 = arith.constant 0 : index
    %c0_162 = arith.constant 0 : index
    %c1_163 = arith.constant 1 : index
    %c0_164 = arith.constant 0 : index
    %c0_165 = arith.constant 0 : index
    %177 = vector.load %arg5[%c0_161, %c0_162, %c1_163, %c0_164, %c0_165] : memref<1x3x3x12x12xf32, #tpu.memory_space<vmem>>, vector<1x1x1x12x12xf32>
    %178 = vector.shape_cast %177 : vector<1x1x1x12x12xf32> to vector<12x12xf32>
    %179 = vector.shape_cast %176 : vector<12x12xf32> to vector<1x1x1x12x12xf32>
    tpu.vector_store %arg5[%c0_161, %c0_162, %c1_163, %c0_164, %c0_165], %179 {strides = array<i32>} : memref<1x3x3x12x12xf32, #tpu.memory_space<vmem>>, vector<1x1x1x12x12xf32>,
    %cst_166 = arith.constant dense<0.000000e+00> : vector<12x15xf32>
    %180 = tpu.matmul %5, %174, %cst_166 {dimension_numbers = #tpu.dot_dimension_numbers<[1], [0], [0], [1], [0, 0, 1, 1], [], []>} : vector<12x15xf32>, vector<15x15xf32>, vector<12x15xf32> -> vector<12x15xf32>
    %cst_167 = arith.constant dense<0.000000e+00> : vector<12x12xf32>
    %181 = tpu.matmul %180, %5, %cst_167 {dimension_numbers = #tpu.dot_dimension_numbers<[1], [1], [0], [0], [0, 0, 1, 0], [], []>} : vector<12x15xf32>, vector<12x15xf32>, vector<12x12xf32> -> vector<12x12xf32>
    %c0_168 = arith.constant 0 : index
    %c1_169 = arith.constant 1 : index
    %c1_170 = arith.constant 1 : index
    %c0_171 = arith.constant 0 : index
    %c0_172 = arith.constant 0 : index
    %182 = vector.load %arg5[%c0_168, %c1_169, %c1_170, %c0_171, %c0_172] : memref<1x3x3x12x12xf32, #tpu.memory_space<vmem>>, vector<1x1x1x12x12xf32>
    %183 = vector.shape_cast %182 : vector<1x1x1x12x12xf32> to vector<12x12xf32>
    %184 = vector.shape_cast %181 : vector<12x12xf32> to vector<1x1x1x12x12xf32>
    tpu.vector_store %arg5[%c0_168, %c1_169, %c1_170, %c0_171, %c0_172], %184 {strides = array<i32>} : memref<1x3x3x12x12xf32, #tpu.memory_space<vmem>>, vector<1x1x1x12x12xf32>,
    %cst_173 = arith.constant dense<0.000000e+00> : vector<12x15xf32>
    %185 = tpu.matmul %7, %174, %cst_173 {dimension_numbers = #tpu.dot_dimension_numbers<[1], [0], [0], [1], [0, 0, 1, 1], [], []>} : vector<12x15xf32>, vector<15x15xf32>, vector<12x15xf32> -> vector<12x15xf32>
    %cst_174 = arith.constant dense<0.000000e+00> : vector<12x12xf32>
    %186 = tpu.matmul %185, %7, %cst_174 {dimension_numbers = #tpu.dot_dimension_numbers<[1], [1], [0], [0], [0, 0, 1, 0], [], []>} : vector<12x15xf32>, vector<12x15xf32>, vector<12x12xf32> -> vector<12x12xf32>
    %c0_175 = arith.constant 0 : index
    %c2_176 = arith.constant 2 : index
    %c1_177 = arith.constant 1 : index
    %c0_178 = arith.constant 0 : index
    %c0_179 = arith.constant 0 : index
    %187 = vector.load %arg5[%c0_175, %c2_176, %c1_177, %c0_178, %c0_179] : memref<1x3x3x12x12xf32, #tpu.memory_space<vmem>>, vector<1x1x1x12x12xf32>
    %188 = vector.shape_cast %187 : vector<1x1x1x12x12xf32> to vector<12x12xf32>
    %189 = vector.shape_cast %186 : vector<12x12xf32> to vector<1x1x1x12x12xf32>
    tpu.vector_store %arg5[%c0_175, %c2_176, %c1_177, %c0_178, %c0_179], %189 {strides = array<i32>} : memref<1x3x3x12x12xf32, #tpu.memory_space<vmem>>, vector<1x1x1x12x12xf32>,
    %190 = vector.extract_strided_slice %123 {offsets = [0, 44], sizes = [15, 21], strides = [1, 1]} : vector<15x65xf32> to vector<15x21xf32>
    %cst_180 = arith.constant dense<0.000000e+00> : vector<15xf32>
    %191 = vector.multi_reduction <add>, %190, %cst_180 [1] : vector<15x21xf32> to vector<15xf32>
    %192 = vector.shape_cast %191 : vector<15xf32> to vector<15x1xf32>
    %cst_181 = arith.constant 2.100000e+01 : f32
    %193 = vector.broadcast %cst_181 : f32 to vector<15x1xf32>
    %194 = arith.divf %192, %193 : vector<15x1xf32>
    %195 = vector.broadcast %194 : vector<15x1xf32> to vector<15x21xf32>
    %196 = arith.subf %190, %195 : vector<15x21xf32>
    %cst_182 = arith.constant dense<0.000000e+00> : vector<15x15xf32>
    %197 = tpu.matmul %196, %196, %cst_182 {dimension_numbers = #tpu.dot_dimension_numbers<[1], [1], [0], [0], [0, 0, 1, 0], [], []>} : vector<15x21xf32>, vector<15x21xf32>, vector<15x15xf32> -> vector<15x15xf32>
    %198 = arith.mulf %196, %196 : vector<15x21xf32>
    %199 = vector.shape_cast %198 : vector<15x21xf32> to vector<1x15x21xf32>
    %cst_183 = arith.constant dense<0.000000e+00> : vector<1xf32>
    %200 = vector.multi_reduction <add>, %199, %cst_183 [1, 2] : vector<1x15x21xf32> to vector<1xf32>
    %201 = vector.shape_cast %200 : vector<1xf32> to vector<1x1x1xf32>
    %202 = vector.extract %201[0, 0, 0] : f32 from vector<1x1x1xf32>
    %203 = vector.broadcast %202 : f32 to vector<15x15xf32>
    %204 = arith.divf %197, %203 : vector<15x15xf32>
    %cst_184 = arith.constant 9.99999974E-6 : f32
    %205 = vector.broadcast %cst_184 : f32 to vector<15x15xf32>
    %206 = arith.mulf %205, %12 : vector<15x15xf32>
    %207 = arith.addf %204, %206 : vector<15x15xf32>
    %cst_185 = arith.constant dense<0.000000e+00> : vector<12x15xf32>
    %208 = tpu.matmul %3, %207, %cst_185 {dimension_numbers = #tpu.dot_dimension_numbers<[1], [0], [0], [1], [0, 0, 1, 1], [], []>} : vector<12x15xf32>, vector<15x15xf32>, vector<12x15xf32> -> vector<12x15xf32>
    %cst_186 = arith.constant dense<0.000000e+00> : vector<12x12xf32>
    %209 = tpu.matmul %208, %3, %cst_186 {dimension_numbers = #tpu.dot_dimension_numbers<[1], [1], [0], [0], [0, 0, 1, 0], [], []>} : vector<12x15xf32>, vector<12x15xf32>, vector<12x12xf32> -> vector<12x12xf32>
    %c0_187 = arith.constant 0 : index
    %c0_188 = arith.constant 0 : index
    %c2_189 = arith.constant 2 : index
    %c0_190 = arith.constant 0 : index
    %c0_191 = arith.constant 0 : index
    %210 = vector.load %arg5[%c0_187, %c0_188, %c2_189, %c0_190, %c0_191] : memref<1x3x3x12x12xf32, #tpu.memory_space<vmem>>, vector<1x1x1x12x12xf32>
    %211 = vector.shape_cast %210 : vector<1x1x1x12x12xf32> to vector<12x12xf32>
    %212 = vector.shape_cast %209 : vector<12x12xf32> to vector<1x1x1x12x12xf32>
    tpu.vector_store %arg5[%c0_187, %c0_188, %c2_189, %c0_190, %c0_191], %212 {strides = array<i32>} : memref<1x3x3x12x12xf32, #tpu.memory_space<vmem>>, vector<1x1x1x12x12xf32>,
    %cst_192 = arith.constant dense<0.000000e+00> : vector<12x15xf32>
    %213 = tpu.matmul %5, %207, %cst_192 {dimension_numbers = #tpu.dot_dimension_numbers<[1], [0], [0], [1], [0, 0, 1, 1], [], []>} : vector<12x15xf32>, vector<15x15xf32>, vector<12x15xf32> -> vector<12x15xf32>
    %cst_193 = arith.constant dense<0.000000e+00> : vector<12x12xf32>
    %214 = tpu.matmul %213, %5, %cst_193 {dimension_numbers = #tpu.dot_dimension_numbers<[1], [1], [0], [0], [0, 0, 1, 0], [], []>} : vector<12x15xf32>, vector<12x15xf32>, vector<12x12xf32> -> vector<12x12xf32>
    %c0_194 = arith.constant 0 : index
    %c1_195 = arith.constant 1 : index
    %c2_196 = arith.constant 2 : index
    %c0_197 = arith.constant 0 : index
    %c0_198 = arith.constant 0 : index
    %215 = vector.load %arg5[%c0_194, %c1_195, %c2_196, %c0_197, %c0_198] : memref<1x3x3x12x12xf32, #tpu.memory_space<vmem>>, vector<1x1x1x12x12xf32>
    %216 = vector.shape_cast %215 : vector<1x1x1x12x12xf32> to vector<12x12xf32>
    %217 = vector.shape_cast %214 : vector<12x12xf32> to vector<1x1x1x12x12xf32>
    tpu.vector_store %arg5[%c0_194, %c1_195, %c2_196, %c0_197, %c0_198], %217 {strides = array<i32>} : memref<1x3x3x12x12xf32, #tpu.memory_space<vmem>>, vector<1x1x1x12x12xf32>,
    %cst_199 = arith.constant dense<0.000000e+00> : vector<12x15xf32>
    %218 = tpu.matmul %7, %207, %cst_199 {dimension_numbers = #tpu.dot_dimension_numbers<[1], [0], [0], [1], [0, 0, 1, 1], [], []>} : vector<12x15xf32>, vector<15x15xf32>, vector<12x15xf32> -> vector<12x15xf32>
    %cst_200 = arith.constant dense<0.000000e+00> : vector<12x12xf32>
    %219 = tpu.matmul %218, %7, %cst_200 {dimension_numbers = #tpu.dot_dimension_numbers<[1], [1], [0], [0], [0, 0, 1, 0], [], []>} : vector<12x15xf32>, vector<12x15xf32>, vector<12x12xf32> -> vector<12x12xf32>
    %c0_201 = arith.constant 0 : index
    %c2_202 = arith.constant 2 : index
    %c2_203 = arith.constant 2 : index
    %c0_204 = arith.constant 0 : index
    %c0_205 = arith.constant 0 : index
    %220 = vector.load %arg5[%c0_201, %c2_202, %c2_203, %c0_204, %c0_205] : memref<1x3x3x12x12xf32, #tpu.memory_space<vmem>>, vector<1x1x1x12x12xf32>
    %221 = vector.shape_cast %220 : vector<1x1x1x12x12xf32> to vector<12x12xf32>
    %222 = vector.shape_cast %219 : vector<12x12xf32> to vector<1x1x1x12x12xf32>
    tpu.vector_store %arg5[%c0_201, %c2_202, %c2_203, %c0_204, %c0_205], %222 {strides = array<i32>} : memref<1x3x3x12x12xf32, #tpu.memory_space<vmem>>, vector<1x1x1x12x12xf32>,
    return
  }
  func.func @transform_0(%arg0: i32) -> (i32, i32, i32) {
    %c0_i32 = arith.constant 0 : i32
    %c0_i32_0 = arith.constant 0 : i32
    %c0_i32_1 = arith.constant 0 : i32
    return %arg0, %c0_i32, %c0_i32_0 : i32, i32, i32
  }
  func.func @transform_1(%arg0: i32) -> (i32, i32) {
    %c0_i32 = arith.constant 0 : i32
    %c0_i32_0 = arith.constant 0 : i32
    %c0_i32_1 = arith.constant 0 : i32
    return %c0_i32, %c0_i32_0 : i32, i32
  }
  func.func @transform_2(%arg0: i32) -> (i32, i32) {
    %c0_i32 = arith.constant 0 : i32
    %c0_i32_0 = arith.constant 0 : i32
    %c0_i32_1 = arith.constant 0 : i32
    return %c0_i32, %c0_i32_0 : i32, i32
  }
  func.func @transform_3(%arg0: i32) -> (i32, i32, i32) {
    %c0_i32 = arith.constant 0 : i32
    %c0_i32_0 = arith.constant 0 : i32
    %c0_i32_1 = arith.constant 0 : i32
    %c0_i32_2 = arith.constant 0 : i32
    return %c0_i32, %c0_i32_0, %c0_i32_1 : i32, i32, i32
  }
  func.func @transform_4(%arg0: i32) -> (i32, i32, i32, i32, i32) {
    %c0_i32 = arith.constant 0 : i32
    %c0_i32_0 = arith.constant 0 : i32
    %c0_i32_1 = arith.constant 0 : i32
    %c0_i32_2 = arith.constant 0 : i32
    %c0_i32_3 = arith.constant 0 : i32
    return %arg0, %c0_i32, %c0_i32_0, %c0_i32_1, %c0_i32_2 : i32, i32, i32, i32, i32
  }
}

module attributes {stable_mosaic.version = 11 : i64} {
  func.func @_attention_kernel(%arg0: i32, %arg1: memref<1x3x144xf32, #tpu.memory_space<vmem>>, %arg2: memref<1x3x144xf32, #tpu.memory_space<vmem>>, %arg3: memref<1x3x144xf32, #tpu.memory_space<vmem>>, %arg4: memref<1x3x144xf32, #tpu.memory_space<vmem>>) attributes {dimension_semantics = [#tpu.dimension_semantics<parallel>], iteration_bounds = array<i64: 2>, scalar_prefetch = 0 : i64, scratch_operands = 0 : i64, tpu.core_type = #tpu.core_type<tc>, window_params = [{transform_indices = @transform_0, window_bounds = array<i64: 1, 3, 144>}, {transform_indices = @transform_1, window_bounds = array<i64: 1, 3, 144>}, {transform_indices = @transform_2, window_bounds = array<i64: 1, 3, 144>}, {transform_indices = @transform_3, window_bounds = array<i64: 1, 3, 144>}]} {
    %c0 = arith.constant 0 : index
    %c0_0 = arith.constant 0 : index
    %c0_1 = arith.constant 0 : index
    %0 = vector.load %arg1[%c0, %c0_0, %c0_1] : memref<1x3x144xf32, #tpu.memory_space<vmem>>, vector<1x3x144xf32>
    %c0_2 = arith.constant 0 : index
    %c0_3 = arith.constant 0 : index
    %c0_4 = arith.constant 0 : index
    %1 = vector.load %arg2[%c0_2, %c0_3, %c0_4] : memref<1x3x144xf32, #tpu.memory_space<vmem>>, vector<1x3x144xf32>
    %c0_5 = arith.constant 0 : index
    %c0_6 = arith.constant 0 : index
    %c0_7 = arith.constant 0 : index
    %2 = vector.load %arg3[%c0_5, %c0_6, %c0_7] : memref<1x3x144xf32, #tpu.memory_space<vmem>>, vector<1x3x144xf32>
    "tpu.trace_start"() <{level = 10 : i32, message = "bjd,bid->bji"}> : () -> ()
    %cst = arith.constant dense<0.000000e+00> : vector<1x3x3xf32>
    %3 = tpu.matmul %0, %1, %cst {dimension_numbers = #tpu.dot_dimension_numbers<[2], [2], [1], [1], [0, 0, 0, 1, 1, 1], [0], [0]>} : vector<1x3x144xf32>, vector<1x3x144xf32>, vector<1x3x3xf32> -> vector<1x3x3xf32>
    "tpu.trace_stop"() : () -> ()
    %4 = arith.mulf %0, %0 : vector<1x3x144xf32>
    %cst_8 = arith.constant dense<0.000000e+00> : vector<1x3xf32>
    %5 = vector.multi_reduction <add>, %4, %cst_8 [2] : vector<1x3x144xf32> to vector<1x3xf32>
    %6 = vector.shape_cast %5 : vector<1x3xf32> to vector<1x3x1xf32>
    %7 = arith.mulf %1, %1 : vector<1x3x144xf32>
    %cst_9 = arith.constant dense<0.000000e+00> : vector<1x3xf32>
    %8 = vector.multi_reduction <add>, %7, %cst_9 [2] : vector<1x3x144xf32> to vector<1x3xf32>
    %9 = vector.shape_cast %8 : vector<1x3xf32> to vector<1x1x3xf32>
    %10 = vector.broadcast %6 : vector<1x3x1xf32> to vector<1x3x3xf32>
    %11 = vector.broadcast %9 : vector<1x1x3xf32> to vector<1x3x3xf32>
    %12 = arith.addf %10, %11 : vector<1x3x3xf32>
    %cst_10 = arith.constant 2.000000e+00 : f32
    %13 = vector.broadcast %cst_10 : f32 to vector<1x3x3xf32>
    %14 = arith.mulf %13, %3 : vector<1x3x3xf32>
    %15 = arith.subf %12, %14 : vector<1x3x3xf32>
    %cst_11 = arith.constant 0.000000e+00 : f32
    %16 = vector.broadcast %cst_11 : f32 to vector<1x3x3xf32>
    %17 = arith.maximumf %15, %16 : vector<1x3x3xf32>
    %cst_12 = arith.constant 1.000000e+00 : f32
    %18 = vector.broadcast %cst_12 : f32 to vector<1x3x3xf32>
    %19 = arith.addf %18, %17 : vector<1x3x3xf32>
    %20 = math.log %19 : vector<1x3x3xf32>
    %cst_13 = arith.constant 1.000000e+00 : f32
    %21 = vector.broadcast %cst_13 : f32 to vector<1x3x3xf32>
    %22 = arith.addf %21, %20 : vector<1x3x3xf32>
    %cst_14 = arith.constant 1.000000e+00 : f32
    %23 = vector.broadcast %cst_14 : f32 to vector<1x3x3xf32>
    %24 = arith.divf %23, %22 : vector<1x3x3xf32>
    %25 = math.exp %24 : vector<1x3x3xf32>
    %cst_15 = arith.constant dense<0.000000e+00> : vector<1x3xf32>
    %26 = vector.multi_reduction <add>, %25, %cst_15 [2] : vector<1x3x3xf32> to vector<1x3xf32>
    %27 = vector.shape_cast %26 : vector<1x3xf32> to vector<1x3x1xf32>
    %28 = tpu.reciprocal %27 {approx = true} : vector<1x3x1xf32> -> vector<1x3x1xf32>
    %29 = vector.broadcast %28 : vector<1x3x1xf32> to vector<1x3x3xf32>
    %30 = arith.mulf %25, %29 : vector<1x3x3xf32>
    "tpu.trace_start"() <{level = 10 : i32, message = "bji,bid->bjd"}> : () -> ()
    %cst_16 = arith.constant dense<0.000000e+00> : vector<1x3x144xf32>
    %31 = tpu.matmul %30, %2, %cst_16 {dimension_numbers = #tpu.dot_dimension_numbers<[2], [1], [1], [2], [0, 0, 0, 1, 1, 2], [0], [0]>} : vector<1x3x3xf32>, vector<1x3x144xf32>, vector<1x3x144xf32> -> vector<1x3x144xf32>
    "tpu.trace_stop"() : () -> ()
    %c0_17 = arith.constant 0 : index
    %c0_18 = arith.constant 0 : index
    %c0_19 = arith.constant 0 : index
    %32 = vector.load %arg4[%c0_17, %c0_18, %c0_19] : memref<1x3x144xf32, #tpu.memory_space<vmem>>, vector<1x3x144xf32>
    tpu.vector_store %arg4[%c0_17, %c0_18, %c0_19], %31 {strides = array<i32>} : memref<1x3x144xf32, #tpu.memory_space<vmem>>, vector<1x3x144xf32>,
    return
  }
  func.func @transform_0(%arg0: i32) -> (i32, i32, i32) {
    %c0_i32 = arith.constant 0 : i32
    %c0_i32_0 = arith.constant 0 : i32
    %c0_i32_1 = arith.constant 0 : i32
    return %arg0, %c0_i32, %c0_i32_0 : i32, i32, i32
  }
  func.func @transform_1(%arg0: i32) -> (i32, i32, i32) {
    %c0_i32 = arith.constant 0 : i32
    %c0_i32_0 = arith.constant 0 : i32
    %c0_i32_1 = arith.constant 0 : i32
    return %arg0, %c0_i32, %c0_i32_0 : i32, i32, i32
  }
  func.func @transform_2(%arg0: i32) -> (i32, i32, i32) {
    %c0_i32 = arith.constant 0 : i32
    %c0_i32_0 = arith.constant 0 : i32
    %c0_i32_1 = arith.constant 0 : i32
    return %arg0, %c0_i32, %c0_i32_0 : i32, i32, i32
  }
  func.func @transform_3(%arg0: i32) -> (i32, i32, i32) {
    %c0_i32 = arith.constant 0 : i32
    %c0_i32_0 = arith.constant 0 : i32
    %c0_i32_1 = arith.constant 0 : i32
    return %arg0, %c0_i32, %c0_i32_0 : i32, i32, i32
  }
}

</mosaic_0001>

<llo_original>
// kernel: custom-call.4
$region0: #{custom-call.4}
  %s0 = inlined_call_operand.vmem [shape: f32[2,3,3,6,6], index: 0, kind: input, shape index: {}]
  %s1 = inlined_call_operand.vmem [shape: f32[2,3,3,6,6], index: 1, kind: input, shape index: {}]
  %s2 = inlined_call_operand.vmem [shape: f32[2,3,3,6,6], index: 2, kind: input, shape index: {}]
  %s3 = inlined_call_operand.vmem [shape: f32[2,3,3,6,6], index: 3, kind: input, shape index: {}]
  %s4 = inlined_call_operand.vmem [shape: f32[2,3,3,6], index: 4, kind: output, shape index: {0}]
  %s5 = inlined_call_operand.vmem [shape: f32[2,3,3,6], index: 5, kind: output, shape index: {1}]
  %s6 = inlined_call_operand.vmem [shape: f32[2,3,3,6,6], index: 6, kind: output, shape index: {2}]
  %s7 = inlined_call_operand.vmem [shape: f32[2,3,3,6,6], index: 7, kind: output, shape index: {3}]
  %s8 = inlined_call_operand.vmem [shape: f32[2,3,3,6,6], index: 8, kind: output, shape index: {4}]
  %s9 = inlined_call_operand.vmem [shape: f32[2,3,3,6,6], index: 9, kind: output, shape index: {5}]
  %10 = xla_tuple %s4, %s5, %s6, %s7, %s8, %s9
  $region1: #{custom-call.4} parent=0
    #allocation0 [shape = 'u8[8192]{0}', space=vmem, size = 0x2000, scoped, tag = 'operand span for operand 0']
    #allocation1 [shape = 'u8[8192]{0}', space=vmem, size = 0x2000, scoped, tag = 'operand span for operand 1']
    #allocation2 [shape = 'u8[8192]{0}', space=vmem, size = 0x2000, scoped, tag = 'operand span for operand 2']
    #allocation3 [shape = 'u8[8192]{0}', space=vmem, size = 0x2000, scoped, tag = 'operand span for operand 3']
    #allocation4 [shape = 'u8[4096]{0}', space=vmem, size = 0x1000, scoped, tag = 'operand span for operand 4']
    #allocation5 [shape = 'u8[4096]{0}', space=vmem, size = 0x1000, scoped, tag = 'packed  for operand 4']
    #allocation6 [shape = 'u8[4096]{0}', space=vmem, size = 0x1000, scoped, tag = 'operand span for operand 5']
    #allocation7 [shape = 'u8[4096]{0}', space=vmem, size = 0x1000, scoped, tag = 'packed  for operand 5']
    #allocation8 [shape = 'u8[8192]{0}', space=vmem, size = 0x2000, scoped, tag = 'operand span for operand 6']
    #allocation9 [shape = 'u8[8192]{0}', space=vmem, size = 0x2000, scoped, tag = 'operand span for operand 7']
    #allocation10 [shape = 'u8[8192]{0}', space=vmem, size = 0x2000, scoped, tag = 'operand span for operand 8']
    #allocation11 [shape = 'u8[8192]{0}', space=vmem, size = 0x2000, scoped, tag = 'operand span for operand 9']
    loop: start=0, step=1, limit=20
    $region2: #{custom-call.4} parent=1 // loop_pre_header
      _
    $region3: #{custom-call.4} parent=1 // loop_header
      %s12 = sphi 0, %s16
      %p13 = scmp.ge.s32.totalorder %s12, 20
      %s19 = sphi 0, %s38
      %s20 = sphi 0, %s34
      %s21 = sphi 0, %s30
      %s22 = sphi 0, %s19
      %s23 = sphi 0, %s20
      %s24 = sphi 0, %s21
      %s25 = sphi 0, %s22
      %s26 = sphi 0, %s23
      %s27 = sphi 0, %s24
      %s47 = sphi 0, %s49
      %s50 = sphi 0, %s47
      %s51 = sphi 0, %s50
      %s67 = sphi 0, %s51
      %s79 = sphi 0, %s81
      %s82 = sphi 0, %s79
      %s83 = sphi 0, %s82
      %s99 = sphi 0, %s83
    $region4: #{custom-call.4} parent=1 // loop_header_branch
      %15 = sbr.rel (%p13) target = $region8
    $region5: #{custom-call.4} parent=1 // loop_body
      %s17 = ssub.s32 %s12, 1
      %s18 = ssub.s32 %s12, 2
      %s28 = sadd.s32 1, %s21
      %p29 = scmp.ge.s32.totalorder %s28, 3
      %s30 = scalar_select %p29, 0, %s28
      %s31 = sadd.s32 1, %s20
      %s32 = scalar_select %p29, %s31, %s20
      %p33 = scmp.ge.s32.totalorder %s32, 3
      %s34 = scalar_select %p33, 0, %s32
      %s35 = sadd.s32 1, %s19
      %s36 = scalar_select %p33, %s35, %s19
      %p37 = scmp.ge.s32.totalorder %s36, 2
      %s38 = scalar_select %p37, 0, %s36
      %s39 = sshrl.u32 %s21, 3
      %s40 = sshrl.u32 %s30, 3
      %s41 = ssub.s32 %s19, %s38
      %s42 = ssub.s32 %s20, %s34
      %s43 = sor.u32 %s41, %s42
      %s44 = ssub.s32 %s39, %s40
      %s45 = sor.u32 %s43, %s44
      %p46 = scmp.eq.s32.totalorder %s45, 0
      %s48 = sadd.s32 %s47, 1
      %s49 = scalar_select %p46, %s47, %s48
      %p52 = pneg %p46
      %p53 = scmp.eq.s32.totalorder %s12, 17
      %p54 = por %p52, %p53
      %p55 = scmp.ne.s32.totalorder %s47, %s50
      %p56 = scmp.eq.s32.totalorder %s12, 0
      %p57 = por %p55, %p56
      %p58 = scmp.ne.s32.totalorder %s47, %s50
      %p59 = scmp.eq.s32.totalorder %s17, 17
      %p60 = por %p58, %p59
      %p61 = scmp.ne.s32.totalorder %s50, %s51
      %p62 = scmp.eq.s32.totalorder %s17, 0
      %p63 = por %p61, %p62
      %p64 = scmp.ne.s32.totalorder %s50, %s51
      %p65 = scmp.eq.s32.totalorder %s18, 17
      %p66 = por %p64, %p65
      %p68 = scmp.ne.s32.totalorder %s51, %s67
      %p69 = scmp.eq.s32.totalorder %s18, 0
      %p70 = por %p68, %p69
      %s71 = sshrl.u32 %s21, 3
      %s72 = sshrl.u32 %s30, 3
      %s73 = ssub.s32 %s19, %s38
      %s74 = ssub.s32 %s20, %s34
      %s75 = sor.u32 %s73, %s74
      %s76 = ssub.s32 %s71, %s72
      %s77 = sor.u32 %s75, %s76
      %p78 = scmp.eq.s32.totalorder %s77, 0
      %s80 = sadd.s32 %s79, 1
      %s81 = scalar_select %p78, %s79, %s80
      %p84 = pneg %p78
      %p85 = scmp.eq.s32.totalorder %s12, 17
      %p86 = por %p84, %p85
      %p87 = scmp.ne.s32.totalorder %s79, %s82
      %p88 = scmp.eq.s32.totalorder %s12, 0
      %p89 = por %p87, %p88
      %p90 = scmp.ne.s32.totalorder %s79, %s82
      %p91 = scmp.eq.s32.totalorder %s17, 17
      %p92 = por %p90, %p91
      %p93 = scmp.ne.s32.totalorder %s82, %s83
      %p94 = scmp.eq.s32.totalorder %s17, 0
      %p95 = por %p93, %p94
      %p96 = scmp.ne.s32.totalorder %s82, %s83
      %p97 = scmp.eq.s32.totalorder %s18, 17
      %p98 = por %p96, %p97
      %p100 = scmp.ne.s32.totalorder %s83, %s99
      %p101 = scmp.eq.s32.totalorder %s18, 0
      %p102 = por %p100, %p101
      %p103 = scmp.le.s32.totalorder 1, %s12
      %p104 = scmp.lt.s32.totalorder %s12, 19
      %p105 = pnand %p103, %p104
      %p106 = pneg %p105
      // Predicated region
      $region9: #{custom-call.4} parent=5 // pred_check
        _
      $region10: #{custom-call.4} parent=5 // pred_check_branch
        %108 = sbr.rel (%p105) target = $region12
      $region11: #{custom-call.4} parent=5 // pred_region
        %s109 = ssub.s32 %s12, 1
      $region12: #{custom-call.4} parent=5 // pred_fallthru
        _
      %p110 = scmp.lt.s32.totalorder %s12, 18
      // Predicated region
      $region13: #{custom-call.4} parent=5 // pred_check
        %p111 = pneg %p110
      $region14: #{custom-call.4} parent=5 // pred_check_branch
        %113 = sbr.rel (%p111) target = $region16
      $region15: #{custom-call.4} parent=5 // pred_region
        %s114 = sand.u32 %s12, 1
        %s115 = sand.u32 %s12, 1
        %s116 = smul.addr %s115, 8
        %s117 = scalar_lea.vmem [#allocation0], %s116
        %s118 = smul.addr %s20, 3
        %s119 = sadd.s32 %s21, %s118
        %s120 = smul.addr %s19, 9
        %s121 = sadd.s32 %s119, %s120
        %s122 = smul.addr %s121, 8
        %s123 = scalar_lea.vmem %s0, %s122
        // Predicated region
        $region17: #{custom-call.4} parent=15 // pred_check
          _
        $region18: #{custom-call.4} parent=15 // pred_check_branch
          %125 = sbr.rel (0) target = $region20
        $region19: #{custom-call.4} parent=15 // pred_region
          // Predicated region
          $region21: #{custom-call.4} parent=19 // pred_check
            _
          $region22: #{custom-call.4} parent=19 // pred_check_branch
            %127 = sbr.rel (0) target = $region24
          $region23: #{custom-call.4} parent=19 // pred_region
            // Predicated region
            $region36: #{custom-call.4} parent=23 // pred_check
              _
            $region37: #{custom-call.4} parent=23 // pred_check_branch
              %143 = sbr.rel (0) target = $region39
            $region38: #{custom-call.4} parent=23 // pred_region
              loop: start=0, step=1, limit=1
              $region40: #{custom-call.4} parent=38 // loop_pre_header
                _
              $region41: #{custom-call.4} parent=38 // loop_header
                %s145 = sphi 0, %s149
                %p146 = scmp.ge.s32.totalorder %s145, 1
                %s150 = sphi %s123, %s123
                %s151 = sphi %s117, %s117
              $region42: #{custom-call.4} parent=38 // loop_header_branch
                %148 = sbr.rel (%p146) target = $region46
              $region43: #{custom-call.4} parent=38 // loop_body
                %v152 = vld [vmem:[%s150] sm:$0xff]
                %153 = vst [vmem:[%s151] sm:$0xff] %v152
              $region44: #{custom-call.4} parent=38 // loop_footer
                %s149 = sadd.s32 1, %s145
              $region45: #{custom-call.4} parent=38 // loop_footer_branch
                %144 = sbr.rel target = $region41
              $region46: #{custom-call.4} parent=38 // loop_exit
                _
            $region39: #{custom-call.4} parent=23 // pred_fallthru
              _
            // Predicated region
            $region47: #{custom-call.4} parent=23 // pred_check
              _
            $region48: #{custom-call.4} parent=23 // pred_check_branch
              %155 = sbr.rel target = $region50
            $region49: #{custom-call.4} parent=23 // pred_region
              _
            $region50: #{custom-call.4} parent=23 // pred_fallthru
              _
          $region24: #{custom-call.4} parent=19 // pred_fallthru
            _
          // Predicated region
          $region25: #{custom-call.4} parent=19 // pred_check
            _
          $region26: #{custom-call.4} parent=19 // pred_check_branch
            %129 = sbr.rel target = $region28
          $region27: #{custom-call.4} parent=19 // pred_region
            %s131 = ssub.s32 256, 1
            loop: start=0, step=1, limit=1
            $region29: #{custom-call.4} parent=27 // loop_pre_header
              _
            $region30: #{custom-call.4} parent=27 // loop_header
              %s133 = sphi 0, %s137
              %p134 = scmp.ge.s32.totalorder %s133, 1
              %s138 = sphi %s123, %s123
              %s139 = sphi %s117, %s117
            $region31: #{custom-call.4} parent=27 // loop_header_branch
              %136 = sbr.rel (%p134) target = $region35
            $region32: #{custom-call.4} parent=27 // loop_body
              %v140 = vld [vmem:[%s138] sm:%s131]
              %141 = vst [vmem:[%s139] sm:%s131] %v140
            $region33: #{custom-call.4} parent=27 // loop_footer
              %s137 = sadd.s32 1, %s133
            $region34: #{custom-call.4} parent=27 // loop_footer_branch
              %132 = sbr.rel target = $region30
            $region35: #{custom-call.4} parent=27 // loop_exit
              _
          $region28: #{custom-call.4} parent=19 // pred_fallthru
            _
        $region20: #{custom-call.4} parent=15 // pred_fallthru
          _
        %156 = vnop
        %s157 = sand.u32 %s12, 1
        %s158 = sand.u32 %s12, 1
        %s159 = smul.addr %s158, 8
        %s160 = scalar_lea.vmem [#allocation1], %s159
        %s161 = smul.addr %s20, 3
        %s162 = sadd.s32 %s21, %s161
        %s163 = smul.addr %s19, 9
        %s164 = sadd.s32 %s162, %s163
        %s165 = smul.addr %s164, 8
        %s166 = scalar_lea.vmem %s1, %s165
        // Predicated region
        $region51: #{custom-call.4} parent=15 // pred_check
          _
        $region52: #{custom-call.4} parent=15 // pred_check_branch
          %168 = sbr.rel (0) target = $region54
        $region53: #{custom-call.4} parent=15 // pred_region
          // Predicated region
          $region55: #{custom-call.4} parent=53 // pred_check
            _
          $region56: #{custom-call.4} parent=53 // pred_check_branch
            %170 = sbr.rel (0) target = $region58
          $region57: #{custom-call.4} parent=53 // pred_region
            // Predicated region
            $region70: #{custom-call.4} parent=57 // pred_check
              _
            $region71: #{custom-call.4} parent=57 // pred_check_branch
              %186 = sbr.rel (0) target = $region73
            $region72: #{custom-call.4} parent=57 // pred_region
              loop: start=0, step=1, limit=1
              $region74: #{custom-call.4} parent=72 // loop_pre_header
                _
              $region75: #{custom-call.4} parent=72 // loop_header
                %s188 = sphi 0, %s192
                %p189 = scmp.ge.s32.totalorder %s188, 1
                %s193 = sphi %s166, %s166
                %s194 = sphi %s160, %s160
              $region76: #{custom-call.4} parent=72 // loop_header_branch
                %191 = sbr.rel (%p189) target = $region80
              $region77: #{custom-call.4} parent=72 // loop_body
                %v195 = vld [vmem:[%s193] sm:$0xff]
                %196 = vst [vmem:[%s194] sm:$0xff] %v195
              $region78: #{custom-call.4} parent=72 // loop_footer
                %s192 = sadd.s32 1, %s188
              $region79: #{custom-call.4} parent=72 // loop_footer_branch
                %187 = sbr.rel target = $region75
              $region80: #{custom-call.4} parent=72 // loop_exit
                _
            $region73: #{custom-call.4} parent=57 // pred_fallthru
              _
            // Predicated region
            $region81: #{custom-call.4} parent=57 // pred_check
              _
            $region82: #{custom-call.4} parent=57 // pred_check_branch
              %198 = sbr.rel target = $region84
            $region83: #{custom-call.4} parent=57 // pred_region
              _
            $region84: #{custom-call.4} parent=57 // pred_fallthru
              _
          $region58: #{custom-call.4} parent=53 // pred_fallthru
            _
          // Predicated region
          $region59: #{custom-call.4} parent=53 // pred_check
            _
          $region60: #{custom-call.4} parent=53 // pred_check_branch
            %172 = sbr.rel target = $region62
          $region61: #{custom-call.4} parent=53 // pred_region
            %s174 = ssub.s32 256, 1
            loop: start=0, step=1, limit=1
            $region63: #{custom-call.4} parent=61 // loop_pre_header
              _
            $region64: #{custom-call.4} parent=61 // loop_header
              %s176 = sphi 0, %s180
              %p177 = scmp.ge.s32.totalorder %s176, 1
              %s181 = sphi %s166, %s166
              %s182 = sphi %s160, %s160
            $region65: #{custom-call.4} parent=61 // loop_header_branch
              %179 = sbr.rel (%p177) target = $region69
            $region66: #{custom-call.4} parent=61 // loop_body
              %v183 = vld [vmem:[%s181] sm:%s174]
              %184 = vst [vmem:[%s182] sm:%s174] %v183
            $region67: #{custom-call.4} parent=61 // loop_footer
              %s180 = sadd.s32 1, %s176
            $region68: #{custom-call.4} parent=61 // loop_footer_branch
              %175 = sbr.rel target = $region64
            $region69: #{custom-call.4} parent=61 // loop_exit
              _
          $region62: #{custom-call.4} parent=53 // pred_fallthru
            _
        $region54: #{custom-call.4} parent=15 // pred_fallthru
          _
        %199 = vnop
        %s200 = sand.u32 %s12, 1
        %s201 = sand.u32 %s12, 1
        %s202 = smul.addr %s201, 8
        %s203 = scalar_lea.vmem [#allocation2], %s202
        %s204 = smul.addr %s20, 3
        %s205 = sadd.s32 %s21, %s204
        %s206 = smul.addr %s19, 9
        %s207 = sadd.s32 %s205, %s206
        %s208 = smul.addr %s207, 8
        %s209 = scalar_lea.vmem %s2, %s208
        // Predicated region
        $region85: #{custom-call.4} parent=15 // pred_check
          _
        $region86: #{custom-call.4} parent=15 // pred_check_branch
          %211 = sbr.rel (0) target = $region88
        $region87: #{custom-call.4} parent=15 // pred_region
          // Predicated region
          $region89: #{custom-call.4} parent=87 // pred_check
            _
          $region90: #{custom-call.4} parent=87 // pred_check_branch
            %213 = sbr.rel (0) target = $region92
          $region91: #{custom-call.4} parent=87 // pred_region
            // Predicated region
            $region104: #{custom-call.4} parent=91 // pred_check
              _
            $region105: #{custom-call.4} parent=91 // pred_check_branch
              %229 = sbr.rel (0) target = $region107
            $region106: #{custom-call.4} parent=91 // pred_region
              loop: start=0, step=1, limit=1
              $region108: #{custom-call.4} parent=106 // loop_pre_header
                _
              $region109: #{custom-call.4} parent=106 // loop_header
                %s231 = sphi 0, %s235
                %p232 = scmp.ge.s32.totalorder %s231, 1
                %s236 = sphi %s209, %s209
                %s237 = sphi %s203, %s203
              $region110: #{custom-call.4} parent=106 // loop_header_branch
                %234 = sbr.rel (%p232) target = $region114
              $region111: #{custom-call.4} parent=106 // loop_body
                %v238 = vld [vmem:[%s236] sm:$0xff]
                %239 = vst [vmem:[%s237] sm:$0xff] %v238
              $region112: #{custom-call.4} parent=106 // loop_footer
                %s235 = sadd.s32 1, %s231
              $region113: #{custom-call.4} parent=106 // loop_footer_branch
                %230 = sbr.rel target = $region109
              $region114: #{custom-call.4} parent=106 // loop_exit
                _
            $region107: #{custom-call.4} parent=91 // pred_fallthru
              _
            // Predicated region
            $region115: #{custom-call.4} parent=91 // pred_check
              _
            $region116: #{custom-call.4} parent=91 // pred_check_branch
              %241 = sbr.rel target = $region118
            $region117: #{custom-call.4} parent=91 // pred_region
              _
            $region118: #{custom-call.4} parent=91 // pred_fallthru
              _
          $region92: #{custom-call.4} parent=87 // pred_fallthru
            _
          // Predicated region
          $region93: #{custom-call.4} parent=87 // pred_check
            _
          $region94: #{custom-call.4} parent=87 // pred_check_branch
            %215 = sbr.rel target = $region96
          $region95: #{custom-call.4} parent=87 // pred_region
            %s217 = ssub.s32 256, 1
            loop: start=0, step=1, limit=1
            $region97: #{custom-call.4} parent=95 // loop_pre_header
              _
            $region98: #{custom-call.4} parent=95 // loop_header
              %s219 = sphi 0, %s223
              %p220 = scmp.ge.s32.totalorder %s219, 1
              %s224 = sphi %s209, %s209
              %s225 = sphi %s203, %s203
            $region99: #{custom-call.4} parent=95 // loop_header_branch
              %222 = sbr.rel (%p220) target = $region103
            $region100: #{custom-call.4} parent=95 // loop_body
              %v226 = vld [vmem:[%s224] sm:%s217]
              %227 = vst [vmem:[%s225] sm:%s217] %v226
            $region101: #{custom-call.4} parent=95 // loop_footer
              %s223 = sadd.s32 1, %s219
            $region102: #{custom-call.4} parent=95 // loop_footer_branch
              %218 = sbr.rel target = $region98
            $region103: #{custom-call.4} parent=95 // loop_exit
              _
          $region96: #{custom-call.4} parent=87 // pred_fallthru
            _
        $region88: #{custom-call.4} parent=15 // pred_fallthru
          _
        %242 = vnop
        %s243 = sand.u32 %s12, 1
        %s244 = sand.u32 %s12, 1
        %s245 = smul.addr %s244, 8
        %s246 = scalar_lea.vmem [#allocation3], %s245
        %s247 = smul.addr %s20, 3
        %s248 = sadd.s32 %s21, %s247
        %s249 = smul.addr %s19, 9
        %s250 = sadd.s32 %s248, %s249
        %s251 = smul.addr %s250, 8
        %s252 = scalar_lea.vmem %s3, %s251
        // Predicated region
        $region119: #{custom-call.4} parent=15 // pred_check
          _
        $region120: #{custom-call.4} parent=15 // pred_check_branch
          %254 = sbr.rel (0) target = $region122
        $region121: #{custom-call.4} parent=15 // pred_region
          // Predicated region
          $region123: #{custom-call.4} parent=121 // pred_check
            _
          $region124: #{custom-call.4} parent=121 // pred_check_branch
            %256 = sbr.rel (0) target = $region126
          $region125: #{custom-call.4} parent=121 // pred_region
            // Predicated region
            $region138: #{custom-call.4} parent=125 // pred_check
              _
            $region139: #{custom-call.4} parent=125 // pred_check_branch
              %272 = sbr.rel (0) target = $region141
            $region140: #{custom-call.4} parent=125 // pred_region
              loop: start=0, step=1, limit=1
              $region142: #{custom-call.4} parent=140 // loop_pre_header
                _
              $region143: #{custom-call.4} parent=140 // loop_header
                %s274 = sphi 0, %s278
                %p275 = scmp.ge.s32.totalorder %s274, 1
                %s279 = sphi %s252, %s252
                %s280 = sphi %s246, %s246
              $region144: #{custom-call.4} parent=140 // loop_header_branch
                %277 = sbr.rel (%p275) target = $region148
              $region145: #{custom-call.4} parent=140 // loop_body
                %v281 = vld [vmem:[%s279] sm:$0xff]
                %282 = vst [vmem:[%s280] sm:$0xff] %v281
              $region146: #{custom-call.4} parent=140 // loop_footer
                %s278 = sadd.s32 1, %s274
              $region147: #{custom-call.4} parent=140 // loop_footer_branch
                %273 = sbr.rel target = $region143
              $region148: #{custom-call.4} parent=140 // loop_exit
                _
            $region141: #{custom-call.4} parent=125 // pred_fallthru
              _
            // Predicated region
            $region149: #{custom-call.4} parent=125 // pred_check
              _
            $region150: #{custom-call.4} parent=125 // pred_check_branch
              %284 = sbr.rel target = $region152
            $region151: #{custom-call.4} parent=125 // pred_region
              _
            $region152: #{custom-call.4} parent=125 // pred_fallthru
              _
          $region126: #{custom-call.4} parent=121 // pred_fallthru
            _
          // Predicated region
          $region127: #{custom-call.4} parent=121 // pred_check
            _
          $region128: #{custom-call.4} parent=121 // pred_check_branch
            %258 = sbr.rel target = $region130
          $region129: #{custom-call.4} parent=121 // pred_region
            %s260 = ssub.s32 256, 1
            loop: start=0, step=1, limit=1
            $region131: #{custom-call.4} parent=129 // loop_pre_header
              _
            $region132: #{custom-call.4} parent=129 // loop_header
              %s262 = sphi 0, %s266
              %p263 = scmp.ge.s32.totalorder %s262, 1
              %s267 = sphi %s252, %s252
              %s268 = sphi %s246, %s246
            $region133: #{custom-call.4} parent=129 // loop_header_branch
              %265 = sbr.rel (%p263) target = $region137
            $region134: #{custom-call.4} parent=129 // loop_body
              %v269 = vld [vmem:[%s267] sm:%s260]
              %270 = vst [vmem:[%s268] sm:%s260] %v269
            $region135: #{custom-call.4} parent=129 // loop_footer
              %s266 = sadd.s32 1, %s262
            $region136: #{custom-call.4} parent=129 // loop_footer_branch
              %261 = sbr.rel target = $region132
            $region137: #{custom-call.4} parent=129 // loop_exit
              _
          $region130: #{custom-call.4} parent=121 // pred_fallthru
            _
        $region122: #{custom-call.4} parent=15 // pred_fallthru
          _
        %285 = vnop
      $region16: #{custom-call.4} parent=5 // pred_fallthru
        _
      %p286 = scmp.le.s32.totalorder 1, %s12
      %p287 = scmp.lt.s32.totalorder %s12, 19
      %p288 = pnand %p286, %p287
      %p289 = pneg %p288
      // Predicated region
      $region153: #{custom-call.4} parent=5 // pred_check
        _
      $region154: #{custom-call.4} parent=5 // pred_check_branch
        %291 = sbr.rel (%p288) target = $region156
      $region155: #{custom-call.4} parent=5 // pred_region
        #allocation12 [shape = 'f32[6,6]{1,0}', space=vmem, size = 0x1000, scoped, tag = 'a top-left matrix']
        #allocation13 [shape = 'f32[6,6]{1,0}', space=vmem, size = 0x1000, scoped, tag = 'a top-right matrix']
        #allocation14 [shape = 'f32[6,6]{1,0}', space=vmem, size = 0x1000, scoped, tag = 'a bottom-left matrix']
        #allocation15 [shape = 'f32[6,6]{1,0}', space=vmem, size = 0x1000, scoped, tag = 'a bottom-right matrix']
        %s292 = ssub.s32 %s12, 1
        %s293 = sand.u32 %s17, 1
        %s294 = sand.u32 %s17, 1
        %s295 = smul.addr %s294, 8
        %s296 = scalar_lea.vmem [#allocation0], %s295
        %s297 = sand.u32 %s17, 1
        %s298 = sand.u32 %s17, 1
        %s299 = smul.addr %s298, 8
        %s300 = scalar_lea.vmem [#allocation1], %s299
        %s301 = sand.u32 %s17, 1
        %s302 = sand.u32 %s17, 1
        %s303 = smul.addr %s302, 8
        %s304 = scalar_lea.vmem [#allocation2], %s303
        %s305 = sand.u32 %s17, 1
        %s306 = sand.u32 %s17, 1
        %s307 = smul.addr %s306, 8
        %s308 = scalar_lea.vmem [#allocation3], %s307
        %s309 = sand.u32 %s17, 1
        %s310 = sand.u32 %s17, 1
        %s311 = smul.addr %s310, 8
        %s312 = scalar_lea.vmem [#allocation0], %s311
        %s313 = sand.u32 %s17, 1
        %s314 = sand.u32 %s17, 1
        %s315 = smul.addr %s314, 8
        %s316 = scalar_lea.vmem [#allocation1], %s315
        %s317 = sand.u32 %s17, 1
        %s318 = sand.u32 %s17, 1
        %s319 = smul.addr %s318, 8
        %s320 = scalar_lea.vmem [#allocation2], %s319
        %s321 = sand.u32 %s17, 1
        %s322 = sand.u32 %s17, 1
        %s323 = smul.addr %s322, 8
        %s324 = scalar_lea.vmem [#allocation3], %s323
        %p325 = pneg %p63
        %p326 = pneg %p60
        %s327 = sand.u32 %s50, 1
        %s328 = sand.u32 %s50, 1
        %s329 = smul.addr %s328, 4
        %s330 = scalar_lea.vmem [#allocation5], %s329
        %p331 = pneg %p95
        %p332 = pneg %p92
        %s333 = sand.u32 %s82, 1
        %s334 = sand.u32 %s82, 1
        %s335 = smul.addr %s334, 4
        %s336 = scalar_lea.vmem [#allocation7], %s335
        %s337 = sand.u32 %s17, 1
        %s338 = sand.u32 %s17, 1
        %s339 = smul.addr %s338, 8
        %s340 = scalar_lea.vmem [#allocation8], %s339
        %s341 = sand.u32 %s17, 1
        %s342 = sand.u32 %s17, 1
        %s343 = smul.addr %s342, 8
        %s344 = scalar_lea.vmem [#allocation9], %s343
        %s345 = sand.u32 %s17, 1
        %s346 = sand.u32 %s17, 1
        %s347 = smul.addr %s346, 8
        %s348 = scalar_lea.vmem [#allocation10], %s347
        %s349 = sand.u32 %s17, 1
        %s350 = sand.u32 %s17, 1
        %s351 = smul.addr %s350, 8
        %s352 = scalar_lea.vmem [#allocation11], %s351
        %s353 = sshrl.u32 %s24, 3
        %s354 = sshrl.u32 %s24, 3
        %s355 = smov [#allocation12]
        %v356 = vld [vmem:[%s296] sm:$0xff]
        %357 = vst [vmem:[%s355] sm:$0xff] %v356
        %s358 = smov [#allocation13]
        %v359 = vld [vmem:[%s300] sm:$0xff]
        %360 = vst [vmem:[%s358] sm:$0xff] %v359
        %s361 = smov [#allocation14]
        %v362 = vld [vmem:[%s304] sm:$0xff]
        %363 = vst [vmem:[%s361] sm:$0xff] %v362
        %s364 = smov [#allocation15]
        %v365 = vld [vmem:[%s308] sm:$0xff]
        %366 = vst [vmem:[%s364] sm:$0xff] %v365
        %367 = vst [vmem:[%s340] sm:$0xff] 0.0
        %368 = vst [vmem:[%s344] sm:$0xff] 0.0
        %369 = vst [vmem:[%s348] sm:$0xff] 0.0
        %370 = vst [vmem:[%s352] sm:$0xff] 0.0
        %s371 = smov %s340
        %v372 = vlaneseq
        %v373 = vand.u32 %v372, 127
        %v374 = vmov %v373
        %v375 = vlaneseq
        %v376 = vshrl.u32 %v375, 7
        %v377 = vmov %v376
        %v378 = vld [vmem:[%s371] sm:$0x3f]
        %vm381 = vcmp.eq.s32.totalorder %v377, %v374
        %v382 = vsel %vm381, 1.0, %v378
        %383 = vst [vmem:[%s371] sm:$0x3f] %v382
        %s384 = smov %s352
        %v385 = vlaneseq
        %v386 = vand.u32 %v385, 127
        %v387 = vmov %v386
        %v388 = vlaneseq
        %v389 = vshrl.u32 %v388, 7
        %v390 = vmov %v389
        %v391 = vld [vmem:[%s384] sm:$0x3f]
        %vm394 = vcmp.eq.s32.totalorder %v390, %v387
        %v395 = vsel %vm394, 1.0, %v391
        %396 = vst [vmem:[%s384] sm:$0x3f] %v395
        // While loop
        $region157: #{custom-call.4} parent=155 // loop_pre_header
          _
        $region158: #{custom-call.4} parent=155 // loop_header
          %s398 = sphi 0, %s980
          %v399 = vlaneseq
          %v400 = vand.u32 %v399, 127
          %v401 = vmov %v400
          %v402 = vlaneseq
          %v403 = vshrl.u32 %v402, 7
          %v404 = vmov %v403
          %s405 = smov [#allocation12]
          %v406 = vlaneseq
          %v407 = vand.u32 %v406, 127
          %vm408 = vcmp.ge.s32.totalorder %v407, 0
          %vm409 = vcmp.lt.s32.totalorder %v407, 6
          %vm410 = vmand %vm408, %vm409
          %v411 = vld [vmem:[%s405] sm:$0x3f]
          %v412 = vsel %vm410, %v411, 0.0
          %v413 = vmul.f32 %v412, %v412
          %vm416 = vcmp.eq.s32.totalorder %v404, %v401
          %v417 = vsel %vm416, 0.0, %v413
          %v418 = vlaneseq
          %v419 = vand.u32 %v418, 127
          %v420 = vmov %v419
          %v421 = vlaneseq
          %v422 = vshrl.u32 %v421, 7
          %v423 = vmov %v422
          %s424 = smov [#allocation13]
          %v425 = vlaneseq
          %v426 = vand.u32 %v425, 127
          %vm427 = vcmp.ge.s32.totalorder %v426, 0
          %vm428 = vcmp.lt.s32.totalorder %v426, 6
          %vm429 = vmand %vm427, %vm428
          %v430 = vld [vmem:[%s424] sm:$0x3f]
          %v431 = vsel %vm429, %v430, 0.0
          %v432 = vmul.f32 %v431, %v431
          %v433 = vadd.f32 %v417, %v432
          %v434 = vadd.f32 %v413, %v432
          %v435 = vlaneseq
          %v436 = vand.u32 %v435, 127
          %v437 = vmov %v436
          %v438 = vlaneseq
          %v439 = vshrl.u32 %v438, 7
          %v440 = vmov %v439
          %s441 = smov [#allocation14]
          %v442 = vlaneseq
          %v443 = vand.u32 %v442, 127
          %vm444 = vcmp.ge.s32.totalorder %v443, 0
          %vm445 = vcmp.lt.s32.totalorder %v443, 6
          %vm446 = vmand %vm444, %vm445
          %v447 = vld [vmem:[%s441] sm:$0x3f]
          %v448 = vsel %vm446, %v447, 0.0
          %v449 = vmul.f32 %v448, %v448
          %v450 = vadd.f32 %v433, %v449
          %v451 = vadd.f32 %v434, %v449
          %v452 = vlaneseq
          %v453 = vand.u32 %v452, 127
          %v454 = vmov %v453
          %v455 = vlaneseq
          %v456 = vshrl.u32 %v455, 7
          %v457 = vmov %v456
          %s458 = smov [#allocation15]
          %v459 = vlaneseq
          %v460 = vand.u32 %v459, 127
          %vm461 = vcmp.ge.s32.totalorder %v460, 0
          %vm462 = vcmp.lt.s32.totalorder %v460, 6
          %vm463 = vmand %vm461, %vm462
          %v464 = vld [vmem:[%s458] sm:$0x3f]
          %v465 = vsel %vm463, %v464, 0.0
          %v466 = vmul.f32 %v465, %v465
          %vm469 = vcmp.eq.s32.totalorder %v457, %v454
          %v470 = vsel %vm469, 0.0, %v466
          %v471 = vadd.f32 %v450, %v470
          %v472 = vadd.f32 %v451, %v466
          %473 = vadd.xlane.f32.xlu0 %v472
          %v474 = vpop.xlane.xlu0 %473
          %v475 = vrot.slane %v474, 4
          %v476 = vadd.f32 %v474, %v475
          %v477 = vrot.slane %v476, 2
          %v478 = vadd.f32 %v476, %v477
          %v479 = vrot.slane %v478, 1
          %v480 = vadd.f32 %v478, %v479
          %481 = vadd.xlane.f32.xlu0 %v471
          %v482 = vpop.xlane.xlu0 %481
          %v483 = vrot.slane %v482, 4
          %v484 = vadd.f32 %v482, %v483
          %v485 = vrot.slane %v484, 2
          %v486 = vadd.f32 %v484, %v485
          %v487 = vrot.slane %v486, 1
          %v488 = vadd.f32 %v486, %v487
          %s489 = vtos %v488
          %s490 = vtos %v480
          %s491 = smul.f32 1e-10, %s490
          %p492 = scmp.le.f32.partialorder %s489, %s491
          %p493 = scmp.ge.s32.totalorder %s398, 15
          %p494 = por %p492, %p493
        $region159: #{custom-call.4} parent=155 // loop_header_branch
          %982 = sbr.rel (%p494) target = $region163
        $region160: #{custom-call.4} parent=155 // loop_body
          loop: start=0, step=1, limit=11
          $region164: #{custom-call.4} parent=160 // loop_pre_header
            _
          $region165: #{custom-call.4} parent=160 // loop_header
            %s496 = sphi 0, %s500
            %p497 = scmp.ge.s32.totalorder %s496, 11
          $region166: #{custom-call.4} parent=160 // loop_header_branch
            %499 = sbr.rel (%p497) target = $region170
          $region167: #{custom-call.4} parent=160 // loop_body
            #allocation16 [shape = 'f32[1024]{0}', space=vmem, size = 0x1000, scoped, tag = 'a_tl_diag vmem']
            #allocation17 [shape = 'f32[1024]{0}', space=vmem, size = 0x1000, scoped, tag = 'a_tr_diag vmem']
            #allocation18 [shape = 'f32[1024]{0}', space=vmem, size = 0x1000, scoped, tag = 'a_br_diag vmem']
            #allocation19 [shape = 'f32[1024]{0}', space=vmem, size = 0x1000, scoped, tag = 'rt1 vmem']
            #allocation20 [shape = 'f32[1024]{0}', space=vmem, size = 0x1000, scoped, tag = 'rt2 vmem']
            #allocation21 [shape = 'f32[1024]{0}', space=vmem, size = 0x1000, scoped, tag = 'c vmem']
            #allocation22 [shape = 'f32[1024]{0}', space=vmem, size = 0x1000, scoped, tag = 's vmem']
            #allocation23 [shape = 'f32[4096]{0}', space=vmem, size = 0x4000, scoped, tag = 'c broadcast']
            #allocation24 [shape = 'f32[4096]{0}', space=vmem, size = 0x4000, scoped, tag = 's broadcast']
            %s501 = smov [#allocation12]
            %s502 = smov [#allocation16]
            %v503 = vlaneseq
            %v504 = vand.u32 %v503, 127
            %v505 = vmov %v504
            %v506 = vlaneseq
            %v507 = vshrl.u32 %v506, 7
            %v508 = vmov %v507
            %v509 = vld [vmem:[%s501] sm:$0x3f]
            %vm512 = vcmp.eq.s32.totalorder %v508, %v505
            %v513 = vsel %vm512, %v509, 0.0
            %v514 = vrot.slane %v513, 4
            %v515 = vadd.f32 %v513, %v514
            %v516 = vrot.slane %v515, 2
            %v517 = vadd.f32 %v515, %v516
            %v518 = vrot.slane %v517, 1
            %v519 = vadd.f32 %v517, %v518
            %520 = vst [vmem:[%s502] sm:$0x1] %v519
            %s521 = smov [#allocation13]
            %s522 = smov [#allocation17]
            %v523 = vlaneseq
            %v524 = vand.u32 %v523, 127
            %v525 = vmov %v524
            %v526 = vlaneseq
            %v527 = vshrl.u32 %v526, 7
            %v528 = vmov %v527
            %v529 = vld [vmem:[%s521] sm:$0x3f]
            %vm532 = vcmp.eq.s32.totalorder %v528, %v525
            %v533 = vsel %vm532, %v529, 0.0
            %v534 = vrot.slane %v533, 4
            %v535 = vadd.f32 %v533, %v534
            %v536 = vrot.slane %v535, 2
            %v537 = vadd.f32 %v535, %v536
            %v538 = vrot.slane %v537, 1
            %v539 = vadd.f32 %v537, %v538
            %540 = vst [vmem:[%s522] sm:$0x1] %v539
            %s541 = smov [#allocation15]
            %s542 = smov [#allocation18]
            %v543 = vlaneseq
            %v544 = vand.u32 %v543, 127
            %v545 = vmov %v544
            %v546 = vlaneseq
            %v547 = vshrl.u32 %v546, 7
            %v548 = vmov %v547
            %v549 = vld [vmem:[%s541] sm:$0x3f]
            %vm552 = vcmp.eq.s32.totalorder %v548, %v545
            %v553 = vsel %vm552, %v549, 0.0
            %v554 = vrot.slane %v553, 4
            %v555 = vadd.f32 %v553, %v554
            %v556 = vrot.slane %v555, 2
            %v557 = vadd.f32 %v555, %v556
            %v558 = vrot.slane %v557, 1
            %v559 = vadd.f32 %v557, %v558
            %560 = vst [vmem:[%s542] sm:$0x1] %v559
            %s561 = smov [#allocation21]
            %s562 = smov [#allocation22]
            %s563 = smov [#allocation16]
            %v564 = vld [vmem:[%s563] sm:$0xff]
            %s565 = smov [#allocation17]
            %v566 = vld [vmem:[%s565] sm:$0xff]
            %s567 = smov [#allocation18]
            %v568 = vld [vmem:[%s567] sm:$0xff]
            %v569 = vsub.f32 %v568, %v564
            %v570 = vmul.f32 2.0, %v566
            %v571 = vrcp.pop %v570
            %v572 = vmul.f32 %v570, %v571
            %v573 = vsub.f32 1.0, %v572
            %v574 = vmul.f32 %v571, %v573
            %v575 = vadd.f32 %v571, %v574
            %vm576 = vweird.f32 %v570
            %vm577 = vweird.f32 %v571
            %vm578 = vmor %vm576, %vm577
            %v579 = vsel %vm578, %v571, %v575
            %v580 = vand.u32 2147483647, %v570
            %vm581 = vcmp.eq.f32.partialorder %v580, 8.507059e+37
            %v582 = vand.u32 %v570, 2147483648
            %v583 = vor.u32 1.1754944e-38, %v582
            %v584 = vsel %vm581, %v583, %v579
            %v585 = vmul.f32 %v569, %v584
            %vm586 = vcmp.ge.f32.partialorder %v585, 0.0
            %v587 = vmul.f32 %v585, %v585
            %v588 = vadd.f32 1.0, %v587
            %v589 = vrsqrt.pop %v588
            %v590 = vmul.f32 %v589, %v588
            %v591 = vmul.f32 %v590, %v589
            %v592 = vmul.f32 0.5, %v591
            %v593 = vsub.f32 1.5, %v592
            %v594 = vmul.f32 %v589, %v593
            %v595 = vmul.f32 %v588, %v594
            %vm596 = vcmp.eq.f32.partialorder %v588, inf
            %v597 = vsel %vm596, %v588, %v595
            %vm598 = vcmp.eq.f32.partialorder %v588, 0.0
            %v599 = vand.u32 %v588, 2147483648
            %v600 = vsel %vm598, %v599, %v597
            %v601 = vxor.u32 %v600, 2147483648
            %v602 = vsel %vm586, %v600, %v601
            %v603 = vadd.f32 %v585, %v602
            %v604 = vrcp.pop %v603
            %v605 = vmul.f32 %v603, %v604
            %v606 = vsub.f32 1.0, %v605
            %v607 = vmul.f32 %v604, %v606
            %v608 = vadd.f32 %v604, %v607
            %vm609 = vweird.f32 %v603
            %vm610 = vweird.f32 %v604
            %vm611 = vmor %vm609, %vm610
            %v612 = vsel %vm611, %v604, %v608
            %v613 = vand.u32 2147483647, %v603
            %vm614 = vcmp.eq.f32.partialorder %v613, 8.507059e+37
            %v615 = vand.u32 %v603, 2147483648
            %v616 = vor.u32 1.1754944e-38, %v615
            %v617 = vsel %vm614, %v616, %v612
            %v618 = vand.u32 2147483647, %v564
            %v619 = vand.u32 2147483647, %v566
            %v620 = vand.u32 2147483647, %v568
            %v621 = vmin.f32 %v618, %v620
            %v622 = vmul.f32 1.1920929e-08, %v621
            %vm623 = vcmp.le.f32.partialorder %v619, %v622
            %v624 = vsel %vm623, 0.0, %v617
            %v625 = vmul.f32 %v624, %v624
            %v626 = vadd.f32 1.0, %v625
            %v627 = vrsqrt.pop %v626
            %v628 = vmul.f32 %v627, %v626
            %v629 = vmul.f32 %v628, %v627
            %v630 = vmul.f32 0.5, %v629
            %v631 = vsub.f32 1.5, %v630
            %v632 = vmul.f32 %v627, %v631
            %vm633 = vweird.f32 %v626
            %vm634 = vweird.f32 %v627
            %vm635 = vmor %vm633, %vm634
            %v636 = vsel %vm635, %v627, %v632
            %v637 = vmul.f32 %v624, %v636
            %v638 = vmul.f32 %v624, %v566
            %v639 = vsub.f32 %v564, %v638
            %v640 = vmul.f32 %v624, %v566
            %v641 = vadd.f32 %v568, %v640
            %s642 = smov [#allocation19]
            %643 = vst [vmem:[%s642] sm:$0xff] %v639
            %s644 = smov [#allocation20]
            %645 = vst [vmem:[%s644] sm:$0xff] %v641
            %s646 = smov %s561
            %647 = vst [vmem:[%s646] sm:$0xff] %v636
            %s648 = smov %s562
            %649 = vst [vmem:[%s648] sm:$0xff] %v637
            %s650 = smov [#allocation21]
            %v651 = vld [vmem:[%s650] ss:$0 sm:$0xff]
            %v652 = vlaneseq
            %v653 = vand.u32 %v652, 127
            %v654 = vmov %v653
            %v655 = vlaneseq
            %v656 = vshrl.u32 %v655, 7
            %v657 = vmov %v656
            %vm659 = vcmp.eq.s32.totalorder %v657, %v654
            %v660 = vsel %vm659, %v651, 0.0
            %661 = vadd.xlane.f32.xlu0 %v660
            %v662 = vpop.xlane.xlu0 %661
            %s663 = smov [#allocation23]
            %664 = vst [vmem:[%s663] sm:$0xff] %v662
            %s665 = smov [#allocation22]
            %v666 = vld [vmem:[%s665] ss:$0 sm:$0xff]
            %v667 = vlaneseq
            %v668 = vand.u32 %v667, 127
            %v669 = vmov %v668
            %v670 = vlaneseq
            %v671 = vshrl.u32 %v670, 7
            %v672 = vmov %v671
            %vm674 = vcmp.eq.s32.totalorder %v672, %v669
            %v675 = vsel %vm674, %v666, 0.0
            %676 = vadd.xlane.f32.xlu0 %v675
            %v677 = vpop.xlane.xlu0 %676
            %s678 = smov [#allocation24]
            %679 = vst [vmem:[%s678] sm:$0xff] %v677
            %s680 = smov [#allocation23]
            %v681 = vld [vmem:[%s680] sm:$0xff]
            %s682 = smov [#allocation24]
            %v683 = vld [vmem:[%s682] sm:$0xff]
            %s684 = smov [#allocation12]
            %s685 = smov [#allocation13]
            %s686 = smov [#allocation14]
            %s687 = smov [#allocation15]
            %v688 = vld [vmem:[%s684] sm:$0x3f]
            %v689 = vld [vmem:[%s685] sm:$0x3f]
            %v690 = vld [vmem:[%s686] sm:$0x3f]
            %v691 = vld [vmem:[%s687] sm:$0x3f]
            %v692 = vmul.f32 %v681, %v688
            %v693 = vmul.f32 %v683, %v690
            %v694 = vsub.f32 %v692, %v693
            %v695 = vmul.f32 %v681, %v689
            %v696 = vmul.f32 %v683, %v691
            %v697 = vsub.f32 %v695, %v696
            %v698 = vmul.f32 %v683, %v688
            %v699 = vmul.f32 %v681, %v690
            %v700 = vadd.f32 %v698, %v699
            %v701 = vmul.f32 %v683, %v689
            %v702 = vmul.f32 %v681, %v691
            %v703 = vadd.f32 %v701, %v702
            %704 = vst [vmem:[%s684] sm:$0x3f] %v694
            %705 = vst [vmem:[%s685] sm:$0x3f] %v697
            %706 = vst [vmem:[%s686] sm:$0x3f] %v700
            %707 = vst [vmem:[%s687] sm:$0x3f] %v703
            %s708 = smov [#allocation21]
            %v709 = vld [vmem:[%s708] ss:$0 sm:$0xff]
            %s710 = smov [#allocation22]
            %v711 = vld [vmem:[%s710] ss:$0 sm:$0xff]
            %s712 = smov [#allocation12]
            %s713 = smov [#allocation13]
            %s714 = smov [#allocation14]
            %s715 = smov [#allocation15]
            %v716 = vld [vmem:[%s712] sm:$0x3f]
            %v717 = vld [vmem:[%s713] sm:$0x3f]
            %v718 = vld [vmem:[%s714] sm:$0x3f]
            %v719 = vld [vmem:[%s715] sm:$0x3f]
            %v720 = vmul.f32 %v709, %v716
            %v721 = vmul.f32 %v711, %v717
            %v722 = vsub.f32 %v720, %v721
            %v723 = vmul.f32 %v711, %v716
            %v724 = vmul.f32 %v709, %v717
            %v725 = vadd.f32 %v723, %v724
            %v726 = vmul.f32 %v709, %v718
            %v727 = vmul.f32 %v711, %v719
            %v728 = vsub.f32 %v726, %v727
            %v729 = vmul.f32 %v711, %v718
            %v730 = vmul.f32 %v709, %v719
            %v731 = vadd.f32 %v729, %v730
            %732 = vst [vmem:[%s712] sm:$0x3f] %v722
            %733 = vst [vmem:[%s713] sm:$0x3f] %v725
            %734 = vst [vmem:[%s714] sm:$0x3f] %v728
            %735 = vst [vmem:[%s715] sm:$0x3f] %v731
            %s736 = smov [#allocation12]
            %s737 = smov [#allocation19]
            %v738 = vlaneseq
            %v739 = vand.u32 %v738, 127
            %v740 = vmov %v739
            %v741 = vlaneseq
            %v742 = vshrl.u32 %v741, 7
            %v743 = vmov %v742
            %v744 = vld [vmem:[%s737] ss:$0 sm:$0xff]
            %v745 = vld [vmem:[%s736] sm:$0x3f]
            %vm748 = vcmp.eq.s32.totalorder %v743, %v740
            %v749 = vsel %vm748, %v744, %v745
            %750 = vst [vmem:[%s736] sm:$0x3f] %v749
            %s751 = smov [#allocation13]
            %v752 = vlaneseq
            %v753 = vand.u32 %v752, 127
            %v754 = vmov %v753
            %v755 = vlaneseq
            %v756 = vshrl.u32 %v755, 7
            %v757 = vmov %v756
            %v758 = vld [vmem:[%s751] sm:$0x3f]
            %vm761 = vcmp.eq.s32.totalorder %v757, %v754
            %v762 = vsel %vm761, 0.0, %v758
            %763 = vst [vmem:[%s751] sm:$0x3f] %v762
            %s764 = smov [#allocation14]
            %v765 = vlaneseq
            %v766 = vand.u32 %v765, 127
            %v767 = vmov %v766
            %v768 = vlaneseq
            %v769 = vshrl.u32 %v768, 7
            %v770 = vmov %v769
            %v771 = vld [vmem:[%s764] sm:$0x3f]
            %vm774 = vcmp.eq.s32.totalorder %v770, %v767
            %v775 = vsel %vm774, 0.0, %v771
            %776 = vst [vmem:[%s764] sm:$0x3f] %v775
            %s777 = smov [#allocation15]
            %s778 = smov [#allocation20]
            %v779 = vlaneseq
            %v780 = vand.u32 %v779, 127
            %v781 = vmov %v780
            %v782 = vlaneseq
            %v783 = vshrl.u32 %v782, 7
            %v784 = vmov %v783
            %v785 = vld [vmem:[%s778] ss:$0 sm:$0xff]
            %v786 = vld [vmem:[%s777] sm:$0x3f]
            %vm789 = vcmp.eq.s32.totalorder %v784, %v781
            %v790 = vsel %vm789, %v785, %v786
            %791 = vst [vmem:[%s777] sm:$0x3f] %v790
            %s792 = smov [#allocation12]
            %s793 = smov [#allocation13]
            %v794 = vld [vmem:[%s793] sm:$0x3f]
            %795 = vrot.lane.b32.xlu0 %v794, 1
            %v796 = vpop.permute.xlu0 %795
            %v797 = vld [vmem:[%s792] sm:$0x3f]
            %v798 = vld [vmem:[%s792] sm:$0x3f]
            %799 = vrot.lane.b32.xlu0 %v798, 1
            %v800 = vpop.permute.xlu0 %799
            %v801 = vlaneseq
            %v802 = vand.u32 %v801, 127
            %vm803 = vcmp.eq.s32.totalorder %v802, 0
            %v804 = vsel %vm803, %v798, %v800
            %v805 = vlaneseq
            %v806 = vand.u32 %v805, 127
            %vm807 = vcmp.eq.s32.totalorder %v806, 1
            %v808 = vsel %vm807, %v796, %v804
            %v809 = vlaneseq
            %v810 = vand.u32 %v809, 127
            %vm811 = vcmp.ge.s32.totalorder %v810, 0
            %vm812 = vcmp.lt.s32.totalorder %v810, 6
            %vm813 = vmand %vm811, %vm812
            %v814 = vsel %vm813, %v808, 0.0
            %v815 = vld [vmem:[%s793] sm:$0x3f]
            %816 = vrot.lane.b32.xlu0 %v815, 127
            %v817 = vpop.permute.xlu0 %816
            %v818 = vlaneseq
            %v819 = vand.u32 %v818, 127
            %vm820 = vcmp.eq.s32.totalorder %v819, 5
            %v821 = vsel %vm820, %v797, %v817
            %822 = vst [vmem:[%s792] sm:$0x3f] %v814
            %823 = vst [vmem:[%s793] sm:$0x3f] %v821
            %s824 = smov [#allocation14]
            %s825 = smov [#allocation15]
            %v826 = vld [vmem:[%s825] sm:$0x3f]
            %827 = vrot.lane.b32.xlu0 %v826, 1
            %v828 = vpop.permute.xlu0 %827
            %v829 = vld [vmem:[%s824] sm:$0x3f]
            %v830 = vld [vmem:[%s824] sm:$0x3f]
            %831 = vrot.lane.b32.xlu0 %v830, 1
            %v832 = vpop.permute.xlu0 %831
            %v833 = vlaneseq
            %v834 = vand.u32 %v833, 127
            %vm835 = vcmp.eq.s32.totalorder %v834, 0
            %v836 = vsel %vm835, %v830, %v832
            %v837 = vlaneseq
            %v838 = vand.u32 %v837, 127
            %vm839 = vcmp.eq.s32.totalorder %v838, 1
            %v840 = vsel %vm839, %v828, %v836
            %v841 = vlaneseq
            %v842 = vand.u32 %v841, 127
            %vm843 = vcmp.ge.s32.totalorder %v842, 0
            %vm844 = vcmp.lt.s32.totalorder %v842, 6
            %vm845 = vmand %vm843, %vm844
            %v846 = vsel %vm845, %v840, 0.0
            %v847 = vld [vmem:[%s825] sm:$0x3f]
            %848 = vrot.lane.b32.xlu0 %v847, 127
            %v849 = vpop.permute.xlu0 %848
            %v850 = vlaneseq
            %v851 = vand.u32 %v850, 127
            %vm852 = vcmp.eq.s32.totalorder %v851, 5
            %v853 = vsel %vm852, %v829, %v849
            %854 = vst [vmem:[%s824] sm:$0x3f] %v846
            %855 = vst [vmem:[%s825] sm:$0x3f] %v853
            %s856 = smov [#allocation12]
            %s857 = smov [#allocation14]
            %v858 = vld [vmem:[%s856] ss:$0 sm:$0xff]
            %s860 = scalar_lea.vmem %s856, 4294967295
            %v861 = vld [vmem:[%s860] sm:$0x3e]
            %v862 = vlaneseq
            %v863 = vshrl.u32 %v862, 7
            %vm864 = vcmp.eq.s32.totalorder %v863, 0
            %v865 = vsel %vm864, %v858, %v861
            %s866 = scalar_lea.vmem %s856, 5
            %v867 = vld [vmem:[%s866] ss:$0 sm:$0xff]
            %868 = vst [vmem:[%s856] sm:$0x3f] %v865
            %v869 = vld [vmem:[%s857] ss:$0 sm:$0xff]
            %s870 = scalar_lea.vmem %s856, 1
            %871 = vst [vmem:[%s870] sm:$0x1] %v869
            %s872 = scalar_lea.vmem %s857, 1
            %v873 = vld [vmem:[%s872] sm:$0x1f]
            %v874 = vlaneseq
            %v875 = vshrl.u32 %v874, 7
            %vm876 = vcmp.eq.s32.totalorder %v875, 5
            %v877 = vsel %vm876, %v867, %v873
            %v878 = vld [vmem:[%s857] ss:$0 sm:$0xff]
            %879 = vst [vmem:[%s857] sm:$0x3f] %v877
            %s880 = smov [#allocation13]
            %s881 = smov [#allocation15]
            %v882 = vld [vmem:[%s880] ss:$0 sm:$0xff]
            %s884 = scalar_lea.vmem %s880, 4294967295
            %v885 = vld [vmem:[%s884] sm:$0x3e]
            %v886 = vlaneseq
            %v887 = vshrl.u32 %v886, 7
            %vm888 = vcmp.eq.s32.totalorder %v887, 0
            %v889 = vsel %vm888, %v882, %v885
            %s890 = scalar_lea.vmem %s880, 5
            %v891 = vld [vmem:[%s890] ss:$0 sm:$0xff]
            %892 = vst [vmem:[%s880] sm:$0x3f] %v889
            %v893 = vld [vmem:[%s881] ss:$0 sm:$0xff]
            %s894 = scalar_lea.vmem %s880, 1
            %895 = vst [vmem:[%s894] sm:$0x1] %v893
            %s896 = scalar_lea.vmem %s881, 1
            %v897 = vld [vmem:[%s896] sm:$0x1f]
            %v898 = vlaneseq
            %v899 = vshrl.u32 %v898, 7
            %vm900 = vcmp.eq.s32.totalorder %v899, 5
            %v901 = vsel %vm900, %v891, %v897
            %v902 = vld [vmem:[%s881] ss:$0 sm:$0xff]
            %903 = vst [vmem:[%s881] sm:$0x3f] %v901
            %s904 = smov [#allocation23]
            %v905 = vld [vmem:[%s904] sm:$0xff]
            %s906 = smov [#allocation24]
            %v907 = vld [vmem:[%s906] sm:$0xff]
            %s908 = smov %s340
            %s909 = smov %s344
            %s910 = smov %s348
            %s911 = smov %s352
            %v912 = vld [vmem:[%s908] sm:$0x3f]
            %v913 = vld [vmem:[%s909] sm:$0x3f]
            %v914 = vld [vmem:[%s910] sm:$0x3f]
            %v915 = vld [vmem:[%s911] sm:$0x3f]
            %v916 = vmul.f32 %v905, %v912
            %v917 = vmul.f32 %v907, %v914
            %v918 = vsub.f32 %v916, %v917
            %v919 = vmul.f32 %v905, %v913
            %v920 = vmul.f32 %v907, %v915
            %v921 = vsub.f32 %v919, %v920
            %v922 = vmul.f32 %v907, %v912
            %v923 = vmul.f32 %v905, %v914
            %v924 = vadd.f32 %v922, %v923
            %v925 = vmul.f32 %v907, %v913
            %v926 = vmul.f32 %v905, %v915
            %v927 = vadd.f32 %v925, %v926
            %928 = vst [vmem:[%s908] sm:$0x3f] %v918
            %929 = vst [vmem:[%s909] sm:$0x3f] %v921
            %930 = vst [vmem:[%s910] sm:$0x3f] %v924
            %931 = vst [vmem:[%s911] sm:$0x3f] %v927
            %s932 = smov %s340
            %s933 = smov %s348
            %v934 = vld [vmem:[%s932] ss:$0 sm:$0xff]
            %s936 = scalar_lea.vmem %s932, 4294967295
            %v937 = vld [vmem:[%s936] sm:$0x3e]
            %v938 = vlaneseq
            %v939 = vshrl.u32 %v938, 7
            %vm940 = vcmp.eq.s32.totalorder %v939, 0
            %v941 = vsel %vm940, %v934, %v937
            %s942 = scalar_lea.vmem %s932, 5
            %v943 = vld [vmem:[%s942] ss:$0 sm:$0xff]
            %944 = vst [vmem:[%s932] sm:$0x3f] %v941
            %v945 = vld [vmem:[%s933] ss:$0 sm:$0xff]
            %s946 = scalar_lea.vmem %s932, 1
            %947 = vst [vmem:[%s946] sm:$0x1] %v945
            %s948 = scalar_lea.vmem %s933, 1
            %v949 = vld [vmem:[%s948] sm:$0x1f]
            %v950 = vlaneseq
            %v951 = vshrl.u32 %v950, 7
            %vm952 = vcmp.eq.s32.totalorder %v951, 5
            %v953 = vsel %vm952, %v943, %v949
            %v954 = vld [vmem:[%s933] ss:$0 sm:$0xff]
            %955 = vst [vmem:[%s933] sm:$0x3f] %v953
            %s956 = smov %s344
            %s957 = smov %s352
            %v958 = vld [vmem:[%s956] ss:$0 sm:$0xff]
            %s960 = scalar_lea.vmem %s956, 4294967295
            %v961 = vld [vmem:[%s960] sm:$0x3e]
            %v962 = vlaneseq
            %v963 = vshrl.u32 %v962, 7
            %vm964 = vcmp.eq.s32.totalorder %v963, 0
            %v965 = vsel %vm964, %v958, %v961
            %s966 = scalar_lea.vmem %s956, 5
            %v967 = vld [vmem:[%s966] ss:$0 sm:$0xff]
            %968 = vst [vmem:[%s956] sm:$0x3f] %v965
            %v969 = vld [vmem:[%s957] ss:$0 sm:$0xff]
            %s970 = scalar_lea.vmem %s956, 1
            %971 = vst [vmem:[%s970] sm:$0x1] %v969
            %s972 = scalar_lea.vmem %s957, 1
            %v973 = vld [vmem:[%s972] sm:$0x1f]
            %v974 = vlaneseq
            %v975 = vshrl.u32 %v974, 7
            %vm976 = vcmp.eq.s32.totalorder %v975, 5
            %v977 = vsel %vm976, %v967, %v973
            %v978 = vld [vmem:[%s957] ss:$0 sm:$0xff]
            %979 = vst [vmem:[%s957] sm:$0x3f] %v977
          $region168: #{custom-call.4} parent=160 // loop_footer
            %s500 = sadd.s32 1, %s496
          $region169: #{custom-call.4} parent=160 // loop_footer_branch
            %495 = sbr.rel target = $region165
          $region170: #{custom-call.4} parent=160 // loop_exit
            _
          %s980 = sadd.s32 %s398, 1
        $region161: #{custom-call.4} parent=155 // loop_footer
          _
        $region162: #{custom-call.4} parent=155 // loop_footer_branch
          %397 = sbr.rel target = $region158
        $region163: #{custom-call.4} parent=155 // loop_exit
          _
        %s983 = sand.u32 %s24, 7
        %s984 = scalar_lea.vmem [#allocation4], %s983
        %s985 = sand.u32 %s24, 7
        %s986 = scalar_lea.vmem [#allocation6], %s985
        %s987 = smov [#allocation12]
        %s988 = smov %s984
        %v989 = vlaneseq
        %v990 = vand.u32 %v989, 127
        %v991 = vmov %v990
        %v992 = vlaneseq
        %v993 = vshrl.u32 %v992, 7
        %v994 = vmov %v993
        %v995 = vld [vmem:[%s987] sm:$0x3f]
        %vm998 = vcmp.eq.s32.totalorder %v994, %v991
        %v999 = vsel %vm998, %v995, 0.0
        %v1000 = vrot.slane %v999, 4
        %v1001 = vadd.f32 %v999, %v1000
        %v1002 = vrot.slane %v1001, 2
        %v1003 = vadd.f32 %v1001, %v1002
        %v1004 = vrot.slane %v1003, 1
        %v1005 = vadd.f32 %v1003, %v1004
        %1006 = vst [vmem:[%s988] sm:$0x1] %v1005
        %s1007 = smov [#allocation15]
        %s1008 = smov %s986
        %v1009 = vlaneseq
        %v1010 = vand.u32 %v1009, 127
        %v1011 = vmov %v1010
        %v1012 = vlaneseq
        %v1013 = vshrl.u32 %v1012, 7
        %v1014 = vmov %v1013
        %v1015 = vld [vmem:[%s1007] sm:$0x3f]
        %vm1018 = vcmp.eq.s32.totalorder %v1014, %v1011
        %v1019 = vsel %vm1018, %v1015, 0.0
        %v1020 = vrot.slane %v1019, 4
        %v1021 = vadd.f32 %v1019, %v1020
        %v1022 = vrot.slane %v1021, 2
        %v1023 = vadd.f32 %v1021, %v1022
        %v1024 = vrot.slane %v1023, 1
        %v1025 = vadd.f32 %v1023, %v1024
        %1026 = vst [vmem:[%s1008] sm:$0x1] %v1025
        %s1028 = ssub.s32 16, 1
        %v1029 = vld [vmem:[#allocation4] sm:%s1028]
        %s1031 = ssub.s32 16, 1
        %1032 = vst [vmem:[%s330] sm:%s1031] %v1029
        %s1034 = ssub.s32 16, 1
        %v1035 = vld [vmem:[#allocation6] sm:%s1034]
        %s1037 = ssub.s32 16, 1
        %1038 = vst [vmem:[%s336] sm:%s1037] %v1035
        %s1039 = sand.u32 %s50, 1
        %s1040 = sand.u32 %s50, 1
        %s1041 = smul.addr %s1040, 4
        %s1042 = scalar_lea.vmem [#allocation5], %s1041
        %s1043 = sand.u32 %s82, 1
        %s1044 = sand.u32 %s82, 1
        %s1045 = smul.addr %s1044, 4
        %s1046 = scalar_lea.vmem [#allocation7], %s1045
        %s1047 = sand.u32 %s17, 1
        %s1048 = sand.u32 %s17, 1
        %s1049 = smul.addr %s1048, 8
        %s1050 = scalar_lea.vmem [#allocation8], %s1049
        %s1051 = sand.u32 %s17, 1
        %s1052 = sand.u32 %s17, 1
        %s1053 = smul.addr %s1052, 8
        %s1054 = scalar_lea.vmem [#allocation9], %s1053
        %s1055 = sand.u32 %s17, 1
        %s1056 = sand.u32 %s17, 1
        %s1057 = smul.addr %s1056, 8
        %s1058 = scalar_lea.vmem [#allocation10], %s1057
        %s1059 = sand.u32 %s17, 1
        %s1060 = sand.u32 %s17, 1
        %s1061 = smul.addr %s1060, 8
        %s1062 = scalar_lea.vmem [#allocation11], %s1061
        // Predicated region
        $region171: #{custom-call.4} parent=155 // pred_check
          %p1063 = pneg %p60
        $region172: #{custom-call.4} parent=155 // pred_check_branch
          %1065 = sbr.rel (%p1063) target = $region174
        $region173: #{custom-call.4} parent=155 // pred_region
          %s1066 = sshrl.u32 %s24, 3
          %s1067 = sadd.s32 %s1066, %s23
          %s1068 = smul.addr %s22, 3
          %s1069 = sadd.s32 %s1067, %s1068
          %s1070 = smul.addr %s1069, 4
          %s1071 = scalar_lea.vmem %s4, %s1070
          // Predicated region
          $region175: #{custom-call.4} parent=173 // pred_check
            _
          $region176: #{custom-call.4} parent=173 // pred_check_branch
            %1073 = sbr.rel (0) target = $region178
          $region177: #{custom-call.4} parent=173 // pred_region
            // Predicated region
            $region179: #{custom-call.4} parent=177 // pred_check
              _
            $region180: #{custom-call.4} parent=177 // pred_check_branch
              %1075 = sbr.rel target = $region182
            $region181: #{custom-call.4} parent=177 // pred_region
              // Predicated region
              $region194: #{custom-call.4} parent=181 // pred_check
                _
              $region195: #{custom-call.4} parent=181 // pred_check_branch
                %1091 = sbr.rel (0) target = $region197
              $region196: #{custom-call.4} parent=181 // pred_region
                %s1093 = ssub.s32 16, 1
                loop: start=0, step=1, limit=1
                $region198: #{custom-call.4} parent=196 // loop_pre_header
                  _
                $region199: #{custom-call.4} parent=196 // loop_header
                  %s1095 = sphi 0, %s1099
                  %p1096 = scmp.ge.s32.totalorder %s1095, 1
                  %s1100 = sphi %s1042, %s1042
                  %s1101 = sphi %s1071, %s1071
                $region200: #{custom-call.4} parent=196 // loop_header_branch
                  %1098 = sbr.rel (%p1096) target = $region204
                $region201: #{custom-call.4} parent=196 // loop_body
                  %v1102 = vld [vmem:[%s1100] sm:%s1093]
                  %1103 = vst [vmem:[%s1101] sm:%s1093] %v1102
                $region202: #{custom-call.4} parent=196 // loop_footer
                  %s1099 = sadd.s32 1, %s1095
                $region203: #{custom-call.4} parent=196 // loop_footer_branch
                  %1094 = sbr.rel target = $region199
                $region204: #{custom-call.4} parent=196 // loop_exit
                  _
              $region197: #{custom-call.4} parent=181 // pred_fallthru
                _
            $region182: #{custom-call.4} parent=177 // pred_fallthru
              _
            // Predicated region
            $region183: #{custom-call.4} parent=177 // pred_check
              _
            $region184: #{custom-call.4} parent=177 // pred_check_branch
              %1077 = sbr.rel (0) target = $region186
            $region185: #{custom-call.4} parent=177 // pred_region
              %s1079 = ssub.s32 16, 1
              loop: start=0, step=1, limit=1
              $region187: #{custom-call.4} parent=185 // loop_pre_header
                _
              $region188: #{custom-call.4} parent=185 // loop_header
                %s1081 = sphi 0, %s1085
                %p1082 = scmp.ge.s32.totalorder %s1081, 1
                %s1086 = sphi %s1042, %s1042
                %s1087 = sphi %s1071, %s1071
              $region189: #{custom-call.4} parent=185 // loop_header_branch
                %1084 = sbr.rel (%p1082) target = $region193
              $region190: #{custom-call.4} parent=185 // loop_body
                %v1088 = vld [vmem:[%s1086] sm:%s1079]
                %1089 = vst [vmem:[%s1087] sm:%s1079] %v1088
              $region191: #{custom-call.4} parent=185 // loop_footer
                %s1085 = sadd.s32 1, %s1081
              $region192: #{custom-call.4} parent=185 // loop_footer_branch
                %1080 = sbr.rel target = $region188
              $region193: #{custom-call.4} parent=185 // loop_exit
                _
            $region186: #{custom-call.4} parent=177 // pred_fallthru
              _
          $region178: #{custom-call.4} parent=173 // pred_fallthru
            _
          %1104 = vnop
        $region174: #{custom-call.4} parent=155 // pred_fallthru
          _
        // Predicated region
        $region205: #{custom-call.4} parent=155 // pred_check
          %p1105 = pneg %p92
        $region206: #{custom-call.4} parent=155 // pred_check_branch
          %1107 = sbr.rel (%p1105) target = $region208
        $region207: #{custom-call.4} parent=155 // pred_region
          %s1108 = sshrl.u32 %s24, 3
          %s1109 = sadd.s32 %s1108, %s23
          %s1110 = smul.addr %s22, 3
          %s1111 = sadd.s32 %s1109, %s1110
          %s1112 = smul.addr %s1111, 4
          %s1113 = scalar_lea.vmem %s5, %s1112
          // Predicated region
          $region209: #{custom-call.4} parent=207 // pred_check
            _
          $region210: #{custom-call.4} parent=207 // pred_check_branch
            %1115 = sbr.rel (0) target = $region212
          $region211: #{custom-call.4} parent=207 // pred_region
            // Predicated region
            $region213: #{custom-call.4} parent=211 // pred_check
              _
            $region214: #{custom-call.4} parent=211 // pred_check_branch
              %1117 = sbr.rel target = $region216
            $region215: #{custom-call.4} parent=211 // pred_region
              // Predicated region
              $region228: #{custom-call.4} parent=215 // pred_check
                _
              $region229: #{custom-call.4} parent=215 // pred_check_branch
                %1133 = sbr.rel (0) target = $region231
              $region230: #{custom-call.4} parent=215 // pred_region
                %s1135 = ssub.s32 16, 1
                loop: start=0, step=1, limit=1
                $region232: #{custom-call.4} parent=230 // loop_pre_header
                  _
                $region233: #{custom-call.4} parent=230 // loop_header
                  %s1137 = sphi 0, %s1141
                  %p1138 = scmp.ge.s32.totalorder %s1137, 1
                  %s1142 = sphi %s1046, %s1046
                  %s1143 = sphi %s1113, %s1113
                $region234: #{custom-call.4} parent=230 // loop_header_branch
                  %1140 = sbr.rel (%p1138) target = $region238
                $region235: #{custom-call.4} parent=230 // loop_body
                  %v1144 = vld [vmem:[%s1142] sm:%s1135]
                  %1145 = vst [vmem:[%s1143] sm:%s1135] %v1144
                $region236: #{custom-call.4} parent=230 // loop_footer
                  %s1141 = sadd.s32 1, %s1137
                $region237: #{custom-call.4} parent=230 // loop_footer_branch
                  %1136 = sbr.rel target = $region233
                $region238: #{custom-call.4} parent=230 // loop_exit
                  _
              $region231: #{custom-call.4} parent=215 // pred_fallthru
                _
            $region216: #{custom-call.4} parent=211 // pred_fallthru
              _
            // Predicated region
            $region217: #{custom-call.4} parent=211 // pred_check
              _
            $region218: #{custom-call.4} parent=211 // pred_check_branch
              %1119 = sbr.rel (0) target = $region220
            $region219: #{custom-call.4} parent=211 // pred_region
              %s1121 = ssub.s32 16, 1
              loop: start=0, step=1, limit=1
              $region221: #{custom-call.4} parent=219 // loop_pre_header
                _
              $region222: #{custom-call.4} parent=219 // loop_header
                %s1123 = sphi 0, %s1127
                %p1124 = scmp.ge.s32.totalorder %s1123, 1
                %s1128 = sphi %s1046, %s1046
                %s1129 = sphi %s1113, %s1113
              $region223: #{custom-call.4} parent=219 // loop_header_branch
                %1126 = sbr.rel (%p1124) target = $region227
              $region224: #{custom-call.4} parent=219 // loop_body
                %v1130 = vld [vmem:[%s1128] sm:%s1121]
                %1131 = vst [vmem:[%s1129] sm:%s1121] %v1130
              $region225: #{custom-call.4} parent=219 // loop_footer
                %s1127 = sadd.s32 1, %s1123
              $region226: #{custom-call.4} parent=219 // loop_footer_branch
                %1122 = sbr.rel target = $region222
              $region227: #{custom-call.4} parent=219 // loop_exit
                _
            $region220: #{custom-call.4} parent=211 // pred_fallthru
              _
          $region212: #{custom-call.4} parent=207 // pred_fallthru
            _
          %1146 = vnop
        $region208: #{custom-call.4} parent=155 // pred_fallthru
          _
        %s1147 = smul.addr %s23, 3
        %s1148 = sadd.s32 %s24, %s1147
        %s1149 = smul.addr %s22, 9
        %s1150 = sadd.s32 %s1148, %s1149
        %s1151 = smul.addr %s1150, 8
        %s1152 = scalar_lea.vmem %s6, %s1151
        // Predicated region
        $region239: #{custom-call.4} parent=155 // pred_check
          _
        $region240: #{custom-call.4} parent=155 // pred_check_branch
          %1154 = sbr.rel (0) target = $region242
        $region241: #{custom-call.4} parent=155 // pred_region
          // Predicated region
          $region243: #{custom-call.4} parent=241 // pred_check
            _
          $region244: #{custom-call.4} parent=241 // pred_check_branch
            %1156 = sbr.rel (0) target = $region246
          $region245: #{custom-call.4} parent=241 // pred_region
            // Predicated region
            $region258: #{custom-call.4} parent=245 // pred_check
              _
            $region259: #{custom-call.4} parent=245 // pred_check_branch
              %1172 = sbr.rel (0) target = $region261
            $region260: #{custom-call.4} parent=245 // pred_region
              loop: start=0, step=1, limit=1
              $region262: #{custom-call.4} parent=260 // loop_pre_header
                _
              $region263: #{custom-call.4} parent=260 // loop_header
                %s1174 = sphi 0, %s1178
                %p1175 = scmp.ge.s32.totalorder %s1174, 1
                %s1179 = sphi %s1050, %s1050
                %s1180 = sphi %s1152, %s1152
              $region264: #{custom-call.4} parent=260 // loop_header_branch
                %1177 = sbr.rel (%p1175) target = $region268
              $region265: #{custom-call.4} parent=260 // loop_body
                %v1181 = vld [vmem:[%s1179] sm:$0xff]
                %1182 = vst [vmem:[%s1180] sm:$0xff] %v1181
              $region266: #{custom-call.4} parent=260 // loop_footer
                %s1178 = sadd.s32 1, %s1174
              $region267: #{custom-call.4} parent=260 // loop_footer_branch
                %1173 = sbr.rel target = $region263
              $region268: #{custom-call.4} parent=260 // loop_exit
                _
            $region261: #{custom-call.4} parent=245 // pred_fallthru
              _
            // Predicated region
            $region269: #{custom-call.4} parent=245 // pred_check
              _
            $region270: #{custom-call.4} parent=245 // pred_check_branch
              %1184 = sbr.rel target = $region272
            $region271: #{custom-call.4} parent=245 // pred_region
              _
            $region272: #{custom-call.4} parent=245 // pred_fallthru
              _
          $region246: #{custom-call.4} parent=241 // pred_fallthru
            _
          // Predicated region
          $region247: #{custom-call.4} parent=241 // pred_check
            _
          $region248: #{custom-call.4} parent=241 // pred_check_branch
            %1158 = sbr.rel target = $region250
          $region249: #{custom-call.4} parent=241 // pred_region
            %s1160 = ssub.s32 256, 1
            loop: start=0, step=1, limit=1
            $region251: #{custom-call.4} parent=249 // loop_pre_header
              _
            $region252: #{custom-call.4} parent=249 // loop_header
              %s1162 = sphi 0, %s1166
              %p1163 = scmp.ge.s32.totalorder %s1162, 1
              %s1167 = sphi %s1050, %s1050
              %s1168 = sphi %s1152, %s1152
            $region253: #{custom-call.4} parent=249 // loop_header_branch
              %1165 = sbr.rel (%p1163) target = $region257
            $region254: #{custom-call.4} parent=249 // loop_body
              %v1169 = vld [vmem:[%s1167] sm:%s1160]
              %1170 = vst [vmem:[%s1168] sm:%s1160] %v1169
            $region255: #{custom-call.4} parent=249 // loop_footer
              %s1166 = sadd.s32 1, %s1162
            $region256: #{custom-call.4} parent=249 // loop_footer_branch
              %1161 = sbr.rel target = $region252
            $region257: #{custom-call.4} parent=249 // loop_exit
              _
          $region250: #{custom-call.4} parent=241 // pred_fallthru
            _
        $region242: #{custom-call.4} parent=155 // pred_fallthru
          _
        %1185 = vnop
        %s1186 = smul.addr %s23, 3
        %s1187 = sadd.s32 %s24, %s1186
        %s1188 = smul.addr %s22, 9
        %s1189 = sadd.s32 %s1187, %s1188
        %s1190 = smul.addr %s1189, 8
        %s1191 = scalar_lea.vmem %s7, %s1190
        // Predicated region
        $region273: #{custom-call.4} parent=155 // pred_check
          _
        $region274: #{custom-call.4} parent=155 // pred_check_branch
          %1193 = sbr.rel (0) target = $region276
        $region275: #{custom-call.4} parent=155 // pred_region
          // Predicated region
          $region277: #{custom-call.4} parent=275 // pred_check
            _
          $region278: #{custom-call.4} parent=275 // pred_check_branch
            %1195 = sbr.rel (0) target = $region280
          $region279: #{custom-call.4} parent=275 // pred_region
            // Predicated region
            $region292: #{custom-call.4} parent=279 // pred_check
              _
            $region293: #{custom-call.4} parent=279 // pred_check_branch
              %1211 = sbr.rel (0) target = $region295
            $region294: #{custom-call.4} parent=279 // pred_region
              loop: start=0, step=1, limit=1
              $region296: #{custom-call.4} parent=294 // loop_pre_header
                _
              $region297: #{custom-call.4} parent=294 // loop_header
                %s1213 = sphi 0, %s1217
                %p1214 = scmp.ge.s32.totalorder %s1213, 1
                %s1218 = sphi %s1054, %s1054
                %s1219 = sphi %s1191, %s1191
              $region298: #{custom-call.4} parent=294 // loop_header_branch
                %1216 = sbr.rel (%p1214) target = $region302
              $region299: #{custom-call.4} parent=294 // loop_body
                %v1220 = vld [vmem:[%s1218] sm:$0xff]
                %1221 = vst [vmem:[%s1219] sm:$0xff] %v1220
              $region300: #{custom-call.4} parent=294 // loop_footer
                %s1217 = sadd.s32 1, %s1213
              $region301: #{custom-call.4} parent=294 // loop_footer_branch
                %1212 = sbr.rel target = $region297
              $region302: #{custom-call.4} parent=294 // loop_exit
                _
            $region295: #{custom-call.4} parent=279 // pred_fallthru
              _
            // Predicated region
            $region303: #{custom-call.4} parent=279 // pred_check
              _
            $region304: #{custom-call.4} parent=279 // pred_check_branch
              %1223 = sbr.rel target = $region306
            $region305: #{custom-call.4} parent=279 // pred_region
              _
            $region306: #{custom-call.4} parent=279 // pred_fallthru
              _
          $region280: #{custom-call.4} parent=275 // pred_fallthru
            _
          // Predicated region
          $region281: #{custom-call.4} parent=275 // pred_check
            _
          $region282: #{custom-call.4} parent=275 // pred_check_branch
            %1197 = sbr.rel target = $region284
          $region283: #{custom-call.4} parent=275 // pred_region
            %s1199 = ssub.s32 256, 1
            loop: start=0, step=1, limit=1
            $region285: #{custom-call.4} parent=283 // loop_pre_header
              _
            $region286: #{custom-call.4} parent=283 // loop_header
              %s1201 = sphi 0, %s1205
              %p1202 = scmp.ge.s32.totalorder %s1201, 1
              %s1206 = sphi %s1054, %s1054
              %s1207 = sphi %s1191, %s1191
            $region287: #{custom-call.4} parent=283 // loop_header_branch
              %1204 = sbr.rel (%p1202) target = $region291
            $region288: #{custom-call.4} parent=283 // loop_body
              %v1208 = vld [vmem:[%s1206] sm:%s1199]
              %1209 = vst [vmem:[%s1207] sm:%s1199] %v1208
            $region289: #{custom-call.4} parent=283 // loop_footer
              %s1205 = sadd.s32 1, %s1201
            $region290: #{custom-call.4} parent=283 // loop_footer_branch
              %1200 = sbr.rel target = $region286
            $region291: #{custom-call.4} parent=283 // loop_exit
              _
          $region284: #{custom-call.4} parent=275 // pred_fallthru
            _
        $region276: #{custom-call.4} parent=155 // pred_fallthru
          _
        %1224 = vnop
        %s1225 = smul.addr %s23, 3
        %s1226 = sadd.s32 %s24, %s1225
        %s1227 = smul.addr %s22, 9
        %s1228 = sadd.s32 %s1226, %s1227
        %s1229 = smul.addr %s1228, 8
        %s1230 = scalar_lea.vmem %s8, %s1229
        // Predicated region
        $region307: #{custom-call.4} parent=155 // pred_check
          _
        $region308: #{custom-call.4} parent=155 // pred_check_branch
          %1232 = sbr.rel (0) target = $region310
        $region309: #{custom-call.4} parent=155 // pred_region
          // Predicated region
          $region311: #{custom-call.4} parent=309 // pred_check
            _
          $region312: #{custom-call.4} parent=309 // pred_check_branch
            %1234 = sbr.rel (0) target = $region314
          $region313: #{custom-call.4} parent=309 // pred_region
            // Predicated region
            $region326: #{custom-call.4} parent=313 // pred_check
              _
            $region327: #{custom-call.4} parent=313 // pred_check_branch
              %1250 = sbr.rel (0) target = $region329
            $region328: #{custom-call.4} parent=313 // pred_region
              loop: start=0, step=1, limit=1
              $region330: #{custom-call.4} parent=328 // loop_pre_header
                _
              $region331: #{custom-call.4} parent=328 // loop_header
                %s1252 = sphi 0, %s1256
                %p1253 = scmp.ge.s32.totalorder %s1252, 1
                %s1257 = sphi %s1058, %s1058
                %s1258 = sphi %s1230, %s1230
              $region332: #{custom-call.4} parent=328 // loop_header_branch
                %1255 = sbr.rel (%p1253) target = $region336
              $region333: #{custom-call.4} parent=328 // loop_body
                %v1259 = vld [vmem:[%s1257] sm:$0xff]
                %1260 = vst [vmem:[%s1258] sm:$0xff] %v1259
              $region334: #{custom-call.4} parent=328 // loop_footer
                %s1256 = sadd.s32 1, %s1252
              $region335: #{custom-call.4} parent=328 // loop_footer_branch
                %1251 = sbr.rel target = $region331
              $region336: #{custom-call.4} parent=328 // loop_exit
                _
            $region329: #{custom-call.4} parent=313 // pred_fallthru
              _
            // Predicated region
            $region337: #{custom-call.4} parent=313 // pred_check
              _
            $region338: #{custom-call.4} parent=313 // pred_check_branch
              %1262 = sbr.rel target = $region340
            $region339: #{custom-call.4} parent=313 // pred_region
              _
            $region340: #{custom-call.4} parent=313 // pred_fallthru
              _
          $region314: #{custom-call.4} parent=309 // pred_fallthru
            _
          // Predicated region
          $region315: #{custom-call.4} parent=309 // pred_check
            _
          $region316: #{custom-call.4} parent=309 // pred_check_branch
            %1236 = sbr.rel target = $region318
          $region317: #{custom-call.4} parent=309 // pred_region
            %s1238 = ssub.s32 256, 1
            loop: start=0, step=1, limit=1
            $region319: #{custom-call.4} parent=317 // loop_pre_header
              _
            $region320: #{custom-call.4} parent=317 // loop_header
              %s1240 = sphi 0, %s1244
              %p1241 = scmp.ge.s32.totalorder %s1240, 1
              %s1245 = sphi %s1058, %s1058
              %s1246 = sphi %s1230, %s1230
            $region321: #{custom-call.4} parent=317 // loop_header_branch
              %1243 = sbr.rel (%p1241) target = $region325
            $region322: #{custom-call.4} parent=317 // loop_body
              %v1247 = vld [vmem:[%s1245] sm:%s1238]
              %1248 = vst [vmem:[%s1246] sm:%s1238] %v1247
            $region323: #{custom-call.4} parent=317 // loop_footer
              %s1244 = sadd.s32 1, %s1240
            $region324: #{custom-call.4} parent=317 // loop_footer_branch
              %1239 = sbr.rel target = $region320
            $region325: #{custom-call.4} parent=317 // loop_exit
              _
          $region318: #{custom-call.4} parent=309 // pred_fallthru
            _
        $region310: #{custom-call.4} parent=155 // pred_fallthru
          _
        %1263 = vnop
        %s1264 = smul.addr %s23, 3
        %s1265 = sadd.s32 %s24, %s1264
        %s1266 = smul.addr %s22, 9
        %s1267 = sadd.s32 %s1265, %s1266
        %s1268 = smul.addr %s1267, 8
        %s1269 = scalar_lea.vmem %s9, %s1268
        // Predicated region
        $region341: #{custom-call.4} parent=155 // pred_check
          _
        $region342: #{custom-call.4} parent=155 // pred_check_branch
          %1271 = sbr.rel (0) target = $region344
        $region343: #{custom-call.4} parent=155 // pred_region
          // Predicated region
          $region345: #{custom-call.4} parent=343 // pred_check
            _
          $region346: #{custom-call.4} parent=343 // pred_check_branch
            %1273 = sbr.rel (0) target = $region348
          $region347: #{custom-call.4} parent=343 // pred_region
            // Predicated region
            $region360: #{custom-call.4} parent=347 // pred_check
              _
            $region361: #{custom-call.4} parent=347 // pred_check_branch
              %1289 = sbr.rel (0) target = $region363
            $region362: #{custom-call.4} parent=347 // pred_region
              loop: start=0, step=1, limit=1
              $region364: #{custom-call.4} parent=362 // loop_pre_header
                _
              $region365: #{custom-call.4} parent=362 // loop_header
                %s1291 = sphi 0, %s1295
                %p1292 = scmp.ge.s32.totalorder %s1291, 1
                %s1296 = sphi %s1062, %s1062
                %s1297 = sphi %s1269, %s1269
              $region366: #{custom-call.4} parent=362 // loop_header_branch
                %1294 = sbr.rel (%p1292) target = $region370
              $region367: #{custom-call.4} parent=362 // loop_body
                %v1298 = vld [vmem:[%s1296] sm:$0xff]
                %1299 = vst [vmem:[%s1297] sm:$0xff] %v1298
              $region368: #{custom-call.4} parent=362 // loop_footer
                %s1295 = sadd.s32 1, %s1291
              $region369: #{custom-call.4} parent=362 // loop_footer_branch
                %1290 = sbr.rel target = $region365
              $region370: #{custom-call.4} parent=362 // loop_exit
                _
            $region363: #{custom-call.4} parent=347 // pred_fallthru
              _
            // Predicated region
            $region371: #{custom-call.4} parent=347 // pred_check
              _
            $region372: #{custom-call.4} parent=347 // pred_check_branch
              %1301 = sbr.rel target = $region374
            $region373: #{custom-call.4} parent=347 // pred_region
              _
            $region374: #{custom-call.4} parent=347 // pred_fallthru
              _
          $region348: #{custom-call.4} parent=343 // pred_fallthru
            _
          // Predicated region
          $region349: #{custom-call.4} parent=343 // pred_check
            _
          $region350: #{custom-call.4} parent=343 // pred_check_branch
            %1275 = sbr.rel target = $region352
          $region351: #{custom-call.4} parent=343 // pred_region
            %s1277 = ssub.s32 256, 1
            loop: start=0, step=1, limit=1
            $region353: #{custom-call.4} parent=351 // loop_pre_header
              _
            $region354: #{custom-call.4} parent=351 // loop_header
              %s1279 = sphi 0, %s1283
              %p1280 = scmp.ge.s32.totalorder %s1279, 1
              %s1284 = sphi %s1062, %s1062
              %s1285 = sphi %s1269, %s1269
            $region355: #{custom-call.4} parent=351 // loop_header_branch
              %1282 = sbr.rel (%p1280) target = $region359
            $region356: #{custom-call.4} parent=351 // loop_body
              %v1286 = vld [vmem:[%s1284] sm:%s1277]
              %1287 = vst [vmem:[%s1285] sm:%s1277] %v1286
            $region357: #{custom-call.4} parent=351 // loop_footer
              %s1283 = sadd.s32 1, %s1279
            $region358: #{custom-call.4} parent=351 // loop_footer_branch
              %1278 = sbr.rel target = $region354
            $region359: #{custom-call.4} parent=351 // loop_exit
              _
          $region352: #{custom-call.4} parent=343 // pred_fallthru
            _
        $region344: #{custom-call.4} parent=155 // pred_fallthru
          _
        %1302 = vnop
      $region156: #{custom-call.4} parent=5 // pred_fallthru
        _
      %p1303 = scmp.le.s32.totalorder 2, %s12
      // Predicated region
      $region375: #{custom-call.4} parent=5 // pred_check
        %p1304 = pneg %p1303
      $region376: #{custom-call.4} parent=5 // pred_check_branch
        %1306 = sbr.rel (%p1304) target = $region378
      $region377: #{custom-call.4} parent=5 // pred_region
        %s1307 = ssub.s32 %s12, 2
        // Predicated region
        $region379: #{custom-call.4} parent=377 // pred_check
          %p1308 = pneg %p66
        $region380: #{custom-call.4} parent=377 // pred_check_branch
          %1310 = sbr.rel (%p1308) target = $region382
        $region381: #{custom-call.4} parent=377 // pred_region
          %s1311 = sand.u32 %s51, 1
          %s1312 = sand.u32 %s51, 1
          %s1313 = smul.addr %s1312, 4
          %s1314 = scalar_lea.vmem [#allocation5], %s1313
        $region382: #{custom-call.4} parent=377 // pred_fallthru
          _
        // Predicated region
        $region383: #{custom-call.4} parent=377 // pred_check
          %p1315 = pneg %p98
        $region384: #{custom-call.4} parent=377 // pred_check_branch
          %1317 = sbr.rel (%p1315) target = $region386
        $region385: #{custom-call.4} parent=377 // pred_region
          %s1318 = sand.u32 %s83, 1
          %s1319 = sand.u32 %s83, 1
          %s1320 = smul.addr %s1319, 4
          %s1321 = scalar_lea.vmem [#allocation7], %s1320
        $region386: #{custom-call.4} parent=377 // pred_fallthru
          _
        %s1322 = sand.u32 %s18, 1
        %s1323 = sand.u32 %s18, 1
        %s1324 = smul.addr %s1323, 8
        %s1325 = scalar_lea.vmem [#allocation8], %s1324
        %s1326 = sand.u32 %s18, 1
        %s1327 = sand.u32 %s18, 1
        %s1328 = smul.addr %s1327, 8
        %s1329 = scalar_lea.vmem [#allocation9], %s1328
        %s1330 = sand.u32 %s18, 1
        %s1331 = sand.u32 %s18, 1
        %s1332 = smul.addr %s1331, 8
        %s1333 = scalar_lea.vmem [#allocation10], %s1332
        %s1334 = sand.u32 %s18, 1
        %s1335 = sand.u32 %s18, 1
        %s1336 = smul.addr %s1335, 8
        %s1337 = scalar_lea.vmem [#allocation11], %s1336
      $region378: #{custom-call.4} parent=5 // pred_fallthru
        _
    $region6: #{custom-call.4} parent=1 // loop_footer
      %s16 = sadd.s32 1, %s12
    $region7: #{custom-call.4} parent=1 // loop_footer_branch
      %11 = sbr.rel target = $region3
    $region8: #{custom-call.4} parent=1 // loop_exit
      _

// kernel: custom-call.5
$region0: #{custom-call.5}
  %s0 = inlined_call_operand.vmem [shape: f32[6,6,6], index: 0, kind: input, shape index: {}]
  %s1 = inlined_call_operand.vmem [shape: f32[6,6,6], index: 1, kind: input, shape index: {}]
  %s2 = inlined_call_operand.vmem [shape: f32[6,6,6], index: 2, kind: input, shape index: {}]
  %s3 = inlined_call_operand.vmem [shape: f32[6,6,6], index: 3, kind: input, shape index: {}]
  %s4 = inlined_call_operand.vmem [shape: f32[6,6], index: 4, kind: output, shape index: {0}]
  %s5 = inlined_call_operand.vmem [shape: f32[6,6], index: 5, kind: output, shape index: {1}]
  %s6 = inlined_call_operand.vmem [shape: f32[6,6,6], index: 6, kind: output, shape index: {2}]
  %s7 = inlined_call_operand.vmem [shape: f32[6,6,6], index: 7, kind: output, shape index: {3}]
  %s8 = inlined_call_operand.vmem [shape: f32[6,6,6], index: 8, kind: output, shape index: {4}]
  %s9 = inlined_call_operand.vmem [shape: f32[6,6,6], index: 9, kind: output, shape index: {5}]
  %10 = xla_tuple %s4, %s5, %s6, %s7, %s8, %s9
  $region1: #{custom-call.5} parent=0
    #allocation0 [shape = 'u8[8192]{0}', space=vmem, size = 0x2000, scoped, tag = 'operand span for operand 0']
    #allocation1 [shape = 'u8[8192]{0}', space=vmem, size = 0x2000, scoped, tag = 'operand span for operand 1']
    #allocation2 [shape = 'u8[8192]{0}', space=vmem, size = 0x2000, scoped, tag = 'operand span for operand 2']
    #allocation3 [shape = 'u8[8192]{0}', space=vmem, size = 0x2000, scoped, tag = 'operand span for operand 3']
    #allocation4 [shape = 'u8[8192]{0}', space=vmem, size = 0x2000, scoped, tag = 'operand span for operand 4']
    #allocation5 [shape = 'u8[8192]{0}', space=vmem, size = 0x2000, scoped, tag = 'operand span for operand 5']
    #allocation6 [shape = 'u8[8192]{0}', space=vmem, size = 0x2000, scoped, tag = 'operand span for operand 6']
    #allocation7 [shape = 'u8[8192]{0}', space=vmem, size = 0x2000, scoped, tag = 'operand span for operand 7']
    #allocation8 [shape = 'u8[8192]{0}', space=vmem, size = 0x2000, scoped, tag = 'operand span for operand 8']
    #allocation9 [shape = 'u8[8192]{0}', space=vmem, size = 0x2000, scoped, tag = 'operand span for operand 9']
    loop: start=0, step=1, limit=8
    $region2: #{custom-call.5} parent=1 // loop_pre_header
      _
    $region3: #{custom-call.5} parent=1 // loop_header
      %s12 = sphi 0, %s16
      %p13 = scmp.ge.s32.totalorder %s12, 8
      %s24 = sphi 0, %s26
      %s27 = sphi 0, %s24
      %s28 = sphi 0, %s27
      %s44 = sphi 0, %s28
      %s52 = sphi 0, %s54
      %s55 = sphi 0, %s52
      %s56 = sphi 0, %s55
      %s72 = sphi 0, %s56
    $region4: #{custom-call.5} parent=1 // loop_header_branch
      %15 = sbr.rel (%p13) target = $region8
    $region5: #{custom-call.5} parent=1 // loop_body
      %s17 = ssub.s32 %s12, 1
      %s18 = ssub.s32 %s12, 2
      %s19 = sadd.s32 %s12, 1
      %s20 = sshrl.u32 %s12, 3
      %s21 = sshrl.u32 %s19, 3
      %s22 = ssub.s32 %s20, %s21
      %p23 = scmp.eq.s32.totalorder %s22, 0
      %s25 = sadd.s32 %s24, 1
      %s26 = scalar_select %p23, %s24, %s25
      %p29 = pneg %p23
      %p30 = scmp.eq.s32.totalorder %s12, 5
      %p31 = por %p29, %p30
      %p32 = scmp.ne.s32.totalorder %s24, %s27
      %p33 = scmp.eq.s32.totalorder %s12, 0
      %p34 = por %p32, %p33
      %p35 = scmp.ne.s32.totalorder %s24, %s27
      %p36 = scmp.eq.s32.totalorder %s17, 5
      %p37 = por %p35, %p36
      %p38 = scmp.ne.s32.totalorder %s27, %s28
      %p39 = scmp.eq.s32.totalorder %s17, 0
      %p40 = por %p38, %p39
      %p41 = scmp.ne.s32.totalorder %s27, %s28
      %p42 = scmp.eq.s32.totalorder %s18, 5
      %p43 = por %p41, %p42
      %p45 = scmp.ne.s32.totalorder %s28, %s44
      %p46 = scmp.eq.s32.totalorder %s18, 0
      %p47 = por %p45, %p46
      %s48 = sshrl.u32 %s12, 3
      %s49 = sshrl.u32 %s19, 3
      %s50 = ssub.s32 %s48, %s49
      %p51 = scmp.eq.s32.totalorder %s50, 0
      %s53 = sadd.s32 %s52, 1
      %s54 = scalar_select %p51, %s52, %s53
      %p57 = pneg %p51
      %p58 = scmp.eq.s32.totalorder %s12, 5
      %p59 = por %p57, %p58
      %p60 = scmp.ne.s32.totalorder %s52, %s55
      %p61 = scmp.eq.s32.totalorder %s12, 0
      %p62 = por %p60, %p61
      %p63 = scmp.ne.s32.totalorder %s52, %s55
      %p64 = scmp.eq.s32.totalorder %s17, 5
      %p65 = por %p63, %p64
      %p66 = scmp.ne.s32.totalorder %s55, %s56
      %p67 = scmp.eq.s32.totalorder %s17, 0
      %p68 = por %p66, %p67
      %p69 = scmp.ne.s32.totalorder %s55, %s56
      %p70 = scmp.eq.s32.totalorder %s18, 5
      %p71 = por %p69, %p70
      %p73 = scmp.ne.s32.totalorder %s56, %s72
      %p74 = scmp.eq.s32.totalorder %s18, 0
      %p75 = por %p73, %p74
      %p76 = scmp.le.s32.totalorder 1, %s12
      %p77 = scmp.lt.s32.totalorder %s12, 7
      %p78 = pnand %p76, %p77
      %p79 = pneg %p78
      // Predicated region
      $region9: #{custom-call.5} parent=5 // pred_check
        _
      $region10: #{custom-call.5} parent=5 // pred_check_branch
        %81 = sbr.rel (%p78) target = $region12
      $region11: #{custom-call.5} parent=5 // pred_region
        %s82 = ssub.s32 %s12, 1
      $region12: #{custom-call.5} parent=5 // pred_fallthru
        _
      %p83 = scmp.lt.s32.totalorder %s12, 6
      // Predicated region
      $region13: #{custom-call.5} parent=5 // pred_check
        %p84 = pneg %p83
      $region14: #{custom-call.5} parent=5 // pred_check_branch
        %86 = sbr.rel (%p84) target = $region16
      $region15: #{custom-call.5} parent=5 // pred_region
        %s87 = sand.u32 %s12, 1
        %s88 = sand.u32 %s12, 1
        %s89 = smul.addr %s88, 8
        %s90 = scalar_lea.vmem [#allocation0], %s89
        %s91 = smul.addr %s12, 8
        %s92 = scalar_lea.vmem %s0, %s91
        // Predicated region
        $region17: #{custom-call.5} parent=15 // pred_check
          _
        $region18: #{custom-call.5} parent=15 // pred_check_branch
          %94 = sbr.rel (0) target = $region20
        $region19: #{custom-call.5} parent=15 // pred_region
          // Predicated region
          $region21: #{custom-call.5} parent=19 // pred_check
            _
          $region22: #{custom-call.5} parent=19 // pred_check_branch
            %96 = sbr.rel (0) target = $region24
          $region23: #{custom-call.5} parent=19 // pred_region
            // Predicated region
            $region36: #{custom-call.5} parent=23 // pred_check
              _
            $region37: #{custom-call.5} parent=23 // pred_check_branch
              %112 = sbr.rel (0) target = $region39
            $region38: #{custom-call.5} parent=23 // pred_region
              loop: start=0, step=1, limit=1
              $region40: #{custom-call.5} parent=38 // loop_pre_header
                _
              $region41: #{custom-call.5} parent=38 // loop_header
                %s114 = sphi 0, %s118
                %p115 = scmp.ge.s32.totalorder %s114, 1
                %s119 = sphi %s92, %s92
                %s120 = sphi %s90, %s90
              $region42: #{custom-call.5} parent=38 // loop_header_branch
                %117 = sbr.rel (%p115) target = $region46
              $region43: #{custom-call.5} parent=38 // loop_body
                %v121 = vld [vmem:[%s119] sm:$0xff]
                %122 = vst [vmem:[%s120] sm:$0xff] %v121
              $region44: #{custom-call.5} parent=38 // loop_footer
                %s118 = sadd.s32 1, %s114
              $region45: #{custom-call.5} parent=38 // loop_footer_branch
                %113 = sbr.rel target = $region41
              $region46: #{custom-call.5} parent=38 // loop_exit
                _
            $region39: #{custom-call.5} parent=23 // pred_fallthru
              _
            // Predicated region
            $region47: #{custom-call.5} parent=23 // pred_check
              _
            $region48: #{custom-call.5} parent=23 // pred_check_branch
              %124 = sbr.rel target = $region50
            $region49: #{custom-call.5} parent=23 // pred_region
              _
            $region50: #{custom-call.5} parent=23 // pred_fallthru
              _
          $region24: #{custom-call.5} parent=19 // pred_fallthru
            _
          // Predicated region
          $region25: #{custom-call.5} parent=19 // pred_check
            _
          $region26: #{custom-call.5} parent=19 // pred_check_branch
            %98 = sbr.rel target = $region28
          $region27: #{custom-call.5} parent=19 // pred_region
            %s100 = ssub.s32 256, 1
            loop: start=0, step=1, limit=1
            $region29: #{custom-call.5} parent=27 // loop_pre_header
              _
            $region30: #{custom-call.5} parent=27 // loop_header
              %s102 = sphi 0, %s106
              %p103 = scmp.ge.s32.totalorder %s102, 1
              %s107 = sphi %s92, %s92
              %s108 = sphi %s90, %s90
            $region31: #{custom-call.5} parent=27 // loop_header_branch
              %105 = sbr.rel (%p103) target = $region35
            $region32: #{custom-call.5} parent=27 // loop_body
              %v109 = vld [vmem:[%s107] sm:%s100]
              %110 = vst [vmem:[%s108] sm:%s100] %v109
            $region33: #{custom-call.5} parent=27 // loop_footer
              %s106 = sadd.s32 1, %s102
            $region34: #{custom-call.5} parent=27 // loop_footer_branch
              %101 = sbr.rel target = $region30
            $region35: #{custom-call.5} parent=27 // loop_exit
              _
          $region28: #{custom-call.5} parent=19 // pred_fallthru
            _
        $region20: #{custom-call.5} parent=15 // pred_fallthru
          _
        %125 = vnop
        %s126 = sand.u32 %s12, 1
        %s127 = sand.u32 %s12, 1
        %s128 = smul.addr %s127, 8
        %s129 = scalar_lea.vmem [#allocation1], %s128
        %s130 = smul.addr %s12, 8
        %s131 = scalar_lea.vmem %s1, %s130
        // Predicated region
        $region51: #{custom-call.5} parent=15 // pred_check
          _
        $region52: #{custom-call.5} parent=15 // pred_check_branch
          %133 = sbr.rel (0) target = $region54
        $region53: #{custom-call.5} parent=15 // pred_region
          // Predicated region
          $region55: #{custom-call.5} parent=53 // pred_check
            _
          $region56: #{custom-call.5} parent=53 // pred_check_branch
            %135 = sbr.rel (0) target = $region58
          $region57: #{custom-call.5} parent=53 // pred_region
            // Predicated region
            $region70: #{custom-call.5} parent=57 // pred_check
              _
            $region71: #{custom-call.5} parent=57 // pred_check_branch
              %151 = sbr.rel (0) target = $region73
            $region72: #{custom-call.5} parent=57 // pred_region
              loop: start=0, step=1, limit=1
              $region74: #{custom-call.5} parent=72 // loop_pre_header
                _
              $region75: #{custom-call.5} parent=72 // loop_header
                %s153 = sphi 0, %s157
                %p154 = scmp.ge.s32.totalorder %s153, 1
                %s158 = sphi %s131, %s131
                %s159 = sphi %s129, %s129
              $region76: #{custom-call.5} parent=72 // loop_header_branch
                %156 = sbr.rel (%p154) target = $region80
              $region77: #{custom-call.5} parent=72 // loop_body
                %v160 = vld [vmem:[%s158] sm:$0xff]
                %161 = vst [vmem:[%s159] sm:$0xff] %v160
              $region78: #{custom-call.5} parent=72 // loop_footer
                %s157 = sadd.s32 1, %s153
              $region79: #{custom-call.5} parent=72 // loop_footer_branch
                %152 = sbr.rel target = $region75
              $region80: #{custom-call.5} parent=72 // loop_exit
                _
            $region73: #{custom-call.5} parent=57 // pred_fallthru
              _
            // Predicated region
            $region81: #{custom-call.5} parent=57 // pred_check
              _
            $region82: #{custom-call.5} parent=57 // pred_check_branch
              %163 = sbr.rel target = $region84
            $region83: #{custom-call.5} parent=57 // pred_region
              _
            $region84: #{custom-call.5} parent=57 // pred_fallthru
              _
          $region58: #{custom-call.5} parent=53 // pred_fallthru
            _
          // Predicated region
          $region59: #{custom-call.5} parent=53 // pred_check
            _
          $region60: #{custom-call.5} parent=53 // pred_check_branch
            %137 = sbr.rel target = $region62
          $region61: #{custom-call.5} parent=53 // pred_region
            %s139 = ssub.s32 256, 1
            loop: start=0, step=1, limit=1
            $region63: #{custom-call.5} parent=61 // loop_pre_header
              _
            $region64: #{custom-call.5} parent=61 // loop_header
              %s141 = sphi 0, %s145
              %p142 = scmp.ge.s32.totalorder %s141, 1
              %s146 = sphi %s131, %s131
              %s147 = sphi %s129, %s129
            $region65: #{custom-call.5} parent=61 // loop_header_branch
              %144 = sbr.rel (%p142) target = $region69
            $region66: #{custom-call.5} parent=61 // loop_body
              %v148 = vld [vmem:[%s146] sm:%s139]
              %149 = vst [vmem:[%s147] sm:%s139] %v148
            $region67: #{custom-call.5} parent=61 // loop_footer
              %s145 = sadd.s32 1, %s141
            $region68: #{custom-call.5} parent=61 // loop_footer_branch
              %140 = sbr.rel target = $region64
            $region69: #{custom-call.5} parent=61 // loop_exit
              _
          $region62: #{custom-call.5} parent=53 // pred_fallthru
            _
        $region54: #{custom-call.5} parent=15 // pred_fallthru
          _
        %164 = vnop
        %s165 = sand.u32 %s12, 1
        %s166 = sand.u32 %s12, 1
        %s167 = smul.addr %s166, 8
        %s168 = scalar_lea.vmem [#allocation2], %s167
        %s169 = smul.addr %s12, 8
        %s170 = scalar_lea.vmem %s2, %s169
        // Predicated region
        $region85: #{custom-call.5} parent=15 // pred_check
          _
        $region86: #{custom-call.5} parent=15 // pred_check_branch
          %172 = sbr.rel (0) target = $region88
        $region87: #{custom-call.5} parent=15 // pred_region
          // Predicated region
          $region89: #{custom-call.5} parent=87 // pred_check
            _
          $region90: #{custom-call.5} parent=87 // pred_check_branch
            %174 = sbr.rel (0) target = $region92
          $region91: #{custom-call.5} parent=87 // pred_region
            // Predicated region
            $region104: #{custom-call.5} parent=91 // pred_check
              _
            $region105: #{custom-call.5} parent=91 // pred_check_branch
              %190 = sbr.rel (0) target = $region107
            $region106: #{custom-call.5} parent=91 // pred_region
              loop: start=0, step=1, limit=1
              $region108: #{custom-call.5} parent=106 // loop_pre_header
                _
              $region109: #{custom-call.5} parent=106 // loop_header
                %s192 = sphi 0, %s196
                %p193 = scmp.ge.s32.totalorder %s192, 1
                %s197 = sphi %s170, %s170
                %s198 = sphi %s168, %s168
              $region110: #{custom-call.5} parent=106 // loop_header_branch
                %195 = sbr.rel (%p193) target = $region114
              $region111: #{custom-call.5} parent=106 // loop_body
                %v199 = vld [vmem:[%s197] sm:$0xff]
                %200 = vst [vmem:[%s198] sm:$0xff] %v199
              $region112: #{custom-call.5} parent=106 // loop_footer
                %s196 = sadd.s32 1, %s192
              $region113: #{custom-call.5} parent=106 // loop_footer_branch
                %191 = sbr.rel target = $region109
              $region114: #{custom-call.5} parent=106 // loop_exit
                _
            $region107: #{custom-call.5} parent=91 // pred_fallthru
              _
            // Predicated region
            $region115: #{custom-call.5} parent=91 // pred_check
              _
            $region116: #{custom-call.5} parent=91 // pred_check_branch
              %202 = sbr.rel target = $region118
            $region117: #{custom-call.5} parent=91 // pred_region
              _
            $region118: #{custom-call.5} parent=91 // pred_fallthru
              _
          $region92: #{custom-call.5} parent=87 // pred_fallthru
            _
          // Predicated region
          $region93: #{custom-call.5} parent=87 // pred_check
            _
          $region94: #{custom-call.5} parent=87 // pred_check_branch
            %176 = sbr.rel target = $region96
          $region95: #{custom-call.5} parent=87 // pred_region
            %s178 = ssub.s32 256, 1
            loop: start=0, step=1, limit=1
            $region97: #{custom-call.5} parent=95 // loop_pre_header
              _
            $region98: #{custom-call.5} parent=95 // loop_header
              %s180 = sphi 0, %s184
              %p181 = scmp.ge.s32.totalorder %s180, 1
              %s185 = sphi %s170, %s170
              %s186 = sphi %s168, %s168
            $region99: #{custom-call.5} parent=95 // loop_header_branch
              %183 = sbr.rel (%p181) target = $region103
            $region100: #{custom-call.5} parent=95 // loop_body
              %v187 = vld [vmem:[%s185] sm:%s178]
              %188 = vst [vmem:[%s186] sm:%s178] %v187
            $region101: #{custom-call.5} parent=95 // loop_footer
              %s184 = sadd.s32 1, %s180
            $region102: #{custom-call.5} parent=95 // loop_footer_branch
              %179 = sbr.rel target = $region98
            $region103: #{custom-call.5} parent=95 // loop_exit
              _
          $region96: #{custom-call.5} parent=87 // pred_fallthru
            _
        $region88: #{custom-call.5} parent=15 // pred_fallthru
          _
        %203 = vnop
        %s204 = sand.u32 %s12, 1
        %s205 = sand.u32 %s12, 1
        %s206 = smul.addr %s205, 8
        %s207 = scalar_lea.vmem [#allocation3], %s206
        %s208 = smul.addr %s12, 8
        %s209 = scalar_lea.vmem %s3, %s208
        // Predicated region
        $region119: #{custom-call.5} parent=15 // pred_check
          _
        $region120: #{custom-call.5} parent=15 // pred_check_branch
          %211 = sbr.rel (0) target = $region122
        $region121: #{custom-call.5} parent=15 // pred_region
          // Predicated region
          $region123: #{custom-call.5} parent=121 // pred_check
            _
          $region124: #{custom-call.5} parent=121 // pred_check_branch
            %213 = sbr.rel (0) target = $region126
          $region125: #{custom-call.5} parent=121 // pred_region
            // Predicated region
            $region138: #{custom-call.5} parent=125 // pred_check
              _
            $region139: #{custom-call.5} parent=125 // pred_check_branch
              %229 = sbr.rel (0) target = $region141
            $region140: #{custom-call.5} parent=125 // pred_region
              loop: start=0, step=1, limit=1
              $region142: #{custom-call.5} parent=140 // loop_pre_header
                _
              $region143: #{custom-call.5} parent=140 // loop_header
                %s231 = sphi 0, %s235
                %p232 = scmp.ge.s32.totalorder %s231, 1
                %s236 = sphi %s209, %s209
                %s237 = sphi %s207, %s207
              $region144: #{custom-call.5} parent=140 // loop_header_branch
                %234 = sbr.rel (%p232) target = $region148
              $region145: #{custom-call.5} parent=140 // loop_body
                %v238 = vld [vmem:[%s236] sm:$0xff]
                %239 = vst [vmem:[%s237] sm:$0xff] %v238
              $region146: #{custom-call.5} parent=140 // loop_footer
                %s235 = sadd.s32 1, %s231
              $region147: #{custom-call.5} parent=140 // loop_footer_branch
                %230 = sbr.rel target = $region143
              $region148: #{custom-call.5} parent=140 // loop_exit
                _
            $region141: #{custom-call.5} parent=125 // pred_fallthru
              _
            // Predicated region
            $region149: #{custom-call.5} parent=125 // pred_check
              _
            $region150: #{custom-call.5} parent=125 // pred_check_branch
              %241 = sbr.rel target = $region152
            $region151: #{custom-call.5} parent=125 // pred_region
              _
            $region152: #{custom-call.5} parent=125 // pred_fallthru
              _
          $region126: #{custom-call.5} parent=121 // pred_fallthru
            _
          // Predicated region
          $region127: #{custom-call.5} parent=121 // pred_check
            _
          $region128: #{custom-call.5} parent=121 // pred_check_branch
            %215 = sbr.rel target = $region130
          $region129: #{custom-call.5} parent=121 // pred_region
            %s217 = ssub.s32 256, 1
            loop: start=0, step=1, limit=1
            $region131: #{custom-call.5} parent=129 // loop_pre_header
              _
            $region132: #{custom-call.5} parent=129 // loop_header
              %s219 = sphi 0, %s223
              %p220 = scmp.ge.s32.totalorder %s219, 1
              %s224 = sphi %s209, %s209
              %s225 = sphi %s207, %s207
            $region133: #{custom-call.5} parent=129 // loop_header_branch
              %222 = sbr.rel (%p220) target = $region137
            $region134: #{custom-call.5} parent=129 // loop_body
              %v226 = vld [vmem:[%s224] sm:%s217]
              %227 = vst [vmem:[%s225] sm:%s217] %v226
            $region135: #{custom-call.5} parent=129 // loop_footer
              %s223 = sadd.s32 1, %s219
            $region136: #{custom-call.5} parent=129 // loop_footer_branch
              %218 = sbr.rel target = $region132
            $region137: #{custom-call.5} parent=129 // loop_exit
              _
          $region130: #{custom-call.5} parent=121 // pred_fallthru
            _
        $region122: #{custom-call.5} parent=15 // pred_fallthru
          _
        %242 = vnop
      $region16: #{custom-call.5} parent=5 // pred_fallthru
        _
      %p243 = scmp.le.s32.totalorder 1, %s12
      %p244 = scmp.lt.s32.totalorder %s12, 7
      %p245 = pnand %p243, %p244
      %p246 = pneg %p245
      // Predicated region
      $region153: #{custom-call.5} parent=5 // pred_check
        _
      $region154: #{custom-call.5} parent=5 // pred_check_branch
        %248 = sbr.rel (%p245) target = $region156
      $region155: #{custom-call.5} parent=5 // pred_region
        #allocation10 [shape = 'f32[6,6]{1,0}', space=vmem, size = 0x1000, scoped, tag = 'a top-left matrix']
        #allocation11 [shape = 'f32[6,6]{1,0}', space=vmem, size = 0x1000, scoped, tag = 'a top-right matrix']
        #allocation12 [shape = 'f32[6,6]{1,0}', space=vmem, size = 0x1000, scoped, tag = 'a bottom-left matrix']
        #allocation13 [shape = 'f32[6,6]{1,0}', space=vmem, size = 0x1000, scoped, tag = 'a bottom-right matrix']
        %s249 = ssub.s32 %s12, 1
        %s250 = sand.u32 %s17, 1
        %s251 = sand.u32 %s17, 1
        %s252 = smul.addr %s251, 8
        %s253 = scalar_lea.vmem [#allocation0], %s252
        %s254 = sand.u32 %s17, 1
        %s255 = sand.u32 %s17, 1
        %s256 = smul.addr %s255, 8
        %s257 = scalar_lea.vmem [#allocation1], %s256
        %s258 = sand.u32 %s17, 1
        %s259 = sand.u32 %s17, 1
        %s260 = smul.addr %s259, 8
        %s261 = scalar_lea.vmem [#allocation2], %s260
        %s262 = sand.u32 %s17, 1
        %s263 = sand.u32 %s17, 1
        %s264 = smul.addr %s263, 8
        %s265 = scalar_lea.vmem [#allocation3], %s264
        %s266 = sand.u32 %s17, 1
        %s267 = sand.u32 %s17, 1
        %s268 = smul.addr %s267, 8
        %s269 = scalar_lea.vmem [#allocation0], %s268
        %s270 = sand.u32 %s17, 1
        %s271 = sand.u32 %s17, 1
        %s272 = smul.addr %s271, 8
        %s273 = scalar_lea.vmem [#allocation1], %s272
        %s274 = sand.u32 %s17, 1
        %s275 = sand.u32 %s17, 1
        %s276 = smul.addr %s275, 8
        %s277 = scalar_lea.vmem [#allocation2], %s276
        %s278 = sand.u32 %s17, 1
        %s279 = sand.u32 %s17, 1
        %s280 = smul.addr %s279, 8
        %s281 = scalar_lea.vmem [#allocation3], %s280
        %p282 = pneg %p40
        %p283 = pneg %p37
        %s284 = sand.u32 %s27, 1
        %s285 = sand.u32 %s27, 1
        %s286 = smul.addr %s285, 8
        %s287 = scalar_lea.vmem [#allocation4], %s286
        %p288 = pneg %p68
        %p289 = pneg %p65
        %s290 = sand.u32 %s55, 1
        %s291 = sand.u32 %s55, 1
        %s292 = smul.addr %s291, 8
        %s293 = scalar_lea.vmem [#allocation5], %s292
        %s294 = sand.u32 %s17, 1
        %s295 = sand.u32 %s17, 1
        %s296 = smul.addr %s295, 8
        %s297 = scalar_lea.vmem [#allocation6], %s296
        %s298 = sand.u32 %s17, 1
        %s299 = sand.u32 %s17, 1
        %s300 = smul.addr %s299, 8
        %s301 = scalar_lea.vmem [#allocation7], %s300
        %s302 = sand.u32 %s17, 1
        %s303 = sand.u32 %s17, 1
        %s304 = smul.addr %s303, 8
        %s305 = scalar_lea.vmem [#allocation8], %s304
        %s306 = sand.u32 %s17, 1
        %s307 = sand.u32 %s17, 1
        %s308 = smul.addr %s307, 8
        %s309 = scalar_lea.vmem [#allocation9], %s308
        %s310 = sshrl.u32 %s17, 3
        %s311 = sshrl.u32 %s17, 3
        %s312 = smov [#allocation10]
        %v313 = vld [vmem:[%s253] sm:$0xff]
        %314 = vst [vmem:[%s312] sm:$0xff] %v313
        %s315 = smov [#allocation11]
        %v316 = vld [vmem:[%s257] sm:$0xff]
        %317 = vst [vmem:[%s315] sm:$0xff] %v316
        %s318 = smov [#allocation12]
        %v319 = vld [vmem:[%s261] sm:$0xff]
        %320 = vst [vmem:[%s318] sm:$0xff] %v319
        %s321 = smov [#allocation13]
        %v322 = vld [vmem:[%s265] sm:$0xff]
        %323 = vst [vmem:[%s321] sm:$0xff] %v322
        %324 = vst [vmem:[%s297] sm:$0xff] 0.0
        %325 = vst [vmem:[%s301] sm:$0xff] 0.0
        %326 = vst [vmem:[%s305] sm:$0xff] 0.0
        %327 = vst [vmem:[%s309] sm:$0xff] 0.0
        %s328 = smov %s297
        %v329 = vlaneseq
        %v330 = vand.u32 %v329, 127
        %v331 = vmov %v330
        %v332 = vlaneseq
        %v333 = vshrl.u32 %v332, 7
        %v334 = vmov %v333
        %v335 = vld [vmem:[%s328] sm:$0x3f]
        %vm338 = vcmp.eq.s32.totalorder %v334, %v331
        %v339 = vsel %vm338, 1.0, %v335
        %340 = vst [vmem:[%s328] sm:$0x3f] %v339
        %s341 = smov %s309
        %v342 = vlaneseq
        %v343 = vand.u32 %v342, 127
        %v344 = vmov %v343
        %v345 = vlaneseq
        %v346 = vshrl.u32 %v345, 7
        %v347 = vmov %v346
        %v348 = vld [vmem:[%s341] sm:$0x3f]
        %vm351 = vcmp.eq.s32.totalorder %v347, %v344
        %v352 = vsel %vm351, 1.0, %v348
        %353 = vst [vmem:[%s341] sm:$0x3f] %v352
        // While loop
        $region157: #{custom-call.5} parent=155 // loop_pre_header
          _
        $region158: #{custom-call.5} parent=155 // loop_header
          %s355 = sphi 0, %s937
          %v356 = vlaneseq
          %v357 = vand.u32 %v356, 127
          %v358 = vmov %v357
          %v359 = vlaneseq
          %v360 = vshrl.u32 %v359, 7
          %v361 = vmov %v360
          %s362 = smov [#allocation10]
          %v363 = vlaneseq
          %v364 = vand.u32 %v363, 127
          %vm365 = vcmp.ge.s32.totalorder %v364, 0
          %vm366 = vcmp.lt.s32.totalorder %v364, 6
          %vm367 = vmand %vm365, %vm366
          %v368 = vld [vmem:[%s362] sm:$0x3f]
          %v369 = vsel %vm367, %v368, 0.0
          %v370 = vmul.f32 %v369, %v369
          %vm373 = vcmp.eq.s32.totalorder %v361, %v358
          %v374 = vsel %vm373, 0.0, %v370
          %v375 = vlaneseq
          %v376 = vand.u32 %v375, 127
          %v377 = vmov %v376
          %v378 = vlaneseq
          %v379 = vshrl.u32 %v378, 7
          %v380 = vmov %v379
          %s381 = smov [#allocation11]
          %v382 = vlaneseq
          %v383 = vand.u32 %v382, 127
          %vm384 = vcmp.ge.s32.totalorder %v383, 0
          %vm385 = vcmp.lt.s32.totalorder %v383, 6
          %vm386 = vmand %vm384, %vm385
          %v387 = vld [vmem:[%s381] sm:$0x3f]
          %v388 = vsel %vm386, %v387, 0.0
          %v389 = vmul.f32 %v388, %v388
          %v390 = vadd.f32 %v374, %v389
          %v391 = vadd.f32 %v370, %v389
          %v392 = vlaneseq
          %v393 = vand.u32 %v392, 127
          %v394 = vmov %v393
          %v395 = vlaneseq
          %v396 = vshrl.u32 %v395, 7
          %v397 = vmov %v396
          %s398 = smov [#allocation12]
          %v399 = vlaneseq
          %v400 = vand.u32 %v399, 127
          %vm401 = vcmp.ge.s32.totalorder %v400, 0
          %vm402 = vcmp.lt.s32.totalorder %v400, 6
          %vm403 = vmand %vm401, %vm402
          %v404 = vld [vmem:[%s398] sm:$0x3f]
          %v405 = vsel %vm403, %v404, 0.0
          %v406 = vmul.f32 %v405, %v405
          %v407 = vadd.f32 %v390, %v406
          %v408 = vadd.f32 %v391, %v406
          %v409 = vlaneseq
          %v410 = vand.u32 %v409, 127
          %v411 = vmov %v410
          %v412 = vlaneseq
          %v413 = vshrl.u32 %v412, 7
          %v414 = vmov %v413
          %s415 = smov [#allocation13]
          %v416 = vlaneseq
          %v417 = vand.u32 %v416, 127
          %vm418 = vcmp.ge.s32.totalorder %v417, 0
          %vm419 = vcmp.lt.s32.totalorder %v417, 6
          %vm420 = vmand %vm418, %vm419
          %v421 = vld [vmem:[%s415] sm:$0x3f]
          %v422 = vsel %vm420, %v421, 0.0
          %v423 = vmul.f32 %v422, %v422
          %vm426 = vcmp.eq.s32.totalorder %v414, %v411
          %v427 = vsel %vm426, 0.0, %v423
          %v428 = vadd.f32 %v407, %v427
          %v429 = vadd.f32 %v408, %v423
          %430 = vadd.xlane.f32.xlu0 %v429
          %v431 = vpop.xlane.xlu0 %430
          %v432 = vrot.slane %v431, 4
          %v433 = vadd.f32 %v431, %v432
          %v434 = vrot.slane %v433, 2
          %v435 = vadd.f32 %v433, %v434
          %v436 = vrot.slane %v435, 1
          %v437 = vadd.f32 %v435, %v436
          %438 = vadd.xlane.f32.xlu0 %v428
          %v439 = vpop.xlane.xlu0 %438
          %v440 = vrot.slane %v439, 4
          %v441 = vadd.f32 %v439, %v440
          %v442 = vrot.slane %v441, 2
          %v443 = vadd.f32 %v441, %v442
          %v444 = vrot.slane %v443, 1
          %v445 = vadd.f32 %v443, %v444
          %s446 = vtos %v445
          %s447 = vtos %v437
          %s448 = smul.f32 1e-10, %s447
          %p449 = scmp.le.f32.partialorder %s446, %s448
          %p450 = scmp.ge.s32.totalorder %s355, 15
          %p451 = por %p449, %p450
        $region159: #{custom-call.5} parent=155 // loop_header_branch
          %939 = sbr.rel (%p451) target = $region163
        $region160: #{custom-call.5} parent=155 // loop_body
          loop: start=0, step=1, limit=11
          $region164: #{custom-call.5} parent=160 // loop_pre_header
            _
          $region165: #{custom-call.5} parent=160 // loop_header
            %s453 = sphi 0, %s457
            %p454 = scmp.ge.s32.totalorder %s453, 11
          $region166: #{custom-call.5} parent=160 // loop_header_branch
            %456 = sbr.rel (%p454) target = $region170
          $region167: #{custom-call.5} parent=160 // loop_body
            #allocation14 [shape = 'f32[1024]{0}', space=vmem, size = 0x1000, scoped, tag = 'a_tl_diag vmem']
            #allocation15 [shape = 'f32[1024]{0}', space=vmem, size = 0x1000, scoped, tag = 'a_tr_diag vmem']
            #allocation16 [shape = 'f32[1024]{0}', space=vmem, size = 0x1000, scoped, tag = 'a_br_diag vmem']
            #allocation17 [shape = 'f32[1024]{0}', space=vmem, size = 0x1000, scoped, tag = 'rt1 vmem']
            #allocation18 [shape = 'f32[1024]{0}', space=vmem, size = 0x1000, scoped, tag = 'rt2 vmem']
            #allocation19 [shape = 'f32[1024]{0}', space=vmem, size = 0x1000, scoped, tag = 'c vmem']
            #allocation20 [shape = 'f32[1024]{0}', space=vmem, size = 0x1000, scoped, tag = 's vmem']
            #allocation21 [shape = 'f32[4096]{0}', space=vmem, size = 0x4000, scoped, tag = 'c broadcast']
            #allocation22 [shape = 'f32[4096]{0}', space=vmem, size = 0x4000, scoped, tag = 's broadcast']
            %s458 = smov [#allocation10]
            %s459 = smov [#allocation14]
            %v460 = vlaneseq
            %v461 = vand.u32 %v460, 127
            %v462 = vmov %v461
            %v463 = vlaneseq
            %v464 = vshrl.u32 %v463, 7
            %v465 = vmov %v464
            %v466 = vld [vmem:[%s458] sm:$0x3f]
            %vm469 = vcmp.eq.s32.totalorder %v465, %v462
            %v470 = vsel %vm469, %v466, 0.0
            %v471 = vrot.slane %v470, 4
            %v472 = vadd.f32 %v470, %v471
            %v473 = vrot.slane %v472, 2
            %v474 = vadd.f32 %v472, %v473
            %v475 = vrot.slane %v474, 1
            %v476 = vadd.f32 %v474, %v475
            %477 = vst [vmem:[%s459] sm:$0x1] %v476
            %s478 = smov [#allocation11]
            %s479 = smov [#allocation15]
            %v480 = vlaneseq
            %v481 = vand.u32 %v480, 127
            %v482 = vmov %v481
            %v483 = vlaneseq
            %v484 = vshrl.u32 %v483, 7
            %v485 = vmov %v484
            %v486 = vld [vmem:[%s478] sm:$0x3f]
            %vm489 = vcmp.eq.s32.totalorder %v485, %v482
            %v490 = vsel %vm489, %v486, 0.0
            %v491 = vrot.slane %v490, 4
            %v492 = vadd.f32 %v490, %v491
            %v493 = vrot.slane %v492, 2
            %v494 = vadd.f32 %v492, %v493
            %v495 = vrot.slane %v494, 1
            %v496 = vadd.f32 %v494, %v495
            %497 = vst [vmem:[%s479] sm:$0x1] %v496
            %s498 = smov [#allocation13]
            %s499 = smov [#allocation16]
            %v500 = vlaneseq
            %v501 = vand.u32 %v500, 127
            %v502 = vmov %v501
            %v503 = vlaneseq
            %v504 = vshrl.u32 %v503, 7
            %v505 = vmov %v504
            %v506 = vld [vmem:[%s498] sm:$0x3f]
            %vm509 = vcmp.eq.s32.totalorder %v505, %v502
            %v510 = vsel %vm509, %v506, 0.0
            %v511 = vrot.slane %v510, 4
            %v512 = vadd.f32 %v510, %v511
            %v513 = vrot.slane %v512, 2
            %v514 = vadd.f32 %v512, %v513
            %v515 = vrot.slane %v514, 1
            %v516 = vadd.f32 %v514, %v515
            %517 = vst [vmem:[%s499] sm:$0x1] %v516
            %s518 = smov [#allocation19]
            %s519 = smov [#allocation20]
            %s520 = smov [#allocation14]
            %v521 = vld [vmem:[%s520] sm:$0xff]
            %s522 = smov [#allocation15]
            %v523 = vld [vmem:[%s522] sm:$0xff]
            %s524 = smov [#allocation16]
            %v525 = vld [vmem:[%s524] sm:$0xff]
            %v526 = vsub.f32 %v525, %v521
            %v527 = vmul.f32 2.0, %v523
            %v528 = vrcp.pop %v527
            %v529 = vmul.f32 %v527, %v528
            %v530 = vsub.f32 1.0, %v529
            %v531 = vmul.f32 %v528, %v530
            %v532 = vadd.f32 %v528, %v531
            %vm533 = vweird.f32 %v527
            %vm534 = vweird.f32 %v528
            %vm535 = vmor %vm533, %vm534
            %v536 = vsel %vm535, %v528, %v532
            %v537 = vand.u32 2147483647, %v527
            %vm538 = vcmp.eq.f32.partialorder %v537, 8.507059e+37
            %v539 = vand.u32 %v527, 2147483648
            %v540 = vor.u32 1.1754944e-38, %v539
            %v541 = vsel %vm538, %v540, %v536
            %v542 = vmul.f32 %v526, %v541
            %vm543 = vcmp.ge.f32.partialorder %v542, 0.0
            %v544 = vmul.f32 %v542, %v542
            %v545 = vadd.f32 1.0, %v544
            %v546 = vrsqrt.pop %v545
            %v547 = vmul.f32 %v546, %v545
            %v548 = vmul.f32 %v547, %v546
            %v549 = vmul.f32 0.5, %v548
            %v550 = vsub.f32 1.5, %v549
            %v551 = vmul.f32 %v546, %v550
            %v552 = vmul.f32 %v545, %v551
            %vm553 = vcmp.eq.f32.partialorder %v545, inf
            %v554 = vsel %vm553, %v545, %v552
            %vm555 = vcmp.eq.f32.partialorder %v545, 0.0
            %v556 = vand.u32 %v545, 2147483648
            %v557 = vsel %vm555, %v556, %v554
            %v558 = vxor.u32 %v557, 2147483648
            %v559 = vsel %vm543, %v557, %v558
            %v560 = vadd.f32 %v542, %v559
            %v561 = vrcp.pop %v560
            %v562 = vmul.f32 %v560, %v561
            %v563 = vsub.f32 1.0, %v562
            %v564 = vmul.f32 %v561, %v563
            %v565 = vadd.f32 %v561, %v564
            %vm566 = vweird.f32 %v560
            %vm567 = vweird.f32 %v561
            %vm568 = vmor %vm566, %vm567
            %v569 = vsel %vm568, %v561, %v565
            %v570 = vand.u32 2147483647, %v560
            %vm571 = vcmp.eq.f32.partialorder %v570, 8.507059e+37
            %v572 = vand.u32 %v560, 2147483648
            %v573 = vor.u32 1.1754944e-38, %v572
            %v574 = vsel %vm571, %v573, %v569
            %v575 = vand.u32 2147483647, %v521
            %v576 = vand.u32 2147483647, %v523
            %v577 = vand.u32 2147483647, %v525
            %v578 = vmin.f32 %v575, %v577
            %v579 = vmul.f32 1.1920929e-08, %v578
            %vm580 = vcmp.le.f32.partialorder %v576, %v579
            %v581 = vsel %vm580, 0.0, %v574
            %v582 = vmul.f32 %v581, %v581
            %v583 = vadd.f32 1.0, %v582
            %v584 = vrsqrt.pop %v583
            %v585 = vmul.f32 %v584, %v583
            %v586 = vmul.f32 %v585, %v584
            %v587 = vmul.f32 0.5, %v586
            %v588 = vsub.f32 1.5, %v587
            %v589 = vmul.f32 %v584, %v588
            %vm590 = vweird.f32 %v583
            %vm591 = vweird.f32 %v584
            %vm592 = vmor %vm590, %vm591
            %v593 = vsel %vm592, %v584, %v589
            %v594 = vmul.f32 %v581, %v593
            %v595 = vmul.f32 %v581, %v523
            %v596 = vsub.f32 %v521, %v595
            %v597 = vmul.f32 %v581, %v523
            %v598 = vadd.f32 %v525, %v597
            %s599 = smov [#allocation17]
            %600 = vst [vmem:[%s599] sm:$0xff] %v596
            %s601 = smov [#allocation18]
            %602 = vst [vmem:[%s601] sm:$0xff] %v598
            %s603 = smov %s518
            %604 = vst [vmem:[%s603] sm:$0xff] %v593
            %s605 = smov %s519
            %606 = vst [vmem:[%s605] sm:$0xff] %v594
            %s607 = smov [#allocation19]
            %v608 = vld [vmem:[%s607] ss:$0 sm:$0xff]
            %v609 = vlaneseq
            %v610 = vand.u32 %v609, 127
            %v611 = vmov %v610
            %v612 = vlaneseq
            %v613 = vshrl.u32 %v612, 7
            %v614 = vmov %v613
            %vm616 = vcmp.eq.s32.totalorder %v614, %v611
            %v617 = vsel %vm616, %v608, 0.0
            %618 = vadd.xlane.f32.xlu0 %v617
            %v619 = vpop.xlane.xlu0 %618
            %s620 = smov [#allocation21]
            %621 = vst [vmem:[%s620] sm:$0xff] %v619
            %s622 = smov [#allocation20]
            %v623 = vld [vmem:[%s622] ss:$0 sm:$0xff]
            %v624 = vlaneseq
            %v625 = vand.u32 %v624, 127
            %v626 = vmov %v625
            %v627 = vlaneseq
            %v628 = vshrl.u32 %v627, 7
            %v629 = vmov %v628
            %vm631 = vcmp.eq.s32.totalorder %v629, %v626
            %v632 = vsel %vm631, %v623, 0.0
            %633 = vadd.xlane.f32.xlu0 %v632
            %v634 = vpop.xlane.xlu0 %633
            %s635 = smov [#allocation22]
            %636 = vst [vmem:[%s635] sm:$0xff] %v634
            %s637 = smov [#allocation21]
            %v638 = vld [vmem:[%s637] sm:$0xff]
            %s639 = smov [#allocation22]
            %v640 = vld [vmem:[%s639] sm:$0xff]
            %s641 = smov [#allocation10]
            %s642 = smov [#allocation11]
            %s643 = smov [#allocation12]
            %s644 = smov [#allocation13]
            %v645 = vld [vmem:[%s641] sm:$0x3f]
            %v646 = vld [vmem:[%s642] sm:$0x3f]
            %v647 = vld [vmem:[%s643] sm:$0x3f]
            %v648 = vld [vmem:[%s644] sm:$0x3f]
            %v649 = vmul.f32 %v638, %v645
            %v650 = vmul.f32 %v640, %v647
            %v651 = vsub.f32 %v649, %v650
            %v652 = vmul.f32 %v638, %v646
            %v653 = vmul.f32 %v640, %v648
            %v654 = vsub.f32 %v652, %v653
            %v655 = vmul.f32 %v640, %v645
            %v656 = vmul.f32 %v638, %v647
            %v657 = vadd.f32 %v655, %v656
            %v658 = vmul.f32 %v640, %v646
            %v659 = vmul.f32 %v638, %v648
            %v660 = vadd.f32 %v658, %v659
            %661 = vst [vmem:[%s641] sm:$0x3f] %v651
            %662 = vst [vmem:[%s642] sm:$0x3f] %v654
            %663 = vst [vmem:[%s643] sm:$0x3f] %v657
            %664 = vst [vmem:[%s644] sm:$0x3f] %v660
            %s665 = smov [#allocation19]
            %v666 = vld [vmem:[%s665] ss:$0 sm:$0xff]
            %s667 = smov [#allocation20]
            %v668 = vld [vmem:[%s667] ss:$0 sm:$0xff]
            %s669 = smov [#allocation10]
            %s670 = smov [#allocation11]
            %s671 = smov [#allocation12]
            %s672 = smov [#allocation13]
            %v673 = vld [vmem:[%s669] sm:$0x3f]
            %v674 = vld [vmem:[%s670] sm:$0x3f]
            %v675 = vld [vmem:[%s671] sm:$0x3f]
            %v676 = vld [vmem:[%s672] sm:$0x3f]
            %v677 = vmul.f32 %v666, %v673
            %v678 = vmul.f32 %v668, %v674
            %v679 = vsub.f32 %v677, %v678
            %v680 = vmul.f32 %v668, %v673
            %v681 = vmul.f32 %v666, %v674
            %v682 = vadd.f32 %v680, %v681
            %v683 = vmul.f32 %v666, %v675
            %v684 = vmul.f32 %v668, %v676
            %v685 = vsub.f32 %v683, %v684
            %v686 = vmul.f32 %v668, %v675
            %v687 = vmul.f32 %v666, %v676
            %v688 = vadd.f32 %v686, %v687
            %689 = vst [vmem:[%s669] sm:$0x3f] %v679
            %690 = vst [vmem:[%s670] sm:$0x3f] %v682
            %691 = vst [vmem:[%s671] sm:$0x3f] %v685
            %692 = vst [vmem:[%s672] sm:$0x3f] %v688
            %s693 = smov [#allocation10]
            %s694 = smov [#allocation17]
            %v695 = vlaneseq
            %v696 = vand.u32 %v695, 127
            %v697 = vmov %v696
            %v698 = vlaneseq
            %v699 = vshrl.u32 %v698, 7
            %v700 = vmov %v699
            %v701 = vld [vmem:[%s694] ss:$0 sm:$0xff]
            %v702 = vld [vmem:[%s693] sm:$0x3f]
            %vm705 = vcmp.eq.s32.totalorder %v700, %v697
            %v706 = vsel %vm705, %v701, %v702
            %707 = vst [vmem:[%s693] sm:$0x3f] %v706
            %s708 = smov [#allocation11]
            %v709 = vlaneseq
            %v710 = vand.u32 %v709, 127
            %v711 = vmov %v710
            %v712 = vlaneseq
            %v713 = vshrl.u32 %v712, 7
            %v714 = vmov %v713
            %v715 = vld [vmem:[%s708] sm:$0x3f]
            %vm718 = vcmp.eq.s32.totalorder %v714, %v711
            %v719 = vsel %vm718, 0.0, %v715
            %720 = vst [vmem:[%s708] sm:$0x3f] %v719
            %s721 = smov [#allocation12]
            %v722 = vlaneseq
            %v723 = vand.u32 %v722, 127
            %v724 = vmov %v723
            %v725 = vlaneseq
            %v726 = vshrl.u32 %v725, 7
            %v727 = vmov %v726
            %v728 = vld [vmem:[%s721] sm:$0x3f]
            %vm731 = vcmp.eq.s32.totalorder %v727, %v724
            %v732 = vsel %vm731, 0.0, %v728
            %733 = vst [vmem:[%s721] sm:$0x3f] %v732
            %s734 = smov [#allocation13]
            %s735 = smov [#allocation18]
            %v736 = vlaneseq
            %v737 = vand.u32 %v736, 127
            %v738 = vmov %v737
            %v739 = vlaneseq
            %v740 = vshrl.u32 %v739, 7
            %v741 = vmov %v740
            %v742 = vld [vmem:[%s735] ss:$0 sm:$0xff]
            %v743 = vld [vmem:[%s734] sm:$0x3f]
            %vm746 = vcmp.eq.s32.totalorder %v741, %v738
            %v747 = vsel %vm746, %v742, %v743
            %748 = vst [vmem:[%s734] sm:$0x3f] %v747
            %s749 = smov [#allocation10]
            %s750 = smov [#allocation11]
            %v751 = vld [vmem:[%s750] sm:$0x3f]
            %752 = vrot.lane.b32.xlu0 %v751, 1
            %v753 = vpop.permute.xlu0 %752
            %v754 = vld [vmem:[%s749] sm:$0x3f]
            %v755 = vld [vmem:[%s749] sm:$0x3f]
            %756 = vrot.lane.b32.xlu0 %v755, 1
            %v757 = vpop.permute.xlu0 %756
            %v758 = vlaneseq
            %v759 = vand.u32 %v758, 127
            %vm760 = vcmp.eq.s32.totalorder %v759, 0
            %v761 = vsel %vm760, %v755, %v757
            %v762 = vlaneseq
            %v763 = vand.u32 %v762, 127
            %vm764 = vcmp.eq.s32.totalorder %v763, 1
            %v765 = vsel %vm764, %v753, %v761
            %v766 = vlaneseq
            %v767 = vand.u32 %v766, 127
            %vm768 = vcmp.ge.s32.totalorder %v767, 0
            %vm769 = vcmp.lt.s32.totalorder %v767, 6
            %vm770 = vmand %vm768, %vm769
            %v771 = vsel %vm770, %v765, 0.0
            %v772 = vld [vmem:[%s750] sm:$0x3f]
            %773 = vrot.lane.b32.xlu0 %v772, 127
            %v774 = vpop.permute.xlu0 %773
            %v775 = vlaneseq
            %v776 = vand.u32 %v775, 127
            %vm777 = vcmp.eq.s32.totalorder %v776, 5
            %v778 = vsel %vm777, %v754, %v774
            %779 = vst [vmem:[%s749] sm:$0x3f] %v771
            %780 = vst [vmem:[%s750] sm:$0x3f] %v778
            %s781 = smov [#allocation12]
            %s782 = smov [#allocation13]
            %v783 = vld [vmem:[%s782] sm:$0x3f]
            %784 = vrot.lane.b32.xlu0 %v783, 1
            %v785 = vpop.permute.xlu0 %784
            %v786 = vld [vmem:[%s781] sm:$0x3f]
            %v787 = vld [vmem:[%s781] sm:$0x3f]
            %788 = vrot.lane.b32.xlu0 %v787, 1
            %v789 = vpop.permute.xlu0 %788
            %v790 = vlaneseq
            %v791 = vand.u32 %v790, 127
            %vm792 = vcmp.eq.s32.totalorder %v791, 0
            %v793 = vsel %vm792, %v787, %v789
            %v794 = vlaneseq
            %v795 = vand.u32 %v794, 127
            %vm796 = vcmp.eq.s32.totalorder %v795, 1
            %v797 = vsel %vm796, %v785, %v793
            %v798 = vlaneseq
            %v799 = vand.u32 %v798, 127
            %vm800 = vcmp.ge.s32.totalorder %v799, 0
            %vm801 = vcmp.lt.s32.totalorder %v799, 6
            %vm802 = vmand %vm800, %vm801
            %v803 = vsel %vm802, %v797, 0.0
            %v804 = vld [vmem:[%s782] sm:$0x3f]
            %805 = vrot.lane.b32.xlu0 %v804, 127
            %v806 = vpop.permute.xlu0 %805
            %v807 = vlaneseq
            %v808 = vand.u32 %v807, 127
            %vm809 = vcmp.eq.s32.totalorder %v808, 5
            %v810 = vsel %vm809, %v786, %v806
            %811 = vst [vmem:[%s781] sm:$0x3f] %v803
            %812 = vst [vmem:[%s782] sm:$0x3f] %v810
            %s813 = smov [#allocation10]
            %s814 = smov [#allocation12]
            %v815 = vld [vmem:[%s813] ss:$0 sm:$0xff]
            %s817 = scalar_lea.vmem %s813, 4294967295
            %v818 = vld [vmem:[%s817] sm:$0x3e]
            %v819 = vlaneseq
            %v820 = vshrl.u32 %v819, 7
            %vm821 = vcmp.eq.s32.totalorder %v820, 0
            %v822 = vsel %vm821, %v815, %v818
            %s823 = scalar_lea.vmem %s813, 5
            %v824 = vld [vmem:[%s823] ss:$0 sm:$0xff]
            %825 = vst [vmem:[%s813] sm:$0x3f] %v822
            %v826 = vld [vmem:[%s814] ss:$0 sm:$0xff]
            %s827 = scalar_lea.vmem %s813, 1
            %828 = vst [vmem:[%s827] sm:$0x1] %v826
            %s829 = scalar_lea.vmem %s814, 1
            %v830 = vld [vmem:[%s829] sm:$0x1f]
            %v831 = vlaneseq
            %v832 = vshrl.u32 %v831, 7
            %vm833 = vcmp.eq.s32.totalorder %v832, 5
            %v834 = vsel %vm833, %v824, %v830
            %v835 = vld [vmem:[%s814] ss:$0 sm:$0xff]
            %836 = vst [vmem:[%s814] sm:$0x3f] %v834
            %s837 = smov [#allocation11]
            %s838 = smov [#allocation13]
            %v839 = vld [vmem:[%s837] ss:$0 sm:$0xff]
            %s841 = scalar_lea.vmem %s837, 4294967295
            %v842 = vld [vmem:[%s841] sm:$0x3e]
            %v843 = vlaneseq
            %v844 = vshrl.u32 %v843, 7
            %vm845 = vcmp.eq.s32.totalorder %v844, 0
            %v846 = vsel %vm845, %v839, %v842
            %s847 = scalar_lea.vmem %s837, 5
            %v848 = vld [vmem:[%s847] ss:$0 sm:$0xff]
            %849 = vst [vmem:[%s837] sm:$0x3f] %v846
            %v850 = vld [vmem:[%s838] ss:$0 sm:$0xff]
            %s851 = scalar_lea.vmem %s837, 1
            %852 = vst [vmem:[%s851] sm:$0x1] %v850
            %s853 = scalar_lea.vmem %s838, 1
            %v854 = vld [vmem:[%s853] sm:$0x1f]
            %v855 = vlaneseq
            %v856 = vshrl.u32 %v855, 7
            %vm857 = vcmp.eq.s32.totalorder %v856, 5
            %v858 = vsel %vm857, %v848, %v854
            %v859 = vld [vmem:[%s838] ss:$0 sm:$0xff]
            %860 = vst [vmem:[%s838] sm:$0x3f] %v858
            %s861 = smov [#allocation21]
            %v862 = vld [vmem:[%s861] sm:$0xff]
            %s863 = smov [#allocation22]
            %v864 = vld [vmem:[%s863] sm:$0xff]
            %s865 = smov %s297
            %s866 = smov %s301
            %s867 = smov %s305
            %s868 = smov %s309
            %v869 = vld [vmem:[%s865] sm:$0x3f]
            %v870 = vld [vmem:[%s866] sm:$0x3f]
            %v871 = vld [vmem:[%s867] sm:$0x3f]
            %v872 = vld [vmem:[%s868] sm:$0x3f]
            %v873 = vmul.f32 %v862, %v869
            %v874 = vmul.f32 %v864, %v871
            %v875 = vsub.f32 %v873, %v874
            %v876 = vmul.f32 %v862, %v870
            %v877 = vmul.f32 %v864, %v872
            %v878 = vsub.f32 %v876, %v877
            %v879 = vmul.f32 %v864, %v869
            %v880 = vmul.f32 %v862, %v871
            %v881 = vadd.f32 %v879, %v880
            %v882 = vmul.f32 %v864, %v870
            %v883 = vmul.f32 %v862, %v872
            %v884 = vadd.f32 %v882, %v883
            %885 = vst [vmem:[%s865] sm:$0x3f] %v875
            %886 = vst [vmem:[%s866] sm:$0x3f] %v878
            %887 = vst [vmem:[%s867] sm:$0x3f] %v881
            %888 = vst [vmem:[%s868] sm:$0x3f] %v884
            %s889 = smov %s297
            %s890 = smov %s305
            %v891 = vld [vmem:[%s889] ss:$0 sm:$0xff]
            %s893 = scalar_lea.vmem %s889, 4294967295
            %v894 = vld [vmem:[%s893] sm:$0x3e]
            %v895 = vlaneseq
            %v896 = vshrl.u32 %v895, 7
            %vm897 = vcmp.eq.s32.totalorder %v896, 0
            %v898 = vsel %vm897, %v891, %v894
            %s899 = scalar_lea.vmem %s889, 5
            %v900 = vld [vmem:[%s899] ss:$0 sm:$0xff]
            %901 = vst [vmem:[%s889] sm:$0x3f] %v898
            %v902 = vld [vmem:[%s890] ss:$0 sm:$0xff]
            %s903 = scalar_lea.vmem %s889, 1
            %904 = vst [vmem:[%s903] sm:$0x1] %v902
            %s905 = scalar_lea.vmem %s890, 1
            %v906 = vld [vmem:[%s905] sm:$0x1f]
            %v907 = vlaneseq
            %v908 = vshrl.u32 %v907, 7
            %vm909 = vcmp.eq.s32.totalorder %v908, 5
            %v910 = vsel %vm909, %v900, %v906
            %v911 = vld [vmem:[%s890] ss:$0 sm:$0xff]
            %912 = vst [vmem:[%s890] sm:$0x3f] %v910
            %s913 = smov %s301
            %s914 = smov %s309
            %v915 = vld [vmem:[%s913] ss:$0 sm:$0xff]
            %s917 = scalar_lea.vmem %s913, 4294967295
            %v918 = vld [vmem:[%s917] sm:$0x3e]
            %v919 = vlaneseq
            %v920 = vshrl.u32 %v919, 7
            %vm921 = vcmp.eq.s32.totalorder %v920, 0
            %v922 = vsel %vm921, %v915, %v918
            %s923 = scalar_lea.vmem %s913, 5
            %v924 = vld [vmem:[%s923] ss:$0 sm:$0xff]
            %925 = vst [vmem:[%s913] sm:$0x3f] %v922
            %v926 = vld [vmem:[%s914] ss:$0 sm:$0xff]
            %s927 = scalar_lea.vmem %s913, 1
            %928 = vst [vmem:[%s927] sm:$0x1] %v926
            %s929 = scalar_lea.vmem %s914, 1
            %v930 = vld [vmem:[%s929] sm:$0x1f]
            %v931 = vlaneseq
            %v932 = vshrl.u32 %v931, 7
            %vm933 = vcmp.eq.s32.totalorder %v932, 5
            %v934 = vsel %vm933, %v924, %v930
            %v935 = vld [vmem:[%s914] ss:$0 sm:$0xff]
            %936 = vst [vmem:[%s914] sm:$0x3f] %v934
          $region168: #{custom-call.5} parent=160 // loop_footer
            %s457 = sadd.s32 1, %s453
          $region169: #{custom-call.5} parent=160 // loop_footer_branch
            %452 = sbr.rel target = $region165
          $region170: #{custom-call.5} parent=160 // loop_exit
            _
          %s937 = sadd.s32 %s355, 1
        $region161: #{custom-call.5} parent=155 // loop_footer
          _
        $region162: #{custom-call.5} parent=155 // loop_footer_branch
          %354 = sbr.rel target = $region158
        $region163: #{custom-call.5} parent=155 // loop_exit
          _
        %s940 = sand.u32 %s17, 7
        %s941 = scalar_lea.vmem %s287, %s940 [#allocation4]
        %s942 = sand.u32 %s17, 7
        %s943 = scalar_lea.vmem %s293, %s942 [#allocation5]
        %s944 = smov [#allocation10]
        %s945 = smov %s941
        %v946 = vlaneseq
        %v947 = vand.u32 %v946, 127
        %v948 = vmov %v947
        %v949 = vlaneseq
        %v950 = vshrl.u32 %v949, 7
        %v951 = vmov %v950
        %v952 = vld [vmem:[%s944] sm:$0x3f]
        %vm955 = vcmp.eq.s32.totalorder %v951, %v948
        %v956 = vsel %vm955, %v952, 0.0
        %v957 = vrot.slane %v956, 4
        %v958 = vadd.f32 %v956, %v957
        %v959 = vrot.slane %v958, 2
        %v960 = vadd.f32 %v958, %v959
        %v961 = vrot.slane %v960, 1
        %v962 = vadd.f32 %v960, %v961
        %963 = vst [vmem:[%s945] sm:$0x1] %v962
        %s964 = smov [#allocation13]
        %s965 = smov %s943
        %v966 = vlaneseq
        %v967 = vand.u32 %v966, 127
        %v968 = vmov %v967
        %v969 = vlaneseq
        %v970 = vshrl.u32 %v969, 7
        %v971 = vmov %v970
        %v972 = vld [vmem:[%s964] sm:$0x3f]
        %vm975 = vcmp.eq.s32.totalorder %v971, %v968
        %v976 = vsel %vm975, %v972, 0.0
        %v977 = vrot.slane %v976, 4
        %v978 = vadd.f32 %v976, %v977
        %v979 = vrot.slane %v978, 2
        %v980 = vadd.f32 %v978, %v979
        %v981 = vrot.slane %v980, 1
        %v982 = vadd.f32 %v980, %v981
        %983 = vst [vmem:[%s965] sm:$0x1] %v982
        %s984 = sand.u32 %s27, 1
        %s985 = sand.u32 %s27, 1
        %s986 = smul.addr %s985, 8
        %s987 = scalar_lea.vmem [#allocation4], %s986
        %s988 = sand.u32 %s55, 1
        %s989 = sand.u32 %s55, 1
        %s990 = smul.addr %s989, 8
        %s991 = scalar_lea.vmem [#allocation5], %s990
        %s992 = sand.u32 %s17, 1
        %s993 = sand.u32 %s17, 1
        %s994 = smul.addr %s993, 8
        %s995 = scalar_lea.vmem [#allocation6], %s994
        %s996 = sand.u32 %s17, 1
        %s997 = sand.u32 %s17, 1
        %s998 = smul.addr %s997, 8
        %s999 = scalar_lea.vmem [#allocation7], %s998
        %s1000 = sand.u32 %s17, 1
        %s1001 = sand.u32 %s17, 1
        %s1002 = smul.addr %s1001, 8
        %s1003 = scalar_lea.vmem [#allocation8], %s1002
        %s1004 = sand.u32 %s17, 1
        %s1005 = sand.u32 %s17, 1
        %s1006 = smul.addr %s1005, 8
        %s1007 = scalar_lea.vmem [#allocation9], %s1006
        // Predicated region
        $region171: #{custom-call.5} parent=155 // pred_check
          %p1008 = pneg %p37
        $region172: #{custom-call.5} parent=155 // pred_check_branch
          %1010 = sbr.rel (%p1008) target = $region174
        $region173: #{custom-call.5} parent=155 // pred_region
          %s1011 = sshrl.u32 %s17, 3
          %s1012 = smul.addr %s1011, 8
          %s1013 = scalar_lea.vmem %s4, %s1012
          // Predicated region
          $region175: #{custom-call.5} parent=173 // pred_check
            _
          $region176: #{custom-call.5} parent=173 // pred_check_branch
            %1015 = sbr.rel (0) target = $region178
          $region177: #{custom-call.5} parent=173 // pred_region
            // Predicated region
            $region179: #{custom-call.5} parent=177 // pred_check
              _
            $region180: #{custom-call.5} parent=177 // pred_check_branch
              %1017 = sbr.rel (0) target = $region182
            $region181: #{custom-call.5} parent=177 // pred_region
              // Predicated region
              $region194: #{custom-call.5} parent=181 // pred_check
                _
              $region195: #{custom-call.5} parent=181 // pred_check_branch
                %1033 = sbr.rel (0) target = $region197
              $region196: #{custom-call.5} parent=181 // pred_region
                loop: start=0, step=1, limit=1
                $region198: #{custom-call.5} parent=196 // loop_pre_header
                  _
                $region199: #{custom-call.5} parent=196 // loop_header
                  %s1035 = sphi 0, %s1039
                  %p1036 = scmp.ge.s32.totalorder %s1035, 1
                  %s1040 = sphi %s987, %s987
                  %s1041 = sphi %s1013, %s1013
                $region200: #{custom-call.5} parent=196 // loop_header_branch
                  %1038 = sbr.rel (%p1036) target = $region204
                $region201: #{custom-call.5} parent=196 // loop_body
                  %v1042 = vld [vmem:[%s1040] sm:$0xff]
                  %1043 = vst [vmem:[%s1041] sm:$0xff] %v1042
                $region202: #{custom-call.5} parent=196 // loop_footer
                  %s1039 = sadd.s32 1, %s1035
                $region203: #{custom-call.5} parent=196 // loop_footer_branch
                  %1034 = sbr.rel target = $region199
                $region204: #{custom-call.5} parent=196 // loop_exit
                  _
              $region197: #{custom-call.5} parent=181 // pred_fallthru
                _
              // Predicated region
              $region205: #{custom-call.5} parent=181 // pred_check
                _
              $region206: #{custom-call.5} parent=181 // pred_check_branch
                %1045 = sbr.rel target = $region208
              $region207: #{custom-call.5} parent=181 // pred_region
                _
              $region208: #{custom-call.5} parent=181 // pred_fallthru
                _
            $region182: #{custom-call.5} parent=177 // pred_fallthru
              _
            // Predicated region
            $region183: #{custom-call.5} parent=177 // pred_check
              _
            $region184: #{custom-call.5} parent=177 // pred_check_branch
              %1019 = sbr.rel target = $region186
            $region185: #{custom-call.5} parent=177 // pred_region
              %s1021 = ssub.s32 256, 1
              loop: start=0, step=1, limit=1
              $region187: #{custom-call.5} parent=185 // loop_pre_header
                _
              $region188: #{custom-call.5} parent=185 // loop_header
                %s1023 = sphi 0, %s1027
                %p1024 = scmp.ge.s32.totalorder %s1023, 1
                %s1028 = sphi %s987, %s987
                %s1029 = sphi %s1013, %s1013
              $region189: #{custom-call.5} parent=185 // loop_header_branch
                %1026 = sbr.rel (%p1024) target = $region193
              $region190: #{custom-call.5} parent=185 // loop_body
                %v1030 = vld [vmem:[%s1028] sm:%s1021]
                %1031 = vst [vmem:[%s1029] sm:%s1021] %v1030
              $region191: #{custom-call.5} parent=185 // loop_footer
                %s1027 = sadd.s32 1, %s1023
              $region192: #{custom-call.5} parent=185 // loop_footer_branch
                %1022 = sbr.rel target = $region188
              $region193: #{custom-call.5} parent=185 // loop_exit
                _
            $region186: #{custom-call.5} parent=177 // pred_fallthru
              _
          $region178: #{custom-call.5} parent=173 // pred_fallthru
            _
          %1046 = vnop
        $region174: #{custom-call.5} parent=155 // pred_fallthru
          _
        // Predicated region
        $region209: #{custom-call.5} parent=155 // pred_check
          %p1047 = pneg %p65
        $region210: #{custom-call.5} parent=155 // pred_check_branch
          %1049 = sbr.rel (%p1047) target = $region212
        $region211: #{custom-call.5} parent=155 // pred_region
          %s1050 = sshrl.u32 %s17, 3
          %s1051 = smul.addr %s1050, 8
          %s1052 = scalar_lea.vmem %s5, %s1051
          // Predicated region
          $region213: #{custom-call.5} parent=211 // pred_check
            _
          $region214: #{custom-call.5} parent=211 // pred_check_branch
            %1054 = sbr.rel (0) target = $region216
          $region215: #{custom-call.5} parent=211 // pred_region
            // Predicated region
            $region217: #{custom-call.5} parent=215 // pred_check
              _
            $region218: #{custom-call.5} parent=215 // pred_check_branch
              %1056 = sbr.rel (0) target = $region220
            $region219: #{custom-call.5} parent=215 // pred_region
              // Predicated region
              $region232: #{custom-call.5} parent=219 // pred_check
                _
              $region233: #{custom-call.5} parent=219 // pred_check_branch
                %1072 = sbr.rel (0) target = $region235
              $region234: #{custom-call.5} parent=219 // pred_region
                loop: start=0, step=1, limit=1
                $region236: #{custom-call.5} parent=234 // loop_pre_header
                  _
                $region237: #{custom-call.5} parent=234 // loop_header
                  %s1074 = sphi 0, %s1078
                  %p1075 = scmp.ge.s32.totalorder %s1074, 1
                  %s1079 = sphi %s991, %s991
                  %s1080 = sphi %s1052, %s1052
                $region238: #{custom-call.5} parent=234 // loop_header_branch
                  %1077 = sbr.rel (%p1075) target = $region242
                $region239: #{custom-call.5} parent=234 // loop_body
                  %v1081 = vld [vmem:[%s1079] sm:$0xff]
                  %1082 = vst [vmem:[%s1080] sm:$0xff] %v1081
                $region240: #{custom-call.5} parent=234 // loop_footer
                  %s1078 = sadd.s32 1, %s1074
                $region241: #{custom-call.5} parent=234 // loop_footer_branch
                  %1073 = sbr.rel target = $region237
                $region242: #{custom-call.5} parent=234 // loop_exit
                  _
              $region235: #{custom-call.5} parent=219 // pred_fallthru
                _
              // Predicated region
              $region243: #{custom-call.5} parent=219 // pred_check
                _
              $region244: #{custom-call.5} parent=219 // pred_check_branch
                %1084 = sbr.rel target = $region246
              $region245: #{custom-call.5} parent=219 // pred_region
                _
              $region246: #{custom-call.5} parent=219 // pred_fallthru
                _
            $region220: #{custom-call.5} parent=215 // pred_fallthru
              _
            // Predicated region
            $region221: #{custom-call.5} parent=215 // pred_check
              _
            $region222: #{custom-call.5} parent=215 // pred_check_branch
              %1058 = sbr.rel target = $region224
            $region223: #{custom-call.5} parent=215 // pred_region
              %s1060 = ssub.s32 256, 1
              loop: start=0, step=1, limit=1
              $region225: #{custom-call.5} parent=223 // loop_pre_header
                _
              $region226: #{custom-call.5} parent=223 // loop_header
                %s1062 = sphi 0, %s1066
                %p1063 = scmp.ge.s32.totalorder %s1062, 1
                %s1067 = sphi %s991, %s991
                %s1068 = sphi %s1052, %s1052
              $region227: #{custom-call.5} parent=223 // loop_header_branch
                %1065 = sbr.rel (%p1063) target = $region231
              $region228: #{custom-call.5} parent=223 // loop_body
                %v1069 = vld [vmem:[%s1067] sm:%s1060]
                %1070 = vst [vmem:[%s1068] sm:%s1060] %v1069
              $region229: #{custom-call.5} parent=223 // loop_footer
                %s1066 = sadd.s32 1, %s1062
              $region230: #{custom-call.5} parent=223 // loop_footer_branch
                %1061 = sbr.rel target = $region226
              $region231: #{custom-call.5} parent=223 // loop_exit
                _
            $region224: #{custom-call.5} parent=215 // pred_fallthru
              _
          $region216: #{custom-call.5} parent=211 // pred_fallthru
            _
          %1085 = vnop
        $region212: #{custom-call.5} parent=155 // pred_fallthru
          _
        %s1086 = smul.addr %s17, 8
        %s1087 = scalar_lea.vmem %s6, %s1086
        // Predicated region
        $region247: #{custom-call.5} parent=155 // pred_check
          _
        $region248: #{custom-call.5} parent=155 // pred_check_branch
          %1089 = sbr.rel (0) target = $region250
        $region249: #{custom-call.5} parent=155 // pred_region
          // Predicated region
          $region251: #{custom-call.5} parent=249 // pred_check
            _
          $region252: #{custom-call.5} parent=249 // pred_check_branch
            %1091 = sbr.rel (0) target = $region254
          $region253: #{custom-call.5} parent=249 // pred_region
            // Predicated region
            $region266: #{custom-call.5} parent=253 // pred_check
              _
            $region267: #{custom-call.5} parent=253 // pred_check_branch
              %1107 = sbr.rel (0) target = $region269
            $region268: #{custom-call.5} parent=253 // pred_region
              loop: start=0, step=1, limit=1
              $region270: #{custom-call.5} parent=268 // loop_pre_header
                _
              $region271: #{custom-call.5} parent=268 // loop_header
                %s1109 = sphi 0, %s1113
                %p1110 = scmp.ge.s32.totalorder %s1109, 1
                %s1114 = sphi %s995, %s995
                %s1115 = sphi %s1087, %s1087
              $region272: #{custom-call.5} parent=268 // loop_header_branch
                %1112 = sbr.rel (%p1110) target = $region276
              $region273: #{custom-call.5} parent=268 // loop_body
                %v1116 = vld [vmem:[%s1114] sm:$0xff]
                %1117 = vst [vmem:[%s1115] sm:$0xff] %v1116
              $region274: #{custom-call.5} parent=268 // loop_footer
                %s1113 = sadd.s32 1, %s1109
              $region275: #{custom-call.5} parent=268 // loop_footer_branch
                %1108 = sbr.rel target = $region271
              $region276: #{custom-call.5} parent=268 // loop_exit
                _
            $region269: #{custom-call.5} parent=253 // pred_fallthru
              _
            // Predicated region
            $region277: #{custom-call.5} parent=253 // pred_check
              _
            $region278: #{custom-call.5} parent=253 // pred_check_branch
              %1119 = sbr.rel target = $region280
            $region279: #{custom-call.5} parent=253 // pred_region
              _
            $region280: #{custom-call.5} parent=253 // pred_fallthru
              _
          $region254: #{custom-call.5} parent=249 // pred_fallthru
            _
          // Predicated region
          $region255: #{custom-call.5} parent=249 // pred_check
            _
          $region256: #{custom-call.5} parent=249 // pred_check_branch
            %1093 = sbr.rel target = $region258
          $region257: #{custom-call.5} parent=249 // pred_region
            %s1095 = ssub.s32 256, 1
            loop: start=0, step=1, limit=1
            $region259: #{custom-call.5} parent=257 // loop_pre_header
              _
            $region260: #{custom-call.5} parent=257 // loop_header
              %s1097 = sphi 0, %s1101
              %p1098 = scmp.ge.s32.totalorder %s1097, 1
              %s1102 = sphi %s995, %s995
              %s1103 = sphi %s1087, %s1087
            $region261: #{custom-call.5} parent=257 // loop_header_branch
              %1100 = sbr.rel (%p1098) target = $region265
            $region262: #{custom-call.5} parent=257 // loop_body
              %v1104 = vld [vmem:[%s1102] sm:%s1095]
              %1105 = vst [vmem:[%s1103] sm:%s1095] %v1104
            $region263: #{custom-call.5} parent=257 // loop_footer
              %s1101 = sadd.s32 1, %s1097
            $region264: #{custom-call.5} parent=257 // loop_footer_branch
              %1096 = sbr.rel target = $region260
            $region265: #{custom-call.5} parent=257 // loop_exit
              _
          $region258: #{custom-call.5} parent=249 // pred_fallthru
            _
        $region250: #{custom-call.5} parent=155 // pred_fallthru
          _
        %1120 = vnop
        %s1121 = smul.addr %s17, 8
        %s1122 = scalar_lea.vmem %s7, %s1121
        // Predicated region
        $region281: #{custom-call.5} parent=155 // pred_check
          _
        $region282: #{custom-call.5} parent=155 // pred_check_branch
          %1124 = sbr.rel (0) target = $region284
        $region283: #{custom-call.5} parent=155 // pred_region
          // Predicated region
          $region285: #{custom-call.5} parent=283 // pred_check
            _
          $region286: #{custom-call.5} parent=283 // pred_check_branch
            %1126 = sbr.rel (0) target = $region288
          $region287: #{custom-call.5} parent=283 // pred_region
            // Predicated region
            $region300: #{custom-call.5} parent=287 // pred_check
              _
            $region301: #{custom-call.5} parent=287 // pred_check_branch
              %1142 = sbr.rel (0) target = $region303
            $region302: #{custom-call.5} parent=287 // pred_region
              loop: start=0, step=1, limit=1
              $region304: #{custom-call.5} parent=302 // loop_pre_header
                _
              $region305: #{custom-call.5} parent=302 // loop_header
                %s1144 = sphi 0, %s1148
                %p1145 = scmp.ge.s32.totalorder %s1144, 1
                %s1149 = sphi %s999, %s999
                %s1150 = sphi %s1122, %s1122
              $region306: #{custom-call.5} parent=302 // loop_header_branch
                %1147 = sbr.rel (%p1145) target = $region310
              $region307: #{custom-call.5} parent=302 // loop_body
                %v1151 = vld [vmem:[%s1149] sm:$0xff]
                %1152 = vst [vmem:[%s1150] sm:$0xff] %v1151
              $region308: #{custom-call.5} parent=302 // loop_footer
                %s1148 = sadd.s32 1, %s1144
              $region309: #{custom-call.5} parent=302 // loop_footer_branch
                %1143 = sbr.rel target = $region305
              $region310: #{custom-call.5} parent=302 // loop_exit
                _
            $region303: #{custom-call.5} parent=287 // pred_fallthru
              _
            // Predicated region
            $region311: #{custom-call.5} parent=287 // pred_check
              _
            $region312: #{custom-call.5} parent=287 // pred_check_branch
              %1154 = sbr.rel target = $region314
            $region313: #{custom-call.5} parent=287 // pred_region
              _
            $region314: #{custom-call.5} parent=287 // pred_fallthru
              _
          $region288: #{custom-call.5} parent=283 // pred_fallthru
            _
          // Predicated region
          $region289: #{custom-call.5} parent=283 // pred_check
            _
          $region290: #{custom-call.5} parent=283 // pred_check_branch
            %1128 = sbr.rel target = $region292
          $region291: #{custom-call.5} parent=283 // pred_region
            %s1130 = ssub.s32 256, 1
            loop: start=0, step=1, limit=1
            $region293: #{custom-call.5} parent=291 // loop_pre_header
              _
            $region294: #{custom-call.5} parent=291 // loop_header
              %s1132 = sphi 0, %s1136
              %p1133 = scmp.ge.s32.totalorder %s1132, 1
              %s1137 = sphi %s999, %s999
              %s1138 = sphi %s1122, %s1122
            $region295: #{custom-call.5} parent=291 // loop_header_branch
              %1135 = sbr.rel (%p1133) target = $region299
            $region296: #{custom-call.5} parent=291 // loop_body
              %v1139 = vld [vmem:[%s1137] sm:%s1130]
              %1140 = vst [vmem:[%s1138] sm:%s1130] %v1139
            $region297: #{custom-call.5} parent=291 // loop_footer
              %s1136 = sadd.s32 1, %s1132
            $region298: #{custom-call.5} parent=291 // loop_footer_branch
              %1131 = sbr.rel target = $region294
            $region299: #{custom-call.5} parent=291 // loop_exit
              _
          $region292: #{custom-call.5} parent=283 // pred_fallthru
            _
        $region284: #{custom-call.5} parent=155 // pred_fallthru
          _
        %1155 = vnop
        %s1156 = smul.addr %s17, 8
        %s1157 = scalar_lea.vmem %s8, %s1156
        // Predicated region
        $region315: #{custom-call.5} parent=155 // pred_check
          _
        $region316: #{custom-call.5} parent=155 // pred_check_branch
          %1159 = sbr.rel (0) target = $region318
        $region317: #{custom-call.5} parent=155 // pred_region
          // Predicated region
          $region319: #{custom-call.5} parent=317 // pred_check
            _
          $region320: #{custom-call.5} parent=317 // pred_check_branch
            %1161 = sbr.rel (0) target = $region322
          $region321: #{custom-call.5} parent=317 // pred_region
            // Predicated region
            $region334: #{custom-call.5} parent=321 // pred_check
              _
            $region335: #{custom-call.5} parent=321 // pred_check_branch
              %1177 = sbr.rel (0) target = $region337
            $region336: #{custom-call.5} parent=321 // pred_region
              loop: start=0, step=1, limit=1
              $region338: #{custom-call.5} parent=336 // loop_pre_header
                _
              $region339: #{custom-call.5} parent=336 // loop_header
                %s1179 = sphi 0, %s1183
                %p1180 = scmp.ge.s32.totalorder %s1179, 1
                %s1184 = sphi %s1003, %s1003
                %s1185 = sphi %s1157, %s1157
              $region340: #{custom-call.5} parent=336 // loop_header_branch
                %1182 = sbr.rel (%p1180) target = $region344
              $region341: #{custom-call.5} parent=336 // loop_body
                %v1186 = vld [vmem:[%s1184] sm:$0xff]
                %1187 = vst [vmem:[%s1185] sm:$0xff] %v1186
              $region342: #{custom-call.5} parent=336 // loop_footer
                %s1183 = sadd.s32 1, %s1179
              $region343: #{custom-call.5} parent=336 // loop_footer_branch
                %1178 = sbr.rel target = $region339
              $region344: #{custom-call.5} parent=336 // loop_exit
                _
            $region337: #{custom-call.5} parent=321 // pred_fallthru
              _
            // Predicated region
            $region345: #{custom-call.5} parent=321 // pred_check
              _
            $region346: #{custom-call.5} parent=321 // pred_check_branch
              %1189 = sbr.rel target = $region348
            $region347: #{custom-call.5} parent=321 // pred_region
              _
            $region348: #{custom-call.5} parent=321 // pred_fallthru
              _
          $region322: #{custom-call.5} parent=317 // pred_fallthru
            _
          // Predicated region
          $region323: #{custom-call.5} parent=317 // pred_check
            _
          $region324: #{custom-call.5} parent=317 // pred_check_branch
            %1163 = sbr.rel target = $region326
          $region325: #{custom-call.5} parent=317 // pred_region
            %s1165 = ssub.s32 256, 1
            loop: start=0, step=1, limit=1
            $region327: #{custom-call.5} parent=325 // loop_pre_header
              _
            $region328: #{custom-call.5} parent=325 // loop_header
              %s1167 = sphi 0, %s1171
              %p1168 = scmp.ge.s32.totalorder %s1167, 1
              %s1172 = sphi %s1003, %s1003
              %s1173 = sphi %s1157, %s1157
            $region329: #{custom-call.5} parent=325 // loop_header_branch
              %1170 = sbr.rel (%p1168) target = $region333
            $region330: #{custom-call.5} parent=325 // loop_body
              %v1174 = vld [vmem:[%s1172] sm:%s1165]
              %1175 = vst [vmem:[%s1173] sm:%s1165] %v1174
            $region331: #{custom-call.5} parent=325 // loop_footer
              %s1171 = sadd.s32 1, %s1167
            $region332: #{custom-call.5} parent=325 // loop_footer_branch
              %1166 = sbr.rel target = $region328
            $region333: #{custom-call.5} parent=325 // loop_exit
              _
          $region326: #{custom-call.5} parent=317 // pred_fallthru
            _
        $region318: #{custom-call.5} parent=155 // pred_fallthru
          _
        %1190 = vnop
        %s1191 = smul.addr %s17, 8
        %s1192 = scalar_lea.vmem %s9, %s1191
        // Predicated region
        $region349: #{custom-call.5} parent=155 // pred_check
          _
        $region350: #{custom-call.5} parent=155 // pred_check_branch
          %1194 = sbr.rel (0) target = $region352
        $region351: #{custom-call.5} parent=155 // pred_region
          // Predicated region
          $region353: #{custom-call.5} parent=351 // pred_check
            _
          $region354: #{custom-call.5} parent=351 // pred_check_branch
            %1196 = sbr.rel (0) target = $region356
          $region355: #{custom-call.5} parent=351 // pred_region
            // Predicated region
            $region368: #{custom-call.5} parent=355 // pred_check
              _
            $region369: #{custom-call.5} parent=355 // pred_check_branch
              %1212 = sbr.rel (0) target = $region371
            $region370: #{custom-call.5} parent=355 // pred_region
              loop: start=0, step=1, limit=1
              $region372: #{custom-call.5} parent=370 // loop_pre_header
                _
              $region373: #{custom-call.5} parent=370 // loop_header
                %s1214 = sphi 0, %s1218
                %p1215 = scmp.ge.s32.totalorder %s1214, 1
                %s1219 = sphi %s1007, %s1007
                %s1220 = sphi %s1192, %s1192
              $region374: #{custom-call.5} parent=370 // loop_header_branch
                %1217 = sbr.rel (%p1215) target = $region378
              $region375: #{custom-call.5} parent=370 // loop_body
                %v1221 = vld [vmem:[%s1219] sm:$0xff]
                %1222 = vst [vmem:[%s1220] sm:$0xff] %v1221
              $region376: #{custom-call.5} parent=370 // loop_footer
                %s1218 = sadd.s32 1, %s1214
              $region377: #{custom-call.5} parent=370 // loop_footer_branch
                %1213 = sbr.rel target = $region373
              $region378: #{custom-call.5} parent=370 // loop_exit
                _
            $region371: #{custom-call.5} parent=355 // pred_fallthru
              _
            // Predicated region
            $region379: #{custom-call.5} parent=355 // pred_check
              _
            $region380: #{custom-call.5} parent=355 // pred_check_branch
              %1224 = sbr.rel target = $region382
            $region381: #{custom-call.5} parent=355 // pred_region
              _
            $region382: #{custom-call.5} parent=355 // pred_fallthru
              _
          $region356: #{custom-call.5} parent=351 // pred_fallthru
            _
          // Predicated region
          $region357: #{custom-call.5} parent=351 // pred_check
            _
          $region358: #{custom-call.5} parent=351 // pred_check_branch
            %1198 = sbr.rel target = $region360
          $region359: #{custom-call.5} parent=351 // pred_region
            %s1200 = ssub.s32 256, 1
            loop: start=0, step=1, limit=1
            $region361: #{custom-call.5} parent=359 // loop_pre_header
              _
            $region362: #{custom-call.5} parent=359 // loop_header
              %s1202 = sphi 0, %s1206
              %p1203 = scmp.ge.s32.totalorder %s1202, 1
              %s1207 = sphi %s1007, %s1007
              %s1208 = sphi %s1192, %s1192
            $region363: #{custom-call.5} parent=359 // loop_header_branch
              %1205 = sbr.rel (%p1203) target = $region367
            $region364: #{custom-call.5} parent=359 // loop_body
              %v1209 = vld [vmem:[%s1207] sm:%s1200]
              %1210 = vst [vmem:[%s1208] sm:%s1200] %v1209
            $region365: #{custom-call.5} parent=359 // loop_footer
              %s1206 = sadd.s32 1, %s1202
            $region366: #{custom-call.5} parent=359 // loop_footer_branch
              %1201 = sbr.rel target = $region362
            $region367: #{custom-call.5} parent=359 // loop_exit
              _
          $region360: #{custom-call.5} parent=351 // pred_fallthru
            _
        $region352: #{custom-call.5} parent=155 // pred_fallthru
          _
        %1225 = vnop
      $region156: #{custom-call.5} parent=5 // pred_fallthru
        _
      %p1226 = scmp.le.s32.totalorder 2, %s12
      // Predicated region
      $region383: #{custom-call.5} parent=5 // pred_check
        %p1227 = pneg %p1226
      $region384: #{custom-call.5} parent=5 // pred_check_branch
        %1229 = sbr.rel (%p1227) target = $region386
      $region385: #{custom-call.5} parent=5 // pred_region
        %s1230 = ssub.s32 %s12, 2
        // Predicated region
        $region387: #{custom-call.5} parent=385 // pred_check
          %p1231 = pneg %p43
        $region388: #{custom-call.5} parent=385 // pred_check_branch
          %1233 = sbr.rel (%p1231) target = $region390
        $region389: #{custom-call.5} parent=385 // pred_region
          %s1234 = sand.u32 %s28, 1
          %s1235 = sand.u32 %s28, 1
          %s1236 = smul.addr %s1235, 8
          %s1237 = scalar_lea.vmem [#allocation4], %s1236
        $region390: #{custom-call.5} parent=385 // pred_fallthru
          _
        // Predicated region
        $region391: #{custom-call.5} parent=385 // pred_check
          %p1238 = pneg %p71
        $region392: #{custom-call.5} parent=385 // pred_check_branch
          %1240 = sbr.rel (%p1238) target = $region394
        $region393: #{custom-call.5} parent=385 // pred_region
          %s1241 = sand.u32 %s56, 1
          %s1242 = sand.u32 %s56, 1
          %s1243 = smul.addr %s1242, 8
          %s1244 = scalar_lea.vmem [#allocation5], %s1243
        $region394: #{custom-call.5} parent=385 // pred_fallthru
          _
        %s1245 = sand.u32 %s18, 1
        %s1246 = sand.u32 %s18, 1
        %s1247 = smul.addr %s1246, 8
        %s1248 = scalar_lea.vmem [#allocation6], %s1247
        %s1249 = sand.u32 %s18, 1
        %s1250 = sand.u32 %s18, 1
        %s1251 = smul.addr %s1250, 8
        %s1252 = scalar_lea.vmem [#allocation7], %s1251
        %s1253 = sand.u32 %s18, 1
        %s1254 = sand.u32 %s18, 1
        %s1255 = smul.addr %s1254, 8
        %s1256 = scalar_lea.vmem [#allocation8], %s1255
        %s1257 = sand.u32 %s18, 1
        %s1258 = sand.u32 %s18, 1
        %s1259 = smul.addr %s1258, 8
        %s1260 = scalar_lea.vmem [#allocation9], %s1259
      $region386: #{custom-call.5} parent=5 // pred_fallthru
        _
    $region6: #{custom-call.5} parent=1 // loop_footer
      %s16 = sadd.s32 1, %s12
    $region7: #{custom-call.5} parent=1 // loop_footer_branch
      %11 = sbr.rel target = $region3
    $region8: #{custom-call.5} parent=1 // loop_exit
      _

// kernel: matt_mamem_forward.2
$region0: #{matt_mamem_forward.2}
  #allocation0 [shape = 'u32[]', space=smem, size = 0x4, offset = 0x4, fixed_abs, tag = 'smem constant byte address 0x4 - core index']
  #allocation1 [shape = 'u32[72,128]{1,0:T(1,128)}', space=vmem, size = 0x9000, scoped, tag = 'internal scratch']
  #allocation2 [shape = 'f32[288,65]{1,0:T(8,128)}', space=vmem, size = 0x24000, scoped, tag = 'scratch operand']
  %s0 = inlined_call_operand.vmem [shape: f32[2,8,100], index: 0, kind: input, shape index: {}]
  %s1 = inlined_call_operand.vmem [shape: f32[15,288], index: 1, kind: input, shape index: {}]
  %s2 = inlined_call_operand.vmem [shape: f32[15,65], index: 2, kind: input, shape index: {}]
  %s3 = inlined_call_operand.vmem [shape: f32[3,12,15], index: 3, kind: input, shape index: {}]
  %s4 = inlined_call_operand.vmem [shape: f32[2,3,3,12,12], index: 4, kind: output, shape index: {}]
  %s5 = sld [smem:[#allocation0]]
  $region49: #{matt_mamem_forward.2} parent=0
    _
  %s7 = ssub.s32 1, %s5
  %s8 = scalar_select 0, %s7, %s5
  loop: start=0, step=1, limit=4
  $region2: #{matt_mamem_forward.2} parent=0 // loop_pre_header
    _
  $region3: #{matt_mamem_forward.2} parent=0 // loop_header
    %s10 = sphi 0, %s14
    %p11 = scmp.ge.s32.totalorder %s10, 4
    %s20 = sphi 0, %s22
    %s23 = sphi 0, %s20
    %s24 = sphi 0, %s23
    %s40 = sphi 0, %s24
    %s44 = sphi 0, %s44
    %s46 = sphi 0, %s44
    %s47 = sphi 0, %s46
    %s61 = sphi 0, %s47
    %s65 = sphi 0, %s65
    %s67 = sphi 0, %s65
    %s68 = sphi 0, %s67
    %s82 = sphi 0, %s68
    %s86 = sphi 0, %s86
    %s88 = sphi 0, %s86
    %s89 = sphi 0, %s88
    %s103 = sphi 0, %s89
    %s109 = sphi 0, %s111
    %s112 = sphi 0, %s109
    %s113 = sphi 0, %s112
    %s129 = sphi 0, %s113
  $region4: #{matt_mamem_forward.2} parent=0 // loop_header_branch
    %13 = sbr.rel (%p11) target = $region8
  $region5: #{matt_mamem_forward.2} parent=0 // loop_body
    %s15 = ssub.s32 %s10, 1
    %s16 = ssub.s32 %s10, 2
    %s17 = sadd.s32 %s10, 1
    %s18 = ssub.s32 %s10, %s17
    %p19 = scmp.eq.s32.totalorder %s18, 0
    %s21 = sadd.s32 %s20, 1
    %s22 = scalar_select %p19, %s20, %s21
    %p25 = pneg %p19
    %p26 = scmp.eq.s32.totalorder %s10, 1
    %p27 = por %p25, %p26
    %p28 = scmp.ne.s32.totalorder %s20, %s23
    %p29 = scmp.eq.s32.totalorder %s10, 0
    %p30 = por %p28, %p29
    %p31 = scmp.ne.s32.totalorder %s20, %s23
    %p32 = scmp.eq.s32.totalorder %s15, 1
    %p33 = por %p31, %p32
    %p34 = scmp.ne.s32.totalorder %s23, %s24
    %p35 = scmp.eq.s32.totalorder %s15, 0
    %p36 = por %p34, %p35
    %p37 = scmp.ne.s32.totalorder %s23, %s24
    %p38 = scmp.eq.s32.totalorder %s16, 1
    %p39 = por %p37, %p38
    %p41 = scmp.ne.s32.totalorder %s24, %s40
    %p42 = scmp.eq.s32.totalorder %s16, 0
    %p43 = por %p41, %p42
    %s45 = sadd.s32 %s44, 1
    %p48 = scmp.eq.s32.totalorder %s10, 1
    %p49 = scmp.ne.s32.totalorder %s44, %s46
    %p50 = scmp.eq.s32.totalorder %s10, 0
    %p51 = por %p49, %p50
    %p52 = scmp.ne.s32.totalorder %s44, %s46
    %p53 = scmp.eq.s32.totalorder %s15, 1
    %p54 = por %p52, %p53
    %p55 = scmp.ne.s32.totalorder %s46, %s47
    %p56 = scmp.eq.s32.totalorder %s15, 0
    %p57 = por %p55, %p56
    %p58 = scmp.ne.s32.totalorder %s46, %s47
    %p59 = scmp.eq.s32.totalorder %s16, 1
    %p60 = por %p58, %p59
    %p62 = scmp.ne.s32.totalorder %s47, %s61
    %p63 = scmp.eq.s32.totalorder %s16, 0
    %p64 = por %p62, %p63
    %s66 = sadd.s32 %s65, 1
    %p69 = scmp.eq.s32.totalorder %s10, 1
    %p70 = scmp.ne.s32.totalorder %s65, %s67
    %p71 = scmp.eq.s32.totalorder %s10, 0
    %p72 = por %p70, %p71
    %p73 = scmp.ne.s32.totalorder %s65, %s67
    %p74 = scmp.eq.s32.totalorder %s15, 1
    %p75 = por %p73, %p74
    %p76 = scmp.ne.s32.totalorder %s67, %s68
    %p77 = scmp.eq.s32.totalorder %s15, 0
    %p78 = por %p76, %p77
    %p79 = scmp.ne.s32.totalorder %s67, %s68
    %p80 = scmp.eq.s32.totalorder %s16, 1
    %p81 = por %p79, %p80
    %p83 = scmp.ne.s32.totalorder %s68, %s82
    %p84 = scmp.eq.s32.totalorder %s16, 0
    %p85 = por %p83, %p84
    %s87 = sadd.s32 %s86, 1
    %p90 = scmp.eq.s32.totalorder %s10, 1
    %p91 = scmp.ne.s32.totalorder %s86, %s88
    %p92 = scmp.eq.s32.totalorder %s10, 0
    %p93 = por %p91, %p92
    %p94 = scmp.ne.s32.totalorder %s86, %s88
    %p95 = scmp.eq.s32.totalorder %s15, 1
    %p96 = por %p94, %p95
    %p97 = scmp.ne.s32.totalorder %s88, %s89
    %p98 = scmp.eq.s32.totalorder %s15, 0
    %p99 = por %p97, %p98
    %p100 = scmp.ne.s32.totalorder %s88, %s89
    %p101 = scmp.eq.s32.totalorder %s16, 1
    %p102 = por %p100, %p101
    %p104 = scmp.ne.s32.totalorder %s89, %s103
    %p105 = scmp.eq.s32.totalorder %s16, 0
    %p106 = por %p104, %p105
    %s107 = ssub.s32 %s10, %s17
    %p108 = scmp.eq.s32.totalorder %s107, 0
    %s110 = sadd.s32 %s109, 1
    %s111 = scalar_select %p108, %s109, %s110
    %p114 = pneg %p108
    %p115 = scmp.eq.s32.totalorder %s10, 1
    %p116 = por %p114, %p115
    %p117 = scmp.ne.s32.totalorder %s109, %s112
    %p118 = scmp.eq.s32.totalorder %s10, 0
    %p119 = por %p117, %p118
    %p120 = scmp.ne.s32.totalorder %s109, %s112
    %p121 = scmp.eq.s32.totalorder %s15, 1
    %p122 = por %p120, %p121
    %p123 = scmp.ne.s32.totalorder %s112, %s113
    %p124 = scmp.eq.s32.totalorder %s15, 0
    %p125 = por %p123, %p124
    %p126 = scmp.ne.s32.totalorder %s112, %s113
    %p127 = scmp.eq.s32.totalorder %s16, 1
    %p128 = por %p126, %p127
    %p130 = scmp.ne.s32.totalorder %s113, %s129
    %p131 = scmp.eq.s32.totalorder %s16, 0
    %p132 = por %p130, %p131
    %p133 = scmp.le.s32.totalorder 1, %s10
    %p134 = scmp.lt.s32.totalorder %s10, 3
    %p135 = pnand %p133, %p134
    %p136 = pneg %p135
    // Predicated region
    $region9: #{matt_mamem_forward.2} parent=5 // pred_check
      _
    $region10: #{matt_mamem_forward.2} parent=5 // pred_check_branch
      %138 = sbr.rel (%p135) target = $region12
    $region11: #{matt_mamem_forward.2} parent=5 // pred_region
      %s139 = ssub.s32 %s10, 1
      // Predicated region
      $region13: #{matt_mamem_forward.2} parent=11 // pred_check
        %p140 = pneg %p57
      $region14: #{matt_mamem_forward.2} parent=11 // pred_check_branch
        %142 = sbr.rel (%p140) target = $region16
      $region15: #{matt_mamem_forward.2} parent=11 // pred_region
        _
      $region16: #{matt_mamem_forward.2} parent=11 // pred_fallthru
        _
      // Predicated region
      $region17: #{matt_mamem_forward.2} parent=11 // pred_check
        %p143 = pneg %p78
      $region18: #{matt_mamem_forward.2} parent=11 // pred_check_branch
        %145 = sbr.rel (%p143) target = $region20
      $region19: #{matt_mamem_forward.2} parent=11 // pred_region
        _
      $region20: #{matt_mamem_forward.2} parent=11 // pred_fallthru
        _
      // Predicated region
      $region21: #{matt_mamem_forward.2} parent=11 // pred_check
        %p146 = pneg %p99
      $region22: #{matt_mamem_forward.2} parent=11 // pred_check_branch
        %148 = sbr.rel (%p146) target = $region24
      $region23: #{matt_mamem_forward.2} parent=11 // pred_region
        _
      $region24: #{matt_mamem_forward.2} parent=11 // pred_fallthru
        _
    $region12: #{matt_mamem_forward.2} parent=5 // pred_fallthru
      _
    %p149 = scmp.lt.s32.totalorder %s10, 2
    // Predicated region
    $region25: #{matt_mamem_forward.2} parent=5 // pred_check
      %p150 = pneg %p149
    $region26: #{matt_mamem_forward.2} parent=5 // pred_check_branch
      %152 = sbr.rel (%p150) target = $region28
    $region27: #{matt_mamem_forward.2} parent=5 // pred_region
      // Predicated region
      $region29: #{matt_mamem_forward.2} parent=27 // pred_check
        %p153 = pneg %p30
      $region30: #{matt_mamem_forward.2} parent=27 // pred_check_branch
        %155 = sbr.rel (%p153) target = $region32
      $region31: #{matt_mamem_forward.2} parent=27 // pred_region
        %p156 = scmp.lt.s32.totalorder %s10, 1
        %s157 = scalar_select %p156, %s10, 1
        %s158 = smul.addr %s157, 8
        %s159 = scalar_lea.vmem %s0, %s158
      $region32: #{matt_mamem_forward.2} parent=27 // pred_fallthru
        _
    $region28: #{matt_mamem_forward.2} parent=5 // pred_fallthru
      _
    %p160 = scmp.le.s32.totalorder 1, %s10
    %p161 = scmp.lt.s32.totalorder %s10, 3
    %p162 = pnand %p160, %p161
    %p163 = pneg %p162
    // Predicated region
    $region33: #{matt_mamem_forward.2} parent=5 // pred_check
      _
    $region34: #{matt_mamem_forward.2} parent=5 // pred_check_branch
      %165 = sbr.rel (%p162) target = $region36
    $region35: #{matt_mamem_forward.2} parent=5 // pred_region
      %s166 = ssub.s32 %s10, 1
      %p167 = scmp.lt.s32.totalorder %s15, 1
      %s168 = scalar_select %p167, %s15, 1
      %s169 = smul.addr %s168, 8
      %s170 = scalar_lea.vmem %s0, %s169
      %p171 = pneg %p36
      %p172 = pneg %p33
      %p173 = pneg %p57
      %p174 = pneg %p54
      %p175 = pneg %p78
      %p176 = pneg %p75
      %p177 = pneg %p99
      %p178 = pneg %p96
      %p179 = pneg %p125
      %p180 = pneg %p122
      %p181 = scmp.lt.s32.totalorder %s15, 1
      %s182 = scalar_select %p181, %s15, 1
      %s183 = smul.addr %s182, 18
      %s184 = smul.addr %s183, 8
      %s185 = scalar_lea.vmem %s4, %s184
      %p186 = scmp.lt.s32.totalorder %s15, 1
      %s187 = scalar_select %p186, %s15, 1
      %s188 = smul.addr %s187, 8
      %s189 = scalar_lea.vmem %s0, %s188
      %p190 = scmp.lt.s32.totalorder %s15, 1
      %s191 = scalar_select %p190, %s15, 1
      %s192 = smul.addr %s191, 18
      %s193 = smul.addr %s192, 8
      %s194 = scalar_lea.vmem %s4, %s193
      %v195 = vld [vmem:[%s1] sm:$0xff]
      %v196 = vld [vmem:[%s1 + $0x8] sm:$0xff]
      %v197 = vld [vmem:[%s1 + $0x10] sm:$0xff]
      %v198 = vld [vmem:[%s1 + $0x18] sm:$0x7f]
      %v199 = vld [vmem:[%s1 + $0x20] sm:$0x7f]
      %v200 = vld [vmem:[%s1 + $0x28] sm:$0x7f]
      %v201 = vld [vmem:[%s2] sm:$0xff]
      %v202 = vld [vmem:[%s2 + $0x8] sm:$0x7f]
      %v203 = vld [vmem:[%s3] sm:$0xff]
      %v204 = vld [vmem:[%s3 + $0x8] sm:$0xf]
      %s205 = scalar_lea.vmem %s3, 16
      %v206 = vld [vmem:[%s205] sm:$0xff]
      %v207 = vld [vmem:[%s205 + $0x8] sm:$0xf]
      %s208 = scalar_lea.vmem %s3, 32
      %v209 = vld [vmem:[%s208] sm:$0xff]
      %v210 = vld [vmem:[%s208 + $0x8] sm:$0xf]
      %v211 = vlaneseq
      %v212 = vshrl.u32 %v211, 7
      %v213 = vadd.s32 %v212, 8
      %v214 = vlaneseq
      %v215 = vand.u32 %v214, 127
      %vm216 = vcmp.eq.s32.totalorder %v212, %v215
      %vm217 = vcmp.eq.s32.totalorder %v213, %v215
      %v218 = vsel %vm216, 1, 0
      %v219 = vsel %vm217, 1, 0
      %v220 = vcvt.s32.f32 %v218
      %v221 = vcvt.s32.f32 %v219
      %v222 = vld [vmem:[%s189] sm:$0xff]
      %vm223 = vcmask 531456
      %224 = vst.msk [vmem:[#allocation2] sm:$0xff] %vm223, %v222
      %v225 = vld [vmem:[%s189] sm:$0xff]
      %227 = vrot.lane.b32.xlu0 %v225, 127
      %v228 = vpop.permute.xlu0 %227
      %230 = vst.msk [vmem:[#allocation2 + $0x8] sm:$0xff] %vm223, %v228
      %v231 = vld [vmem:[%s189] sm:$0xff]
      %233 = vrot.lane.b32.xlu0 %v231, 126
      %v234 = vpop.permute.xlu0 %233
      %236 = vst.msk [vmem:[#allocation2 + $0x10] sm:$0xff] %vm223, %v234
      %v237 = vld [vmem:[%s189] sm:$0xff]
      %239 = vrot.lane.b32.xlu0 %v237, 125
      %v240 = vpop.permute.xlu0 %239
      %242 = vst.msk [vmem:[#allocation2 + $0x18] sm:$0xff] %vm223, %v240
      %v243 = vld [vmem:[%s189] sm:$0xff]
      %245 = vrot.lane.b32.xlu0 %v243, 124
      %v246 = vpop.permute.xlu0 %245
      %248 = vst.msk [vmem:[#allocation2 + $0x20] sm:$0xff] %vm223, %v246
      %v249 = vld [vmem:[%s189] sm:$0xff]
      %251 = vrot.lane.b32.xlu0 %v249, 123
      %v252 = vpop.permute.xlu0 %251
      %254 = vst.msk [vmem:[#allocation2 + $0x28] sm:$0xff] %vm223, %v252
      %v255 = vld [vmem:[%s189] sm:$0xff]
      %257 = vrot.lane.b32.xlu0 %v255, 122
      %v258 = vpop.permute.xlu0 %257
      %260 = vst.msk [vmem:[#allocation2 + $0x30] sm:$0xff] %vm223, %v258
      %v261 = vld [vmem:[%s189] sm:$0xff]
      %263 = vrot.lane.b32.xlu0 %v261, 121
      %v264 = vpop.permute.xlu0 %263
      %266 = vst.msk [vmem:[#allocation2 + $0x38] sm:$0xff] %vm223, %v264
      %v267 = vld [vmem:[%s189] sm:$0xff]
      %269 = vrot.lane.b32.xlu0 %v267, 120
      %v270 = vpop.permute.xlu0 %269
      %272 = vst.msk [vmem:[#allocation2 + $0x40] sm:$0xff] %vm223, %v270
      %v273 = vld [vmem:[%s189] sm:$0xff]
      %275 = vrot.lane.b32.xlu0 %v273, 119
      %v276 = vpop.permute.xlu0 %275
      %278 = vst.msk [vmem:[#allocation2 + $0x48] sm:$0xff] %vm223, %v276
      %v279 = vld [vmem:[%s189] sm:$0xff]
      %281 = vrot.lane.b32.xlu0 %v279, 118
      %v282 = vpop.permute.xlu0 %281
      %284 = vst.msk [vmem:[#allocation2 + $0x50] sm:$0xff] %vm223, %v282
      %v285 = vld [vmem:[%s189] sm:$0xff]
      %287 = vrot.lane.b32.xlu0 %v285, 117
      %v288 = vpop.permute.xlu0 %287
      %290 = vst.msk [vmem:[#allocation2 + $0x58] sm:$0xff] %vm223, %v288
      %v291 = vld [vmem:[%s189] sm:$0xff]
      %293 = vrot.lane.b32.xlu0 %v291, 116
      %v294 = vpop.permute.xlu0 %293
      %296 = vst.msk [vmem:[#allocation2 + $0x60] sm:$0xff] %vm223, %v294
      %v297 = vld [vmem:[%s189] sm:$0xff]
      %299 = vrot.lane.b32.xlu0 %v297, 115
      %v300 = vpop.permute.xlu0 %299
      %302 = vst.msk [vmem:[#allocation2 + $0x68] sm:$0xff] %vm223, %v300
      %v303 = vld [vmem:[%s189] sm:$0xff]
      %305 = vrot.lane.b32.xlu0 %v303, 114
      %v306 = vpop.permute.xlu0 %305
      %308 = vst.msk [vmem:[#allocation2 + $0x70] sm:$0xff] %vm223, %v306
      %v309 = vld [vmem:[%s189] sm:$0xff]
      %311 = vrot.lane.b32.xlu0 %v309, 113
      %v312 = vpop.permute.xlu0 %311
      %314 = vst.msk [vmem:[#allocation2 + $0x78] sm:$0xff] %vm223, %v312
      %v315 = vld [vmem:[%s189] sm:$0xff]
      %317 = vrot.lane.b32.xlu0 %v315, 112
      %v318 = vpop.permute.xlu0 %317
      %320 = vst.msk [vmem:[#allocation2 + $0x80] sm:$0xff] %vm223, %v318
      %v321 = vld [vmem:[%s189] sm:$0xff]
      %323 = vrot.lane.b32.xlu0 %v321, 111
      %v324 = vpop.permute.xlu0 %323
      %326 = vst.msk [vmem:[#allocation2 + $0x88] sm:$0xff] %vm223, %v324
      %v327 = vld [vmem:[%s189] sm:$0xff]
      %329 = vrot.lane.b32.xlu0 %v327, 110
      %v330 = vpop.permute.xlu0 %329
      %332 = vst.msk [vmem:[#allocation2 + $0x90] sm:$0xff] %vm223, %v330
      %v333 = vld [vmem:[%s189] sm:$0xff]
      %335 = vrot.lane.b32.xlu0 %v333, 109
      %v336 = vpop.permute.xlu0 %335
      %338 = vst.msk [vmem:[#allocation2 + $0x98] sm:$0xff] %vm223, %v336
      %v339 = vld [vmem:[%s189] sm:$0xff]
      %341 = vrot.lane.b32.xlu0 %v339, 108
      %v342 = vpop.permute.xlu0 %341
      %344 = vst.msk [vmem:[#allocation2 + $0xa0] sm:$0xff] %vm223, %v342
      %v345 = vld [vmem:[%s189] sm:$0xff]
      %347 = vrot.lane.b32.xlu0 %v345, 107
      %v348 = vpop.permute.xlu0 %347
      %350 = vst.msk [vmem:[#allocation2 + $0xa8] sm:$0xff] %vm223, %v348
      %v351 = vld [vmem:[%s189] sm:$0xff]
      %353 = vrot.lane.b32.xlu0 %v351, 106
      %v354 = vpop.permute.xlu0 %353
      %356 = vst.msk [vmem:[#allocation2 + $0xb0] sm:$0xff] %vm223, %v354
      %v357 = vld [vmem:[%s189] sm:$0xff]
      %359 = vrot.lane.b32.xlu0 %v357, 105
      %v360 = vpop.permute.xlu0 %359
      %362 = vst.msk [vmem:[#allocation2 + $0xb8] sm:$0xff] %vm223, %v360
      %v363 = vld [vmem:[%s189] sm:$0xff]
      %365 = vrot.lane.b32.xlu0 %v363, 104
      %v366 = vpop.permute.xlu0 %365
      %368 = vst.msk [vmem:[#allocation2 + $0xc0] sm:$0xff] %vm223, %v366
      %v369 = vld [vmem:[%s189] sm:$0xff]
      %371 = vrot.lane.b32.xlu0 %v369, 103
      %v372 = vpop.permute.xlu0 %371
      %374 = vst.msk [vmem:[#allocation2 + $0xc8] sm:$0xff] %vm223, %v372
      %v375 = vld [vmem:[%s189] sm:$0xff]
      %377 = vrot.lane.b32.xlu0 %v375, 102
      %v378 = vpop.permute.xlu0 %377
      %380 = vst.msk [vmem:[#allocation2 + $0xd0] sm:$0xff] %vm223, %v378
      %v381 = vld [vmem:[%s189] sm:$0xff]
      %383 = vrot.lane.b32.xlu0 %v381, 101
      %v384 = vpop.permute.xlu0 %383
      %386 = vst.msk [vmem:[#allocation2 + $0xd8] sm:$0xff] %vm223, %v384
      %v387 = vld [vmem:[%s189] sm:$0xff]
      %389 = vrot.lane.b32.xlu0 %v387, 100
      %v390 = vpop.permute.xlu0 %389
      %392 = vst.msk [vmem:[#allocation2 + $0xe0] sm:$0xff] %vm223, %v390
      %v393 = vld [vmem:[%s189] sm:$0xff]
      %395 = vrot.lane.b32.xlu0 %v393, 99
      %v396 = vpop.permute.xlu0 %395
      %398 = vst.msk [vmem:[#allocation2 + $0xe8] sm:$0xff] %vm223, %v396
      %v399 = vld [vmem:[%s189] sm:$0xff]
      %401 = vrot.lane.b32.xlu0 %v399, 98
      %v402 = vpop.permute.xlu0 %401
      %404 = vst.msk [vmem:[#allocation2 + $0xf0] sm:$0xff] %vm223, %v402
      %v405 = vld [vmem:[%s189] sm:$0xff]
      %407 = vrot.lane.b32.xlu0 %v405, 97
      %v408 = vpop.permute.xlu0 %407
      %410 = vst.msk [vmem:[#allocation2 + $0xf8] sm:$0xff] %vm223, %v408
      %v411 = vld [vmem:[%s189] sm:$0xff]
      %413 = vrot.lane.b32.xlu0 %v411, 96
      %v414 = vpop.permute.xlu0 %413
      %416 = vst.msk [vmem:[#allocation2 + $0x100] sm:$0xff] %vm223, %v414
      %v417 = vld [vmem:[%s189] sm:$0xff]
      %419 = vrot.lane.b32.xlu0 %v417, 95
      %v420 = vpop.permute.xlu0 %419
      %422 = vst.msk [vmem:[#allocation2 + $0x108] sm:$0xff] %vm223, %v420
      %v423 = vld [vmem:[%s189] sm:$0xff]
      %425 = vrot.lane.b32.xlu0 %v423, 94
      %v426 = vpop.permute.xlu0 %425
      %428 = vst.msk [vmem:[#allocation2 + $0x110] sm:$0xff] %vm223, %v426
      %v429 = vld [vmem:[%s189] sm:$0xff]
      %431 = vrot.lane.b32.xlu0 %v429, 93
      %v432 = vpop.permute.xlu0 %431
      %434 = vst.msk [vmem:[#allocation2 + $0x118] sm:$0xff] %vm223, %v432
      %v435 = vld [vmem:[#allocation2] sm:$0xff]
      %v436 = vld [vmem:[#allocation2 + $0x8] sm:$0xff]
      %v437 = vld [vmem:[#allocation2 + $0x10] sm:$0xff]
      %v438 = vld [vmem:[#allocation2 + $0x18] sm:$0xff]
      %v439 = vld [vmem:[#allocation2 + $0x20] sm:$0xff]
      %v440 = vld [vmem:[#allocation2 + $0x28] sm:$0xff]
      %v441 = vld [vmem:[#allocation2 + $0x30] sm:$0xff]
      %v442 = vld [vmem:[#allocation2 + $0x38] sm:$0xff]
      %v443 = vld [vmem:[#allocation2 + $0x40] sm:$0xff]
      %v444 = vld [vmem:[#allocation2 + $0x48] sm:$0xff]
      %v445 = vld [vmem:[#allocation2 + $0x50] sm:$0xff]
      %v446 = vld [vmem:[#allocation2 + $0x58] sm:$0xff]
      %v447 = vld [vmem:[#allocation2 + $0x60] sm:$0xff]
      %v448 = vld [vmem:[#allocation2 + $0x68] sm:$0xff]
      %v449 = vld [vmem:[#allocation2 + $0x70] sm:$0xff]
      %v450 = vld [vmem:[#allocation2 + $0x78] sm:$0xff]
      %v451 = vld [vmem:[#allocation2 + $0x80] sm:$0xff]
      %v452 = vld [vmem:[#allocation2 + $0x88] sm:$0xff]
      %v453 = vld [vmem:[#allocation2 + $0x90] sm:$0xff]
      %v454 = vld [vmem:[#allocation2 + $0x98] sm:$0xff]
      %v455 = vld [vmem:[#allocation2 + $0xa0] sm:$0xff]
      %v456 = vld [vmem:[#allocation2 + $0xa8] sm:$0xff]
      %v457 = vld [vmem:[#allocation2 + $0xb0] sm:$0xff]
      %v458 = vld [vmem:[#allocation2 + $0xb8] sm:$0xff]
      %v459 = vld [vmem:[#allocation2 + $0xc0] sm:$0xff]
      %v460 = vld [vmem:[#allocation2 + $0xc8] sm:$0xff]
      %v461 = vld [vmem:[#allocation2 + $0xd0] sm:$0xff]
      %v462 = vld [vmem:[#allocation2 + $0xd8] sm:$0xff]
      %v463 = vld [vmem:[#allocation2 + $0xe0] sm:$0xff]
      %v464 = vld [vmem:[#allocation2 + $0xe8] sm:$0xff]
      %v465 = vld [vmem:[#allocation2 + $0xf0] sm:$0xff]
      %v466 = vld [vmem:[#allocation2 + $0xf8] sm:$0xff]
      %v467 = vld [vmem:[#allocation2 + $0x100] sm:$0xff]
      %v468 = vld [vmem:[#allocation2 + $0x108] sm:$0xff]
      %v469 = vld [vmem:[#allocation2 + $0x110] sm:$0xff]
      %v470 = vld [vmem:[#allocation2 + $0x118] sm:$0xff]
      %vm471 = vcmask 261120
      %v473 = vsel %vm471, %v197, 0
      %v476 = vsel %vm471, %v200, 0
      %478 = vmatpush.msra.mxu0 %v450
      %479 = vmatpush.msra.mxu0 %v449
      %480 = vmatpush.msra.mxu0 %v448
      %481 = vmatpush.msra.mxu0 %v447
      %482 = vmatpush.msra.mxu0 %v446
      %483 = vmatpush.msra.mxu0 %v445
      %484 = vmatpush.msra.mxu0 %v444
      %485 = vmatpush.msra.mxu0 %v443
      %486 = vmatpush.msra.mxu0 %v442
      %487 = vmatpush.msra.mxu0 %v441
      %488 = vmatpush.msra.mxu0 %v440
      %489 = vmatpush.msra.mxu0 %v439
      %490 = vmatpush.msra.mxu0 %v438
      %491 = vmatpush.msra.mxu0 %v437
      %492 = vmatpush.msra.mxu0 %v436
      %493 = vmatpush.msra.mxu0 %v435
      %494 = vmatmul.f32.gmra.mxu0 %v195
      %v495 = vpop.f32.mrf.mxu0
      %v496 = vadd.f32 %v201, %v495
      %497 = vmatmul.f32.gmra.mxu0 %v198
      %v498 = vpop.f32.mrf.mxu0
      %v499 = vadd.f32 %v202, %v498
      %500 = vdwg.mxu0
      %501 = vmatpush.msra.mxu0 %v466
      %502 = vmatpush.msra.mxu0 %v465
      %503 = vmatpush.msra.mxu0 %v464
      %504 = vmatpush.msra.mxu0 %v463
      %505 = vmatpush.msra.mxu0 %v462
      %506 = vmatpush.msra.mxu0 %v461
      %507 = vmatpush.msra.mxu0 %v460
      %508 = vmatpush.msra.mxu0 %v459
      %509 = vmatpush.msra.mxu0 %v458
      %510 = vmatpush.msra.mxu0 %v457
      %511 = vmatpush.msra.mxu0 %v456
      %512 = vmatpush.msra.mxu0 %v455
      %513 = vmatpush.msra.mxu0 %v454
      %514 = vmatpush.msra.mxu0 %v453
      %515 = vmatpush.msra.mxu0 %v452
      %516 = vmatpush.msra.mxu0 %v451
      %517 = vmatmul.f32.gmra.mxu0 %v196
      %v518 = vpop.f32.mrf.mxu0
      %v519 = vadd.f32 %v496, %v518
      %520 = vmatmul.f32.gmra.mxu0 %v199
      %v521 = vpop.f32.mrf.mxu0
      %v522 = vadd.f32 %v499, %v521
      %523 = vdwg.mxu0
      %524 = vmatpush.msra.mxu0 0.0
      %525 = vmatpush.msra.mxu0 0.0
      %526 = vmatpush.msra.mxu0 0.0
      %527 = vmatpush.msra.mxu0 0.0
      %528 = vmatpush.msra.mxu0 0.0
      %529 = vmatpush.msra.mxu0 0.0
      %530 = vmatpush.msra.mxu0 0.0
      %531 = vmatpush.msra.mxu0 0.0
      %532 = vmatpush.msra.mxu0 0.0
      %533 = vmatpush.msra.mxu0 0.0
      %534 = vmatpush.msra.mxu0 0.0
      %535 = vmatpush.msra.mxu0 0.0
      %536 = vmatpush.msra.mxu0 %v470
      %537 = vmatpush.msra.mxu0 %v469
      %538 = vmatpush.msra.mxu0 %v468
      %539 = vmatpush.msra.mxu0 %v467
      %540 = vmatmul.f32.gmra.mxu0 %v473
      %v541 = vpop.f32.mrf.mxu0
      %v542 = vadd.f32 %v519, %v541
      %543 = vmatmul.f32.gmra.mxu0 %v476
      %v544 = vpop.f32.mrf.mxu0
      %v545 = vadd.f32 %v522, %v544
      %546 = vdwg.mxu0
      %vm547 = vcmask 179200
      %v548 = vsel %vm547, %v542, 0.0
      %549 = vadd.xlane.f32.xlu0 %v548
      %v550 = vpop.xlane.xlu0 %549
      %vm551 = vcmask 178176
      %v552 = vsel %vm551, %v545, 0.0
      %553 = vadd.xlane.f32.xlu0 %v552
      %v554 = vpop.xlane.xlu0 %553
      %v555 = vrcp.pop 22.0
      %v556 = vmul.f32 22.0, %v555
      %v557 = vsub.f32 1.0, %v556
      %v558 = vmul.f32 %v555, %v557
      %v559 = vadd.f32 %v555, %v558
      %vm560 = vweird.f32 %v555
      %v561 = vsel %vm560, %v555, %v559
      %v562 = vmul.f32 %v550, %v561
      %v563 = vmul.f32 %v554, %v561
      %v564 = vsub.f32 %v542, %v562
      %v565 = vsub.f32 %v545, %v563
      %v567 = vsel %vm547, %v564, 0
      %v570 = vsel %vm547, %v565, 0
      %572 = vmatpush.xpose.msra.mxu0 0.0
      %573 = vmatpush.xpose.msra.mxu0 0.0
      %574 = vmatpush.xpose.msra.mxu0 0.0
      %575 = vmatpush.xpose.msra.mxu0 0.0
      %576 = vmatpush.xpose.msra.mxu0 0.0
      %577 = vmatpush.xpose.msra.mxu0 0.0
      %578 = vmatpush.xpose.msra.mxu0 0.0
      %579 = vmatpush.xpose.msra.mxu0 0.0
      %580 = vmatpush.xpose.msra.mxu0 0.0
      %581 = vmatpush.xpose.msra.mxu0 0.0
      %582 = vmatpush.xpose.msra.mxu0 0.0
      %583 = vmatpush.xpose.msra.mxu0 0.0
      %584 = vmatpush.xpose.msra.mxu0 0.0
      %585 = vmatpush.xpose.msra.mxu0 0.0
      %586 = vmatpush.xpose.msra.mxu0 %v570
      %587 = vmatpush.xpose.msra.mxu0 %v567
      %588 = vmatmul.f32.gmra.mxu0 %v567
      %v589 = vpop.f32.mrf.mxu0
      %v590 = vadd.f32 0.0, %v589
      %591 = vmatmul.f32.gmra.mxu0 %v570
      %v592 = vpop.f32.mrf.mxu0
      %v593 = vadd.f32 0.0, %v592
      %594 = vdwg.mxu0
      %v595 = vmul.f32 %v564, %v564
      %v596 = vmul.f32 %v565, %v565
      %v597 = vsel %vm547, %v595, 0.0
      %v598 = vsel %vm551, %v596, 0.0
      %v599 = vadd.f32 %v597, %v598
      %600 = vadd.xlane.f32.xlu0 %v599
      %v601 = vpop.xlane.xlu0 %600
      %v602 = vrot.slane %v601, 4
      %v603 = vadd.f32 %v601, %v602
      %v604 = vrot.slane %v603, 2
      %v605 = vadd.f32 %v603, %v604
      %v606 = vrot.slane %v605, 1
      %v607 = vadd.f32 %v605, %v606
      %s608 = vtos %v607
      %v609 = vstv %s608
      %v610 = vrcp.pop %v609
      %v611 = vmul.f32 %v609, %v610
      %v612 = vsub.f32 1.0, %v611
      %v613 = vmul.f32 %v610, %v612
      %v614 = vadd.f32 %v610, %v613
      %vm615 = vweird.f32 %v609
      %vm616 = vweird.f32 %v610
      %vm617 = vmor %vm615, %vm616
      %v618 = vsel %vm617, %v610, %v614
      %v619 = vand.u32 2147483647, %v609
      %vm620 = vcmp.eq.f32.partialorder %v619, 8.507059e+37
      %v621 = vand.u32 %v609, 2147483648
      %v622 = vor.u32 1.1754944e-38, %v621
      %v623 = vsel %vm620, %v622, %v618
      %v624 = vmul.f32 %v590, %v623
      %v625 = vmul.f32 %v593, %v623
      %v626 = vmul.f32 %v220, 1e-05
      %v627 = vmul.f32 %v221, 1e-05
      %v628 = vadd.f32 %v624, %v626
      %v629 = vadd.f32 %v625, %v627
      %vm630 = vcmask 121856
      %v632 = vsel %vm630, %v203, 0
      %v635 = vsel %vm630, %v204, 0
      %vm637 = vcmask 1046528
      %v639 = vsel %vm637, %v629, 0
      %641 = vmatpush.msra.mxu0 0.0
      %642 = vmatpush.msra.mxu0 0.0
      %643 = vmatpush.msra.mxu0 0.0
      %644 = vmatpush.msra.mxu0 0.0
      %645 = vmatpush.msra.mxu0 0.0
      %646 = vmatpush.msra.mxu0 0.0
      %647 = vmatpush.msra.mxu0 0.0
      %648 = vmatpush.msra.mxu0 0.0
      %649 = vmatpush.msra.mxu0 0.0
      %650 = vmatpush.msra.mxu0 0.0
      %651 = vmatpush.msra.mxu0 0.0
      %652 = vmatpush.msra.mxu0 0.0
      %653 = vmatpush.msra.mxu0 0.0
      %654 = vmatpush.msra.mxu0 0.0
      %655 = vmatpush.msra.mxu0 %v639
      %656 = vmatpush.msra.mxu0 %v628
      %657 = vmatmul.f32.gmra.mxu0 %v632
      %v658 = vpop.f32.mrf.mxu0
      %v659 = vadd.f32 0.0, %v658
      %660 = vmatmul.f32.gmra.mxu0 %v635
      %v661 = vpop.f32.mrf.mxu0
      %v662 = vadd.f32 0.0, %v661
      %663 = vdwg.mxu0
      %v665 = vsel %vm630, %v659, 0
      %v668 = vsel %vm630, %v662, 0
      %670 = vmatpush.xpose.msra.mxu0 0.0
      %671 = vmatpush.xpose.msra.mxu0 0.0
      %672 = vmatpush.xpose.msra.mxu0 0.0
      %673 = vmatpush.xpose.msra.mxu0 0.0
      %674 = vmatpush.xpose.msra.mxu0 0.0
      %675 = vmatpush.xpose.msra.mxu0 0.0
      %676 = vmatpush.xpose.msra.mxu0 0.0
      %677 = vmatpush.xpose.msra.mxu0 0.0
      %678 = vmatpush.xpose.msra.mxu0 0.0
      %679 = vmatpush.xpose.msra.mxu0 0.0
      %680 = vmatpush.xpose.msra.mxu0 0.0
      %681 = vmatpush.xpose.msra.mxu0 0.0
      %682 = vmatpush.xpose.msra.mxu0 0.0
      %683 = vmatpush.xpose.msra.mxu0 0.0
      %684 = vmatpush.xpose.msra.mxu0 %v635
      %685 = vmatpush.xpose.msra.mxu0 %v632
      %686 = vmatmul.f32.gmra.mxu0 %v665
      %v687 = vpop.f32.mrf.mxu0
      %v688 = vadd.f32 0.0, %v687
      %689 = vmatmul.f32.gmra.mxu0 %v668
      %v690 = vpop.f32.mrf.mxu0
      %v691 = vadd.f32 0.0, %v690
      %692 = vdwg.mxu0
      %vm693 = vcmask 97280
      %694 = vst.msk [vmem:[%s194] sm:$0xff] %vm693, %v688
      %vm695 = vcmask 93184
      %696 = vst.msk [vmem:[%s194 + $0x8] sm:$0xf] %vm695, %v691
      %v698 = vsel %vm630, %v206, 0
      %v701 = vsel %vm630, %v207, 0
      %703 = vmatpush.msra.mxu0 0.0
      %704 = vmatpush.msra.mxu0 0.0
      %705 = vmatpush.msra.mxu0 0.0
      %706 = vmatpush.msra.mxu0 0.0
      %707 = vmatpush.msra.mxu0 0.0
      %708 = vmatpush.msra.mxu0 0.0
      %709 = vmatpush.msra.mxu0 0.0
      %710 = vmatpush.msra.mxu0 0.0
      %711 = vmatpush.msra.mxu0 0.0
      %712 = vmatpush.msra.mxu0 0.0
      %713 = vmatpush.msra.mxu0 0.0
      %714 = vmatpush.msra.mxu0 0.0
      %715 = vmatpush.msra.mxu0 0.0
      %716 = vmatpush.msra.mxu0 0.0
      %717 = vmatpush.msra.mxu0 %v639
      %718 = vmatpush.msra.mxu0 %v628
      %719 = vmatmul.f32.gmra.mxu0 %v698
      %v720 = vpop.f32.mrf.mxu0
      %v721 = vadd.f32 0.0, %v720
      %722 = vmatmul.f32.gmra.mxu0 %v701
      %v723 = vpop.f32.mrf.mxu0
      %v724 = vadd.f32 0.0, %v723
      %725 = vdwg.mxu0
      %v727 = vsel %vm630, %v721, 0
      %v730 = vsel %vm630, %v724, 0
      %732 = vmatpush.xpose.msra.mxu0 0.0
      %733 = vmatpush.xpose.msra.mxu0 0.0
      %734 = vmatpush.xpose.msra.mxu0 0.0
      %735 = vmatpush.xpose.msra.mxu0 0.0
      %736 = vmatpush.xpose.msra.mxu0 0.0
      %737 = vmatpush.xpose.msra.mxu0 0.0
      %738 = vmatpush.xpose.msra.mxu0 0.0
      %739 = vmatpush.xpose.msra.mxu0 0.0
      %740 = vmatpush.xpose.msra.mxu0 0.0
      %741 = vmatpush.xpose.msra.mxu0 0.0
      %742 = vmatpush.xpose.msra.mxu0 0.0
      %743 = vmatpush.xpose.msra.mxu0 0.0
      %744 = vmatpush.xpose.msra.mxu0 0.0
      %745 = vmatpush.xpose.msra.mxu0 0.0
      %746 = vmatpush.xpose.msra.mxu0 %v701
      %747 = vmatpush.xpose.msra.mxu0 %v698
      %748 = vmatmul.f32.gmra.mxu0 %v727
      %v749 = vpop.f32.mrf.mxu0
      %v750 = vadd.f32 0.0, %v749
      %751 = vmatmul.f32.gmra.mxu0 %v730
      %v752 = vpop.f32.mrf.mxu0
      %v753 = vadd.f32 0.0, %v752
      %754 = vdwg.mxu0
      %s755 = scalar_lea.vmem %s194, 48
      %756 = vst.msk [vmem:[%s755] sm:$0xff] %vm693, %v750
      %757 = vst.msk [vmem:[%s755 + $0x8] sm:$0xf] %vm695, %v753
      %v759 = vsel %vm630, %v209, 0
      %v762 = vsel %vm630, %v210, 0
      %764 = vmatpush.msra.mxu0 0.0
      %765 = vmatpush.msra.mxu0 0.0
      %766 = vmatpush.msra.mxu0 0.0
      %767 = vmatpush.msra.mxu0 0.0
      %768 = vmatpush.msra.mxu0 0.0
      %769 = vmatpush.msra.mxu0 0.0
      %770 = vmatpush.msra.mxu0 0.0
      %771 = vmatpush.msra.mxu0 0.0
      %772 = vmatpush.msra.mxu0 0.0
      %773 = vmatpush.msra.mxu0 0.0
      %774 = vmatpush.msra.mxu0 0.0
      %775 = vmatpush.msra.mxu0 0.0
      %776 = vmatpush.msra.mxu0 0.0
      %777 = vmatpush.msra.mxu0 0.0
      %778 = vmatpush.msra.mxu0 %v639
      %779 = vmatpush.msra.mxu0 %v628
      %780 = vmatmul.f32.gmra.mxu0 %v759
      %v781 = vpop.f32.mrf.mxu0
      %v782 = vadd.f32 0.0, %v781
      %783 = vmatmul.f32.gmra.mxu0 %v762
      %v784 = vpop.f32.mrf.mxu0
      %v785 = vadd.f32 0.0, %v784
      %786 = vdwg.mxu0
      %v788 = vsel %vm630, %v782, 0
      %v791 = vsel %vm630, %v785, 0
      %793 = vmatpush.xpose.msra.mxu0 0.0
      %794 = vmatpush.xpose.msra.mxu0 0.0
      %795 = vmatpush.xpose.msra.mxu0 0.0
      %796 = vmatpush.xpose.msra.mxu0 0.0
      %797 = vmatpush.xpose.msra.mxu0 0.0
      %798 = vmatpush.xpose.msra.mxu0 0.0
      %799 = vmatpush.xpose.msra.mxu0 0.0
      %800 = vmatpush.xpose.msra.mxu0 0.0
      %801 = vmatpush.xpose.msra.mxu0 0.0
      %802 = vmatpush.xpose.msra.mxu0 0.0
      %803 = vmatpush.xpose.msra.mxu0 0.0
      %804 = vmatpush.xpose.msra.mxu0 0.0
      %805 = vmatpush.xpose.msra.mxu0 0.0
      %806 = vmatpush.xpose.msra.mxu0 0.0
      %807 = vmatpush.xpose.msra.mxu0 %v762
      %808 = vmatpush.xpose.msra.mxu0 %v759
      %809 = vmatmul.f32.gmra.mxu0 %v788
      %v810 = vpop.f32.mrf.mxu0
      %v811 = vadd.f32 0.0, %v810
      %812 = vmatmul.f32.gmra.mxu0 %v791
      %v813 = vpop.f32.mrf.mxu0
      %v814 = vadd.f32 0.0, %v813
      %815 = vdwg.mxu0
      %s816 = scalar_lea.vmem %s194, 96
      %817 = vst.msk [vmem:[%s816] sm:$0xff] %vm693, %v811
      %818 = vst.msk [vmem:[%s816 + $0x8] sm:$0xf] %vm695, %v814
      %821 = vrot.lane.b32.xlu0 %v542, 106
      %v822 = vpop.permute.xlu0 %821
      %823 = vrot.lane.b32.xlu0 %v545, 106
      %v824 = vpop.permute.xlu0 %823
      %v827 = vsel %vm547, %v822, 0.0
      %828 = vadd.xlane.f32.xlu0 %v827
      %v829 = vpop.xlane.xlu0 %828
      %v830 = vsel %vm551, %v824, 0.0
      %831 = vadd.xlane.f32.xlu0 %v830
      %v832 = vpop.xlane.xlu0 %831
      %v833 = vmul.f32 %v829, %v561
      %v834 = vmul.f32 %v832, %v561
      %v835 = vsub.f32 %v542, %v833
      %v836 = vsub.f32 %v545, %v834
      %839 = vrot.lane.b32.xlu0 %v835, 106
      %v840 = vpop.permute.xlu0 %839
      %841 = vrot.lane.b32.xlu0 %v836, 106
      %v842 = vpop.permute.xlu0 %841
      %v843 = vsel %vm547, %v840, 0
      %v845 = vsel %vm547, %v842, 0
      %847 = vmatpush.xpose.msra.mxu0 0.0
      %848 = vmatpush.xpose.msra.mxu0 0.0
      %849 = vmatpush.xpose.msra.mxu0 0.0
      %850 = vmatpush.xpose.msra.mxu0 0.0
      %851 = vmatpush.xpose.msra.mxu0 0.0
      %852 = vmatpush.xpose.msra.mxu0 0.0
      %853 = vmatpush.xpose.msra.mxu0 0.0
      %854 = vmatpush.xpose.msra.mxu0 0.0
      %855 = vmatpush.xpose.msra.mxu0 0.0
      %856 = vmatpush.xpose.msra.mxu0 0.0
      %857 = vmatpush.xpose.msra.mxu0 0.0
      %858 = vmatpush.xpose.msra.mxu0 0.0
      %859 = vmatpush.xpose.msra.mxu0 0.0
      %860 = vmatpush.xpose.msra.mxu0 0.0
      %861 = vmatpush.xpose.msra.mxu0 %v845
      %862 = vmatpush.xpose.msra.mxu0 %v843
      %863 = vmatmul.f32.gmra.mxu0 %v843
      %v864 = vpop.f32.mrf.mxu0
      %v865 = vadd.f32 0.0, %v864
      %866 = vmatmul.f32.gmra.mxu0 %v845
      %v867 = vpop.f32.mrf.mxu0
      %v868 = vadd.f32 0.0, %v867
      %869 = vdwg.mxu0
      %v870 = vmul.f32 %v835, %v835
      %v871 = vmul.f32 %v836, %v836
      %874 = vrot.lane.b32.xlu0 %v870, 106
      %v875 = vpop.permute.xlu0 %874
      %876 = vrot.lane.b32.xlu0 %v871, 106
      %v877 = vpop.permute.xlu0 %876
      %v880 = vsel %vm547, %v875, 0.0
      %v881 = vsel %vm551, %v877, 0.0
      %v882 = vadd.f32 %v880, %v881
      %883 = vadd.xlane.f32.xlu0 %v882
      %v884 = vpop.xlane.xlu0 %883
      %v885 = vrot.slane %v884, 4
      %v886 = vadd.f32 %v884, %v885
      %v887 = vrot.slane %v886, 2
      %v888 = vadd.f32 %v886, %v887
      %v889 = vrot.slane %v888, 1
      %v890 = vadd.f32 %v888, %v889
      %s891 = vtos %v890
      %v892 = vstv %s891
      %v893 = vrcp.pop %v892
      %v894 = vmul.f32 %v892, %v893
      %v895 = vsub.f32 1.0, %v894
      %v896 = vmul.f32 %v893, %v895
      %v897 = vadd.f32 %v893, %v896
      %vm898 = vweird.f32 %v892
      %vm899 = vweird.f32 %v893
      %vm900 = vmor %vm898, %vm899
      %v901 = vsel %vm900, %v893, %v897
      %v902 = vand.u32 2147483647, %v892
      %vm903 = vcmp.eq.f32.partialorder %v902, 8.507059e+37
      %v904 = vand.u32 %v892, 2147483648
      %v905 = vor.u32 1.1754944e-38, %v904
      %v906 = vsel %vm903, %v905, %v901
      %v907 = vmul.f32 %v865, %v906
      %v908 = vmul.f32 %v868, %v906
      %v909 = vadd.f32 %v907, %v626
      %v910 = vadd.f32 %v908, %v627
      %v912 = vsel %vm637, %v910, 0
      %914 = vmatpush.msra.mxu0 0.0
      %915 = vmatpush.msra.mxu0 0.0
      %916 = vmatpush.msra.mxu0 0.0
      %917 = vmatpush.msra.mxu0 0.0
      %918 = vmatpush.msra.mxu0 0.0
      %919 = vmatpush.msra.mxu0 0.0
      %920 = vmatpush.msra.mxu0 0.0
      %921 = vmatpush.msra.mxu0 0.0
      %922 = vmatpush.msra.mxu0 0.0
      %923 = vmatpush.msra.mxu0 0.0
      %924 = vmatpush.msra.mxu0 0.0
      %925 = vmatpush.msra.mxu0 0.0
      %926 = vmatpush.msra.mxu0 0.0
      %927 = vmatpush.msra.mxu0 0.0
      %928 = vmatpush.msra.mxu0 %v912
      %929 = vmatpush.msra.mxu0 %v909
      %930 = vmatmul.f32.gmra.mxu0 %v632
      %v931 = vpop.f32.mrf.mxu0
      %v932 = vadd.f32 0.0, %v931
      %933 = vmatmul.f32.gmra.mxu0 %v635
      %v934 = vpop.f32.mrf.mxu0
      %v935 = vadd.f32 0.0, %v934
      %936 = vdwg.mxu0
      %v938 = vsel %vm630, %v932, 0
      %v941 = vsel %vm630, %v935, 0
      %943 = vmatpush.xpose.msra.mxu0 0.0
      %944 = vmatpush.xpose.msra.mxu0 0.0
      %945 = vmatpush.xpose.msra.mxu0 0.0
      %946 = vmatpush.xpose.msra.mxu0 0.0
      %947 = vmatpush.xpose.msra.mxu0 0.0
      %948 = vmatpush.xpose.msra.mxu0 0.0
      %949 = vmatpush.xpose.msra.mxu0 0.0
      %950 = vmatpush.xpose.msra.mxu0 0.0
      %951 = vmatpush.xpose.msra.mxu0 0.0
      %952 = vmatpush.xpose.msra.mxu0 0.0
      %953 = vmatpush.xpose.msra.mxu0 0.0
      %954 = vmatpush.xpose.msra.mxu0 0.0
      %955 = vmatpush.xpose.msra.mxu0 0.0
      %956 = vmatpush.xpose.msra.mxu0 0.0
      %957 = vmatpush.xpose.msra.mxu0 %v635
      %958 = vmatpush.xpose.msra.mxu0 %v632
      %959 = vmatmul.f32.gmra.mxu0 %v938
      %v960 = vpop.f32.mrf.mxu0
      %v961 = vadd.f32 0.0, %v960
      %962 = vmatmul.f32.gmra.mxu0 %v941
      %v963 = vpop.f32.mrf.mxu0
      %v964 = vadd.f32 0.0, %v963
      %965 = vdwg.mxu0
      %s966 = scalar_lea.vmem %s194, 16
      %967 = vst.msk [vmem:[%s966] sm:$0xff] %vm693, %v961
      %968 = vst.msk [vmem:[%s966 + $0x8] sm:$0xf] %vm695, %v964
      %969 = vmatpush.msra.mxu0 0.0
      %970 = vmatpush.msra.mxu0 0.0
      %971 = vmatpush.msra.mxu0 0.0
      %972 = vmatpush.msra.mxu0 0.0
      %973 = vmatpush.msra.mxu0 0.0
      %974 = vmatpush.msra.mxu0 0.0
      %975 = vmatpush.msra.mxu0 0.0
      %976 = vmatpush.msra.mxu0 0.0
      %977 = vmatpush.msra.mxu0 0.0
      %978 = vmatpush.msra.mxu0 0.0
      %979 = vmatpush.msra.mxu0 0.0
      %980 = vmatpush.msra.mxu0 0.0
      %981 = vmatpush.msra.mxu0 0.0
      %982 = vmatpush.msra.mxu0 0.0
      %983 = vmatpush.msra.mxu0 %v912
      %984 = vmatpush.msra.mxu0 %v909
      %985 = vmatmul.f32.gmra.mxu0 %v698
      %v986 = vpop.f32.mrf.mxu0
      %v987 = vadd.f32 0.0, %v986
      %988 = vmatmul.f32.gmra.mxu0 %v701
      %v989 = vpop.f32.mrf.mxu0
      %v990 = vadd.f32 0.0, %v989
      %991 = vdwg.mxu0
      %v993 = vsel %vm630, %v987, 0
      %v996 = vsel %vm630, %v990, 0
      %998 = vmatpush.xpose.msra.mxu0 0.0
      %999 = vmatpush.xpose.msra.mxu0 0.0
      %1000 = vmatpush.xpose.msra.mxu0 0.0
      %1001 = vmatpush.xpose.msra.mxu0 0.0
      %1002 = vmatpush.xpose.msra.mxu0 0.0
      %1003 = vmatpush.xpose.msra.mxu0 0.0
      %1004 = vmatpush.xpose.msra.mxu0 0.0
      %1005 = vmatpush.xpose.msra.mxu0 0.0
      %1006 = vmatpush.xpose.msra.mxu0 0.0
      %1007 = vmatpush.xpose.msra.mxu0 0.0
      %1008 = vmatpush.xpose.msra.mxu0 0.0
      %1009 = vmatpush.xpose.msra.mxu0 0.0
      %1010 = vmatpush.xpose.msra.mxu0 0.0
      %1011 = vmatpush.xpose.msra.mxu0 0.0
      %1012 = vmatpush.xpose.msra.mxu0 %v701
      %1013 = vmatpush.xpose.msra.mxu0 %v698
      %1014 = vmatmul.f32.gmra.mxu0 %v993
      %v1015 = vpop.f32.mrf.mxu0
      %v1016 = vadd.f32 0.0, %v1015
      %1017 = vmatmul.f32.gmra.mxu0 %v996
      %v1018 = vpop.f32.mrf.mxu0
      %v1019 = vadd.f32 0.0, %v1018
      %1020 = vdwg.mxu0
      %s1021 = scalar_lea.vmem %s194, 64
      %1022 = vst.msk [vmem:[%s1021] sm:$0xff] %vm693, %v1016
      %1023 = vst.msk [vmem:[%s1021 + $0x8] sm:$0xf] %vm695, %v1019
      %1024 = vmatpush.msra.mxu0 0.0
      %1025 = vmatpush.msra.mxu0 0.0
      %1026 = vmatpush.msra.mxu0 0.0
      %1027 = vmatpush.msra.mxu0 0.0
      %1028 = vmatpush.msra.mxu0 0.0
      %1029 = vmatpush.msra.mxu0 0.0
      %1030 = vmatpush.msra.mxu0 0.0
      %1031 = vmatpush.msra.mxu0 0.0
      %1032 = vmatpush.msra.mxu0 0.0
      %1033 = vmatpush.msra.mxu0 0.0
      %1034 = vmatpush.msra.mxu0 0.0
      %1035 = vmatpush.msra.mxu0 0.0
      %1036 = vmatpush.msra.mxu0 0.0
      %1037 = vmatpush.msra.mxu0 0.0
      %1038 = vmatpush.msra.mxu0 %v912
      %1039 = vmatpush.msra.mxu0 %v909
      %1040 = vmatmul.f32.gmra.mxu0 %v759
      %v1041 = vpop.f32.mrf.mxu0
      %v1042 = vadd.f32 0.0, %v1041
      %1043 = vmatmul.f32.gmra.mxu0 %v762
      %v1044 = vpop.f32.mrf.mxu0
      %v1045 = vadd.f32 0.0, %v1044
      %1046 = vdwg.mxu0
      %v1048 = vsel %vm630, %v1042, 0
      %v1051 = vsel %vm630, %v1045, 0
      %1053 = vmatpush.xpose.msra.mxu0 0.0
      %1054 = vmatpush.xpose.msra.mxu0 0.0
      %1055 = vmatpush.xpose.msra.mxu0 0.0
      %1056 = vmatpush.xpose.msra.mxu0 0.0
      %1057 = vmatpush.xpose.msra.mxu0 0.0
      %1058 = vmatpush.xpose.msra.mxu0 0.0
      %1059 = vmatpush.xpose.msra.mxu0 0.0
      %1060 = vmatpush.xpose.msra.mxu0 0.0
      %1061 = vmatpush.xpose.msra.mxu0 0.0
      %1062 = vmatpush.xpose.msra.mxu0 0.0
      %1063 = vmatpush.xpose.msra.mxu0 0.0
      %1064 = vmatpush.xpose.msra.mxu0 0.0
      %1065 = vmatpush.xpose.msra.mxu0 0.0
      %1066 = vmatpush.xpose.msra.mxu0 0.0
      %1067 = vmatpush.xpose.msra.mxu0 %v762
      %1068 = vmatpush.xpose.msra.mxu0 %v759
      %1069 = vmatmul.f32.gmra.mxu0 %v1048
      %v1070 = vpop.f32.mrf.mxu0
      %v1071 = vadd.f32 0.0, %v1070
      %1072 = vmatmul.f32.gmra.mxu0 %v1051
      %v1073 = vpop.f32.mrf.mxu0
      %v1074 = vadd.f32 0.0, %v1073
      %1075 = vdwg.mxu0
      %s1076 = scalar_lea.vmem %s194, 112
      %1077 = vst.msk [vmem:[%s1076] sm:$0xff] %vm693, %v1071
      %1078 = vst.msk [vmem:[%s1076 + $0x8] sm:$0xf] %vm695, %v1074
      %1079 = vrot.lane.b32.xlu0 %v542, 84
      %v1080 = vpop.permute.xlu0 %1079
      %1081 = vrot.lane.b32.xlu0 %v545, 84
      %v1082 = vpop.permute.xlu0 %1081
      %vm1085 = vcmask 171008
      %v1086 = vsel %vm1085, %v1080, 0.0
      %1087 = vadd.xlane.f32.xlu0 %v1086
      %v1088 = vpop.xlane.xlu0 %1087
      %vm1089 = vcmask 169984
      %v1090 = vsel %vm1089, %v1082, 0.0
      %1091 = vadd.xlane.f32.xlu0 %v1090
      %v1092 = vpop.xlane.xlu0 %1091
      %v1093 = vrcp.pop 21.0
      %v1094 = vmul.f32 21.0, %v1093
      %v1095 = vsub.f32 1.0, %v1094
      %v1096 = vmul.f32 %v1093, %v1095
      %v1097 = vadd.f32 %v1093, %v1096
      %vm1098 = vweird.f32 %v1093
      %v1099 = vsel %vm1098, %v1093, %v1097
      %v1100 = vmul.f32 %v1088, %v1099
      %v1101 = vmul.f32 %v1092, %v1099
      %v1102 = vsub.f32 %v542, %v1100
      %v1103 = vsub.f32 %v545, %v1101
      %1106 = vrot.lane.b32.xlu0 %v1102, 84
      %v1107 = vpop.permute.xlu0 %1106
      %1108 = vrot.lane.b32.xlu0 %v1103, 84
      %v1109 = vpop.permute.xlu0 %1108
      %v1110 = vsel %vm1085, %v1107, 0
      %v1112 = vsel %vm1085, %v1109, 0
      %1114 = vmatpush.xpose.msra.mxu0 0.0
      %1115 = vmatpush.xpose.msra.mxu0 0.0
      %1116 = vmatpush.xpose.msra.mxu0 0.0
      %1117 = vmatpush.xpose.msra.mxu0 0.0
      %1118 = vmatpush.xpose.msra.mxu0 0.0
      %1119 = vmatpush.xpose.msra.mxu0 0.0
      %1120 = vmatpush.xpose.msra.mxu0 0.0
      %1121 = vmatpush.xpose.msra.mxu0 0.0
      %1122 = vmatpush.xpose.msra.mxu0 0.0
      %1123 = vmatpush.xpose.msra.mxu0 0.0
      %1124 = vmatpush.xpose.msra.mxu0 0.0
      %1125 = vmatpush.xpose.msra.mxu0 0.0
      %1126 = vmatpush.xpose.msra.mxu0 0.0
      %1127 = vmatpush.xpose.msra.mxu0 0.0
      %1128 = vmatpush.xpose.msra.mxu0 %v1112
      %1129 = vmatpush.xpose.msra.mxu0 %v1110
      %1130 = vmatmul.f32.gmra.mxu0 %v1110
      %v1131 = vpop.f32.mrf.mxu0
      %v1132 = vadd.f32 0.0, %v1131
      %1133 = vmatmul.f32.gmra.mxu0 %v1112
      %v1134 = vpop.f32.mrf.mxu0
      %v1135 = vadd.f32 0.0, %v1134
      %1136 = vdwg.mxu0
      %v1137 = vmul.f32 %v1102, %v1102
      %v1138 = vmul.f32 %v1103, %v1103
      %1141 = vrot.lane.b32.xlu0 %v1137, 84
      %v1142 = vpop.permute.xlu0 %1141
      %1143 = vrot.lane.b32.xlu0 %v1138, 84
      %v1144 = vpop.permute.xlu0 %1143
      %v1147 = vsel %vm1085, %v1142, 0.0
      %v1148 = vsel %vm1089, %v1144, 0.0
      %v1149 = vadd.f32 %v1147, %v1148
      %1150 = vadd.xlane.f32.xlu0 %v1149
      %v1151 = vpop.xlane.xlu0 %1150
      %v1152 = vrot.slane %v1151, 4
      %v1153 = vadd.f32 %v1151, %v1152
      %v1154 = vrot.slane %v1153, 2
      %v1155 = vadd.f32 %v1153, %v1154
      %v1156 = vrot.slane %v1155, 1
      %v1157 = vadd.f32 %v1155, %v1156
      %s1158 = vtos %v1157
      %v1159 = vstv %s1158
      %v1160 = vrcp.pop %v1159
      %v1161 = vmul.f32 %v1159, %v1160
      %v1162 = vsub.f32 1.0, %v1161
      %v1163 = vmul.f32 %v1160, %v1162
      %v1164 = vadd.f32 %v1160, %v1163
      %vm1165 = vweird.f32 %v1159
      %vm1166 = vweird.f32 %v1160
      %vm1167 = vmor %vm1165, %vm1166
      %v1168 = vsel %vm1167, %v1160, %v1164
      %v1169 = vand.u32 2147483647, %v1159
      %vm1170 = vcmp.eq.f32.partialorder %v1169, 8.507059e+37
      %v1171 = vand.u32 %v1159, 2147483648
      %v1172 = vor.u32 1.1754944e-38, %v1171
      %v1173 = vsel %vm1170, %v1172, %v1168
      %v1174 = vmul.f32 %v1132, %v1173
      %v1175 = vmul.f32 %v1135, %v1173
      %v1176 = vadd.f32 %v1174, %v626
      %v1177 = vadd.f32 %v1175, %v627
      %v1179 = vsel %vm637, %v1177, 0
      %1181 = vmatpush.msra.mxu0 0.0
      %1182 = vmatpush.msra.mxu0 0.0
      %1183 = vmatpush.msra.mxu0 0.0
      %1184 = vmatpush.msra.mxu0 0.0
      %1185 = vmatpush.msra.mxu0 0.0
      %1186 = vmatpush.msra.mxu0 0.0
      %1187 = vmatpush.msra.mxu0 0.0
      %1188 = vmatpush.msra.mxu0 0.0
      %1189 = vmatpush.msra.mxu0 0.0
      %1190 = vmatpush.msra.mxu0 0.0
      %1191 = vmatpush.msra.mxu0 0.0
      %1192 = vmatpush.msra.mxu0 0.0
      %1193 = vmatpush.msra.mxu0 0.0
      %1194 = vmatpush.msra.mxu0 0.0
      %1195 = vmatpush.msra.mxu0 %v1179
      %1196 = vmatpush.msra.mxu0 %v1176
      %1197 = vmatmul.f32.gmra.mxu0 %v632
      %v1198 = vpop.f32.mrf.mxu0
      %v1199 = vadd.f32 0.0, %v1198
      %1200 = vmatmul.f32.gmra.mxu0 %v635
      %v1201 = vpop.f32.mrf.mxu0
      %v1202 = vadd.f32 0.0, %v1201
      %1203 = vdwg.mxu0
      %v1205 = vsel %vm630, %v1199, 0
      %v1208 = vsel %vm630, %v1202, 0
      %1210 = vmatpush.xpose.msra.mxu0 0.0
      %1211 = vmatpush.xpose.msra.mxu0 0.0
      %1212 = vmatpush.xpose.msra.mxu0 0.0
      %1213 = vmatpush.xpose.msra.mxu0 0.0
      %1214 = vmatpush.xpose.msra.mxu0 0.0
      %1215 = vmatpush.xpose.msra.mxu0 0.0
      %1216 = vmatpush.xpose.msra.mxu0 0.0
      %1217 = vmatpush.xpose.msra.mxu0 0.0
      %1218 = vmatpush.xpose.msra.mxu0 0.0
      %1219 = vmatpush.xpose.msra.mxu0 0.0
      %1220 = vmatpush.xpose.msra.mxu0 0.0
      %1221 = vmatpush.xpose.msra.mxu0 0.0
      %1222 = vmatpush.xpose.msra.mxu0 0.0
      %1223 = vmatpush.xpose.msra.mxu0 0.0
      %1224 = vmatpush.xpose.msra.mxu0 %v635
      %1225 = vmatpush.xpose.msra.mxu0 %v632
      %1226 = vmatmul.f32.gmra.mxu0 %v1205
      %v1227 = vpop.f32.mrf.mxu0
      %v1228 = vadd.f32 0.0, %v1227
      %1229 = vmatmul.f32.gmra.mxu0 %v1208
      %v1230 = vpop.f32.mrf.mxu0
      %v1231 = vadd.f32 0.0, %v1230
      %1232 = vdwg.mxu0
      %s1233 = scalar_lea.vmem %s194, 32
      %1234 = vst.msk [vmem:[%s1233] sm:$0xff] %vm693, %v1228
      %1235 = vst.msk [vmem:[%s1233 + $0x8] sm:$0xf] %vm695, %v1231
      %1236 = vmatpush.msra.mxu0 0.0
      %1237 = vmatpush.msra.mxu0 0.0
      %1238 = vmatpush.msra.mxu0 0.0
      %1239 = vmatpush.msra.mxu0 0.0
      %1240 = vmatpush.msra.mxu0 0.0
      %1241 = vmatpush.msra.mxu0 0.0
      %1242 = vmatpush.msra.mxu0 0.0
      %1243 = vmatpush.msra.mxu0 0.0
      %1244 = vmatpush.msra.mxu0 0.0
      %1245 = vmatpush.msra.mxu0 0.0
      %1246 = vmatpush.msra.mxu0 0.0
      %1247 = vmatpush.msra.mxu0 0.0
      %1248 = vmatpush.msra.mxu0 0.0
      %1249 = vmatpush.msra.mxu0 0.0
      %1250 = vmatpush.msra.mxu0 %v1179
      %1251 = vmatpush.msra.mxu0 %v1176
      %1252 = vmatmul.f32.gmra.mxu0 %v698
      %v1253 = vpop.f32.mrf.mxu0
      %v1254 = vadd.f32 0.0, %v1253
      %1255 = vmatmul.f32.gmra.mxu0 %v701
      %v1256 = vpop.f32.mrf.mxu0
      %v1257 = vadd.f32 0.0, %v1256
      %1258 = vdwg.mxu0
      %v1260 = vsel %vm630, %v1254, 0
      %v1263 = vsel %vm630, %v1257, 0
      %1265 = vmatpush.xpose.msra.mxu0 0.0
      %1266 = vmatpush.xpose.msra.mxu0 0.0
      %1267 = vmatpush.xpose.msra.mxu0 0.0
      %1268 = vmatpush.xpose.msra.mxu0 0.0
      %1269 = vmatpush.xpose.msra.mxu0 0.0
      %1270 = vmatpush.xpose.msra.mxu0 0.0
      %1271 = vmatpush.xpose.msra.mxu0 0.0
      %1272 = vmatpush.xpose.msra.mxu0 0.0
      %1273 = vmatpush.xpose.msra.mxu0 0.0
      %1274 = vmatpush.xpose.msra.mxu0 0.0
      %1275 = vmatpush.xpose.msra.mxu0 0.0
      %1276 = vmatpush.xpose.msra.mxu0 0.0
      %1277 = vmatpush.xpose.msra.mxu0 0.0
      %1278 = vmatpush.xpose.msra.mxu0 0.0
      %1279 = vmatpush.xpose.msra.mxu0 %v701
      %1280 = vmatpush.xpose.msra.mxu0 %v698
      %1281 = vmatmul.f32.gmra.mxu0 %v1260
      %v1282 = vpop.f32.mrf.mxu0
      %v1283 = vadd.f32 0.0, %v1282
      %1284 = vmatmul.f32.gmra.mxu0 %v1263
      %v1285 = vpop.f32.mrf.mxu0
      %v1286 = vadd.f32 0.0, %v1285
      %1287 = vdwg.mxu0
      %s1288 = scalar_lea.vmem %s194, 80
      %1289 = vst.msk [vmem:[%s1288] sm:$0xff] %vm693, %v1283
      %1290 = vst.msk [vmem:[%s1288 + $0x8] sm:$0xf] %vm695, %v1286
      %1291 = vmatpush.msra.mxu0 0.0
      %1292 = vmatpush.msra.mxu0 0.0
      %1293 = vmatpush.msra.mxu0 0.0
      %1294 = vmatpush.msra.mxu0 0.0
      %1295 = vmatpush.msra.mxu0 0.0
      %1296 = vmatpush.msra.mxu0 0.0
      %1297 = vmatpush.msra.mxu0 0.0
      %1298 = vmatpush.msra.mxu0 0.0
      %1299 = vmatpush.msra.mxu0 0.0
      %1300 = vmatpush.msra.mxu0 0.0
      %1301 = vmatpush.msra.mxu0 0.0
      %1302 = vmatpush.msra.mxu0 0.0
      %1303 = vmatpush.msra.mxu0 0.0
      %1304 = vmatpush.msra.mxu0 0.0
      %1305 = vmatpush.msra.mxu0 %v1179
      %1306 = vmatpush.msra.mxu0 %v1176
      %1307 = vmatmul.f32.gmra.mxu0 %v759
      %v1308 = vpop.f32.mrf.mxu0
      %v1309 = vadd.f32 0.0, %v1308
      %1310 = vmatmul.f32.gmra.mxu0 %v762
      %v1311 = vpop.f32.mrf.mxu0
      %v1312 = vadd.f32 0.0, %v1311
      %1313 = vdwg.mxu0
      %v1315 = vsel %vm630, %v1309, 0
      %v1318 = vsel %vm630, %v1312, 0
      %1320 = vmatpush.xpose.msra.mxu0 0.0
      %1321 = vmatpush.xpose.msra.mxu0 0.0
      %1322 = vmatpush.xpose.msra.mxu0 0.0
      %1323 = vmatpush.xpose.msra.mxu0 0.0
      %1324 = vmatpush.xpose.msra.mxu0 0.0
      %1325 = vmatpush.xpose.msra.mxu0 0.0
      %1326 = vmatpush.xpose.msra.mxu0 0.0
      %1327 = vmatpush.xpose.msra.mxu0 0.0
      %1328 = vmatpush.xpose.msra.mxu0 0.0
      %1329 = vmatpush.xpose.msra.mxu0 0.0
      %1330 = vmatpush.xpose.msra.mxu0 0.0
      %1331 = vmatpush.xpose.msra.mxu0 0.0
      %1332 = vmatpush.xpose.msra.mxu0 0.0
      %1333 = vmatpush.xpose.msra.mxu0 0.0
      %1334 = vmatpush.xpose.msra.mxu0 %v762
      %1335 = vmatpush.xpose.msra.mxu0 %v759
      %1336 = vmatmul.f32.gmra.mxu0 %v1315
      %v1337 = vpop.f32.mrf.mxu0
      %v1338 = vadd.f32 0.0, %v1337
      %1339 = vmatmul.f32.gmra.mxu0 %v1318
      %v1340 = vpop.f32.mrf.mxu0
      %v1341 = vadd.f32 0.0, %v1340
      %1342 = vdwg.mxu0
      %s1343 = scalar_lea.vmem %s194, 128
      %1344 = vst.msk [vmem:[%s1343] sm:$0xff] %vm693, %v1338
      %1345 = vst.msk [vmem:[%s1343 + $0x8] sm:$0xf] %vm695, %v1341
      %p1346 = scmp.lt.s32.totalorder %s15, 1
      %s1347 = scalar_select %p1346, %s15, 1
      %s1348 = smul.addr %s1347, 18
      %s1349 = smul.addr %s1348, 8
      %s1350 = scalar_lea.vmem %s4, %s1349
      // Predicated region
      $region37: #{matt_mamem_forward.2} parent=35 // pred_check
        %p1351 = pneg %p122
      $region38: #{matt_mamem_forward.2} parent=35 // pred_check_branch
        %1353 = sbr.rel (%p1351) target = $region40
      $region39: #{matt_mamem_forward.2} parent=35 // pred_region
        _
      $region40: #{matt_mamem_forward.2} parent=35 // pred_fallthru
        _
    $region36: #{matt_mamem_forward.2} parent=5 // pred_fallthru
      _
    %p1354 = scmp.le.s32.totalorder 2, %s10
    // Predicated region
    $region41: #{matt_mamem_forward.2} parent=5 // pred_check
      %p1355 = pneg %p1354
    $region42: #{matt_mamem_forward.2} parent=5 // pred_check_branch
      %1357 = sbr.rel (%p1355) target = $region44
    $region43: #{matt_mamem_forward.2} parent=5 // pred_region
      %s1358 = ssub.s32 %s10, 2
      // Predicated region
      $region45: #{matt_mamem_forward.2} parent=43 // pred_check
        %p1359 = pneg %p128
      $region46: #{matt_mamem_forward.2} parent=43 // pred_check_branch
        %1361 = sbr.rel (%p1359) target = $region48
      $region47: #{matt_mamem_forward.2} parent=43 // pred_region
        %p1362 = scmp.lt.s32.totalorder %s16, 1
        %s1363 = scalar_select %p1362, %s16, 1
        %s1364 = smul.addr %s1363, 18
        %s1365 = smul.addr %s1364, 8
        %s1366 = scalar_lea.vmem %s4, %s1365
      $region48: #{matt_mamem_forward.2} parent=43 // pred_fallthru
        _
    $region44: #{matt_mamem_forward.2} parent=5 // pred_fallthru
      _
  $region6: #{matt_mamem_forward.2} parent=0 // loop_footer
    %s14 = sadd.s32 1, %s10
  $region7: #{matt_mamem_forward.2} parent=0 // loop_footer_branch
    %9 = sbr.rel target = $region3
  $region8: #{matt_mamem_forward.2} parent=0 // loop_exit
    _

// kernel: matt_mamem_forward.3
$region0: #{matt_mamem_forward.3}
  #allocation0 [shape = 'u32[]', space=smem, size = 0x4, offset = 0x4, fixed_abs, tag = 'smem constant byte address 0x4 - core index']
  #allocation1 [shape = 'u32[72,128]{1,0:T(1,128)}', space=vmem, size = 0x9000, scoped, tag = 'internal scratch']
  %s0 = inlined_call_operand.vmem [shape: f32[2,3,144], index: 0, kind: input, shape index: {}]
  %s1 = inlined_call_operand.vmem [shape: f32[2,3,144], index: 1, kind: input, shape index: {}]
  %s2 = inlined_call_operand.vmem [shape: f32[2,3,144], index: 2, kind: input, shape index: {}]
  %s3 = inlined_call_operand.vmem [shape: f32[2,3,144], index: 3, kind: output, shape index: {}]
  %s4 = sld [smem:[#allocation0]]
  $region45: #{matt_mamem_forward.3} parent=0
    _
  %s6 = ssub.s32 1, %s4
  %s7 = scalar_select 0, %s6, %s4
  loop: start=0, step=1, limit=4
  $region2: #{matt_mamem_forward.3} parent=0 // loop_pre_header
    _
  $region3: #{matt_mamem_forward.3} parent=0 // loop_header
    %s9 = sphi 0, %s13
    %p10 = scmp.ge.s32.totalorder %s9, 4
    %s19 = sphi 0, %s21
    %s22 = sphi 0, %s19
    %s23 = sphi 0, %s22
    %s39 = sphi 0, %s23
    %s45 = sphi 0, %s47
    %s48 = sphi 0, %s45
    %s49 = sphi 0, %s48
    %s65 = sphi 0, %s49
    %s71 = sphi 0, %s73
    %s74 = sphi 0, %s71
    %s75 = sphi 0, %s74
    %s91 = sphi 0, %s75
    %s97 = sphi 0, %s99
    %s100 = sphi 0, %s97
    %s101 = sphi 0, %s100
    %s117 = sphi 0, %s101
  $region4: #{matt_mamem_forward.3} parent=0 // loop_header_branch
    %12 = sbr.rel (%p10) target = $region8
  $region5: #{matt_mamem_forward.3} parent=0 // loop_body
    %s14 = ssub.s32 %s9, 1
    %s15 = ssub.s32 %s9, 2
    %s16 = sadd.s32 %s9, 1
    %s17 = ssub.s32 %s9, %s16
    %p18 = scmp.eq.s32.totalorder %s17, 0
    %s20 = sadd.s32 %s19, 1
    %s21 = scalar_select %p18, %s19, %s20
    %p24 = pneg %p18
    %p25 = scmp.eq.s32.totalorder %s9, 1
    %p26 = por %p24, %p25
    %p27 = scmp.ne.s32.totalorder %s19, %s22
    %p28 = scmp.eq.s32.totalorder %s9, 0
    %p29 = por %p27, %p28
    %p30 = scmp.ne.s32.totalorder %s19, %s22
    %p31 = scmp.eq.s32.totalorder %s14, 1
    %p32 = por %p30, %p31
    %p33 = scmp.ne.s32.totalorder %s22, %s23
    %p34 = scmp.eq.s32.totalorder %s14, 0
    %p35 = por %p33, %p34
    %p36 = scmp.ne.s32.totalorder %s22, %s23
    %p37 = scmp.eq.s32.totalorder %s15, 1
    %p38 = por %p36, %p37
    %p40 = scmp.ne.s32.totalorder %s23, %s39
    %p41 = scmp.eq.s32.totalorder %s15, 0
    %p42 = por %p40, %p41
    %s43 = ssub.s32 %s9, %s16
    %p44 = scmp.eq.s32.totalorder %s43, 0
    %s46 = sadd.s32 %s45, 1
    %s47 = scalar_select %p44, %s45, %s46
    %p50 = pneg %p44
    %p51 = scmp.eq.s32.totalorder %s9, 1
    %p52 = por %p50, %p51
    %p53 = scmp.ne.s32.totalorder %s45, %s48
    %p54 = scmp.eq.s32.totalorder %s9, 0
    %p55 = por %p53, %p54
    %p56 = scmp.ne.s32.totalorder %s45, %s48
    %p57 = scmp.eq.s32.totalorder %s14, 1
    %p58 = por %p56, %p57
    %p59 = scmp.ne.s32.totalorder %s48, %s49
    %p60 = scmp.eq.s32.totalorder %s14, 0
    %p61 = por %p59, %p60
    %p62 = scmp.ne.s32.totalorder %s48, %s49
    %p63 = scmp.eq.s32.totalorder %s15, 1
    %p64 = por %p62, %p63
    %p66 = scmp.ne.s32.totalorder %s49, %s65
    %p67 = scmp.eq.s32.totalorder %s15, 0
    %p68 = por %p66, %p67
    %s69 = ssub.s32 %s9, %s16
    %p70 = scmp.eq.s32.totalorder %s69, 0
    %s72 = sadd.s32 %s71, 1
    %s73 = scalar_select %p70, %s71, %s72
    %p76 = pneg %p70
    %p77 = scmp.eq.s32.totalorder %s9, 1
    %p78 = por %p76, %p77
    %p79 = scmp.ne.s32.totalorder %s71, %s74
    %p80 = scmp.eq.s32.totalorder %s9, 0
    %p81 = por %p79, %p80
    %p82 = scmp.ne.s32.totalorder %s71, %s74
    %p83 = scmp.eq.s32.totalorder %s14, 1
    %p84 = por %p82, %p83
    %p85 = scmp.ne.s32.totalorder %s74, %s75
    %p86 = scmp.eq.s32.totalorder %s14, 0
    %p87 = por %p85, %p86
    %p88 = scmp.ne.s32.totalorder %s74, %s75
    %p89 = scmp.eq.s32.totalorder %s15, 1
    %p90 = por %p88, %p89
    %p92 = scmp.ne.s32.totalorder %s75, %s91
    %p93 = scmp.eq.s32.totalorder %s15, 0
    %p94 = por %p92, %p93
    %s95 = ssub.s32 %s9, %s16
    %p96 = scmp.eq.s32.totalorder %s95, 0
    %s98 = sadd.s32 %s97, 1
    %s99 = scalar_select %p96, %s97, %s98
    %p102 = pneg %p96
    %p103 = scmp.eq.s32.totalorder %s9, 1
    %p104 = por %p102, %p103
    %p105 = scmp.ne.s32.totalorder %s97, %s100
    %p106 = scmp.eq.s32.totalorder %s9, 0
    %p107 = por %p105, %p106
    %p108 = scmp.ne.s32.totalorder %s97, %s100
    %p109 = scmp.eq.s32.totalorder %s14, 1
    %p110 = por %p108, %p109
    %p111 = scmp.ne.s32.totalorder %s100, %s101
    %p112 = scmp.eq.s32.totalorder %s14, 0
    %p113 = por %p111, %p112
    %p114 = scmp.ne.s32.totalorder %s100, %s101
    %p115 = scmp.eq.s32.totalorder %s15, 1
    %p116 = por %p114, %p115
    %p118 = scmp.ne.s32.totalorder %s101, %s117
    %p119 = scmp.eq.s32.totalorder %s15, 0
    %p120 = por %p118, %p119
    %p121 = scmp.le.s32.totalorder 1, %s9
    %p122 = scmp.lt.s32.totalorder %s9, 3
    %p123 = pnand %p121, %p122
    %p124 = pneg %p123
    // Predicated region
    $region9: #{matt_mamem_forward.3} parent=5 // pred_check
      _
    $region10: #{matt_mamem_forward.3} parent=5 // pred_check_branch
      %126 = sbr.rel (%p123) target = $region12
    $region11: #{matt_mamem_forward.3} parent=5 // pred_region
      %s127 = ssub.s32 %s9, 1
    $region12: #{matt_mamem_forward.3} parent=5 // pred_fallthru
      _
    %p128 = scmp.lt.s32.totalorder %s9, 2
    // Predicated region
    $region13: #{matt_mamem_forward.3} parent=5 // pred_check
      %p129 = pneg %p128
    $region14: #{matt_mamem_forward.3} parent=5 // pred_check_branch
      %131 = sbr.rel (%p129) target = $region16
    $region15: #{matt_mamem_forward.3} parent=5 // pred_region
      // Predicated region
      $region17: #{matt_mamem_forward.3} parent=15 // pred_check
        %p132 = pneg %p29
      $region18: #{matt_mamem_forward.3} parent=15 // pred_check_branch
        %134 = sbr.rel (%p132) target = $region20
      $region19: #{matt_mamem_forward.3} parent=15 // pred_region
        %p135 = scmp.lt.s32.totalorder %s9, 1
        %s136 = scalar_select %p135, %s9, 1
        %s137 = smul.addr %s136, 2
        %s138 = smul.addr %s137, 4
        %s139 = scalar_lea.vmem %s0, %s138
      $region20: #{matt_mamem_forward.3} parent=15 // pred_fallthru
        _
      // Predicated region
      $region21: #{matt_mamem_forward.3} parent=15 // pred_check
        %p140 = pneg %p55
      $region22: #{matt_mamem_forward.3} parent=15 // pred_check_branch
        %142 = sbr.rel (%p140) target = $region24
      $region23: #{matt_mamem_forward.3} parent=15 // pred_region
        %p143 = scmp.lt.s32.totalorder %s9, 1
        %s144 = scalar_select %p143, %s9, 1
        %s145 = smul.addr %s144, 2
        %s146 = smul.addr %s145, 4
        %s147 = scalar_lea.vmem %s1, %s146
      $region24: #{matt_mamem_forward.3} parent=15 // pred_fallthru
        _
      // Predicated region
      $region25: #{matt_mamem_forward.3} parent=15 // pred_check
        %p148 = pneg %p81
      $region26: #{matt_mamem_forward.3} parent=15 // pred_check_branch
        %150 = sbr.rel (%p148) target = $region28
      $region27: #{matt_mamem_forward.3} parent=15 // pred_region
        %p151 = scmp.lt.s32.totalorder %s9, 1
        %s152 = scalar_select %p151, %s9, 1
        %s153 = smul.addr %s152, 2
        %s154 = smul.addr %s153, 4
        %s155 = scalar_lea.vmem %s2, %s154
      $region28: #{matt_mamem_forward.3} parent=15 // pred_fallthru
        _
    $region16: #{matt_mamem_forward.3} parent=5 // pred_fallthru
      _
    %p156 = scmp.le.s32.totalorder 1, %s9
    %p157 = scmp.lt.s32.totalorder %s9, 3
    %p158 = pnand %p156, %p157
    %p159 = pneg %p158
    // Predicated region
    $region29: #{matt_mamem_forward.3} parent=5 // pred_check
      _
    $region30: #{matt_mamem_forward.3} parent=5 // pred_check_branch
      %161 = sbr.rel (%p158) target = $region32
    $region31: #{matt_mamem_forward.3} parent=5 // pred_region
      %s162 = ssub.s32 %s9, 1
      %p163 = scmp.lt.s32.totalorder %s14, 1
      %s164 = scalar_select %p163, %s14, 1
      %s165 = smul.addr %s164, 2
      %s166 = smul.addr %s165, 4
      %s167 = scalar_lea.vmem %s0, %s166
      %p168 = pneg %p35
      %p169 = pneg %p32
      %p170 = scmp.lt.s32.totalorder %s14, 1
      %s171 = scalar_select %p170, %s14, 1
      %s172 = smul.addr %s171, 2
      %s173 = smul.addr %s172, 4
      %s174 = scalar_lea.vmem %s1, %s173
      %p175 = pneg %p61
      %p176 = pneg %p58
      %p177 = scmp.lt.s32.totalorder %s14, 1
      %s178 = scalar_select %p177, %s14, 1
      %s179 = smul.addr %s178, 2
      %s180 = smul.addr %s179, 4
      %s181 = scalar_lea.vmem %s2, %s180
      %p182 = pneg %p87
      %p183 = pneg %p84
      %p184 = pneg %p113
      %p185 = pneg %p110
      %p186 = scmp.lt.s32.totalorder %s14, 1
      %s187 = scalar_select %p186, %s14, 1
      %s188 = smul.addr %s187, 2
      %s189 = smul.addr %s188, 4
      %s190 = scalar_lea.vmem %s3, %s189
      %p191 = scmp.lt.s32.totalorder %s14, 1
      %s192 = scalar_select %p191, %s14, 1
      %s193 = smul.addr %s192, 2
      %s194 = smul.addr %s193, 4
      %s195 = scalar_lea.vmem %s0, %s194
      %p196 = scmp.lt.s32.totalorder %s14, 1
      %s197 = scalar_select %p196, %s14, 1
      %s198 = smul.addr %s197, 2
      %s199 = smul.addr %s198, 4
      %s200 = scalar_lea.vmem %s1, %s199
      %p201 = scmp.lt.s32.totalorder %s14, 1
      %s202 = scalar_select %p201, %s14, 1
      %s203 = smul.addr %s202, 2
      %s204 = smul.addr %s203, 4
      %s205 = scalar_lea.vmem %s2, %s204
      %p206 = scmp.lt.s32.totalorder %s14, 1
      %s207 = scalar_select %p206, %s14, 1
      %s208 = smul.addr %s207, 2
      %s209 = smul.addr %s208, 4
      %s210 = scalar_lea.vmem %s3, %s209
      %v211 = vld [vmem:[%s195] sm:$0x77]
      %v212 = vld [vmem:[%s200] sm:$0x77]
      %v213 = vld [vmem:[%s205] sm:$0x77]
      %215 = vst [vmem:[#allocation1] ss:$2 sm:$0xff] %v211
      %v216 = vld.sshfl [vmem:[#allocation1] sm:$0xff pattern:$0x75316420]
      %v217 = vld.sshfl [vmem:[#allocation1 + $0x8] sm:$0xff pattern:$0x75316420]
      %220 = vst [vmem:[#allocation1] ss:$2 sm:$0xff] %v212
      %v221 = vld.sshfl [vmem:[#allocation1] sm:$0xff pattern:$0x75316420]
      %v222 = vld.sshfl [vmem:[#allocation1 + $0x8] sm:$0xff pattern:$0x75316420]
      %vm224 = vcmask 130048
      %v225 = vsel %vm224, %v217, 0
      %v227 = vsel %vm224, %v222, 0
      %229 = vmatpush.xpose.msra.mxu0 0.0
      %230 = vmatpush.xpose.msra.mxu0 0.0
      %231 = vmatpush.xpose.msra.mxu0 0.0
      %232 = vmatpush.xpose.msra.mxu0 0.0
      %233 = vmatpush.xpose.msra.mxu0 0.0
      %234 = vmatpush.xpose.msra.mxu0 0.0
      %235 = vmatpush.xpose.msra.mxu0 0.0
      %236 = vmatpush.xpose.msra.mxu0 0.0
      %237 = vmatpush.xpose.msra.mxu0 0.0
      %238 = vmatpush.xpose.msra.mxu0 0.0
      %239 = vmatpush.xpose.msra.mxu0 0.0
      %240 = vmatpush.xpose.msra.mxu0 0.0
      %241 = vmatpush.xpose.msra.mxu0 0.0
      %242 = vmatpush.xpose.msra.mxu0 0.0
      %243 = vmatpush.xpose.msra.mxu0 0.0
      %244 = vmatpush.xpose.msra.mxu0 %v221
      %245 = vmatmul.f32.gmra.mxu0 %v216
      %v246 = vpop.f32.mrf.mxu0
      %v247 = vadd.f32 0.0, %v246
      %248 = vdwg.mxu0
      %249 = vmatpush.xpose.msra.mxu0 0.0
      %250 = vmatpush.xpose.msra.mxu0 0.0
      %251 = vmatpush.xpose.msra.mxu0 0.0
      %252 = vmatpush.xpose.msra.mxu0 0.0
      %253 = vmatpush.xpose.msra.mxu0 0.0
      %254 = vmatpush.xpose.msra.mxu0 0.0
      %255 = vmatpush.xpose.msra.mxu0 0.0
      %256 = vmatpush.xpose.msra.mxu0 0.0
      %257 = vmatpush.xpose.msra.mxu0 0.0
      %258 = vmatpush.xpose.msra.mxu0 0.0
      %259 = vmatpush.xpose.msra.mxu0 0.0
      %260 = vmatpush.xpose.msra.mxu0 0.0
      %261 = vmatpush.xpose.msra.mxu0 0.0
      %262 = vmatpush.xpose.msra.mxu0 0.0
      %263 = vmatpush.xpose.msra.mxu0 0.0
      %264 = vmatpush.xpose.msra.mxu0 %v227
      %265 = vmatmul.f32.gmra.mxu0 %v225
      %v266 = vpop.f32.mrf.mxu0
      %v267 = vadd.f32 %v247, %v266
      %268 = vdwg.mxu0
      %v269 = vmul.f32 %v211, %v211
      %271 = vst [vmem:[#allocation1] ss:$2 sm:$0xff] %v269
      %v272 = vld.sshfl [vmem:[#allocation1] sm:$0xff pattern:$0x75316420]
      %v273 = vld.sshfl [vmem:[#allocation1 + $0x8] sm:$0xff pattern:$0x75316420]
      %vm276 = vcmask 1042432
      %v277 = vsel %vm276, %v272, 0.0
      %vm278 = vcmask 124928
      %v279 = vsel %vm278, %v273, 0.0
      %v280 = vadd.f32 %v277, %v279
      %281 = vadd.xlane.f32.xlu0 %v280
      %v282 = vpop.xlane.xlu0 %281
      %v283 = vmul.f32 %v212, %v212
      %285 = vst [vmem:[#allocation1] ss:$2 sm:$0xff] %v283
      %v286 = vld.sshfl [vmem:[#allocation1] sm:$0xff pattern:$0x75316420]
      %v287 = vld.sshfl [vmem:[#allocation1 + $0x8] sm:$0xff pattern:$0x75316420]
      %v290 = vsel %vm276, %v286, 0.0
      %v291 = vsel %vm278, %v287, 0.0
      %v292 = vadd.f32 %v290, %v291
      %293 = vadd.xlane.f32.xlu0 %v292
      %v294 = vpop.xlane.xlu0 %293
      %v296 = vlaneseq
      %v297 = vand.u32 %v296, 127
      %v298 = vperm.slane %v294, %v297
      %vm299 = vcmask 1042434
      %v300 = vsel %vm299, %v298, %v298
      %v302 = vadd.f32 %v282, %v300
      %v303 = vmul.f32 %v267, 2.0
      %v304 = vsub.f32 %v302, %v303
      %v305 = vmax.f32 %v304, 0.0
      %v306 = vadd.f32 %v305, 1.0
      %v307 = vlog2.pop %v306
      %v308 = vmul.f32 %v307, 0.6931472
      %v309 = vadd.f32 %v308, 1.0
      %v310 = vrcp.pop %v309
      %v311 = vmul.f32 %v309, %v310
      %v312 = vsub.f32 1.0, %v311
      %v313 = vmul.f32 %v310, %v312
      %v314 = vadd.f32 %v310, %v313
      %vm315 = vweird.f32 %v309
      %vm316 = vweird.f32 %v310
      %vm317 = vmor %vm315, %vm316
      %v318 = vsel %vm317, %v310, %v314
      %v319 = vand.u32 2147483647, %v309
      %vm320 = vcmp.eq.f32.partialorder %v319, 8.507059e+37
      %v321 = vand.u32 %v309, 2147483648
      %v322 = vor.u32 1.1754944e-38, %v321
      %v323 = vsel %vm320, %v322, %v318
      %v324 = vmul.f32 1.0, %v323
      %v325 = vmul.f32 %v324, 1.442695
      %v326 = vpow.pop %v325
      %vm327 = vcmask 18432
      %v328 = vsel %vm327, %v326, 0.0
      %329 = vadd.xlane.f32.xlu0 %v328
      %v330 = vpop.xlane.xlu0 %329
      %v331 = vrcp.pop %v330
      %v332 = vmul.f32 %v326, %v331
      %334 = vst [vmem:[#allocation1] ss:$2 sm:$0xff] %v213
      %v335 = vld.sshfl [vmem:[#allocation1] sm:$0xff pattern:$0x75316420]
      %v336 = vld.sshfl [vmem:[#allocation1 + $0x8] sm:$0xff pattern:$0x75316420]
      %vm337 = vcmask 23552
      %v339 = vsel %vm337, %v332, 0
      %v341 = vsel %vm276, %v335, 0
      %v343 = vsel %vm276, %v336, 0
      %345 = vmatpush.msra.mxu0 0.0
      %346 = vmatpush.msra.mxu0 0.0
      %347 = vmatpush.msra.mxu0 0.0
      %348 = vmatpush.msra.mxu0 0.0
      %349 = vmatpush.msra.mxu0 0.0
      %350 = vmatpush.msra.mxu0 0.0
      %351 = vmatpush.msra.mxu0 0.0
      %352 = vmatpush.msra.mxu0 0.0
      %353 = vmatpush.msra.mxu0 0.0
      %354 = vmatpush.msra.mxu0 0.0
      %355 = vmatpush.msra.mxu0 0.0
      %356 = vmatpush.msra.mxu0 0.0
      %357 = vmatpush.msra.mxu0 0.0
      %358 = vmatpush.msra.mxu0 0.0
      %359 = vmatpush.msra.mxu0 0.0
      %360 = vmatpush.msra.mxu0 %v341
      %361 = vmatmul.f32.gmra.mxu0 %v339
      %v362 = vpop.f32.mrf.mxu0
      %v363 = vadd.f32 0.0, %v362
      %364 = vdwg.mxu0
      %365 = vmatpush.msra.mxu0 0.0
      %366 = vmatpush.msra.mxu0 0.0
      %367 = vmatpush.msra.mxu0 0.0
      %368 = vmatpush.msra.mxu0 0.0
      %369 = vmatpush.msra.mxu0 0.0
      %370 = vmatpush.msra.mxu0 0.0
      %371 = vmatpush.msra.mxu0 0.0
      %372 = vmatpush.msra.mxu0 0.0
      %373 = vmatpush.msra.mxu0 0.0
      %374 = vmatpush.msra.mxu0 0.0
      %375 = vmatpush.msra.mxu0 0.0
      %376 = vmatpush.msra.mxu0 0.0
      %377 = vmatpush.msra.mxu0 0.0
      %378 = vmatpush.msra.mxu0 0.0
      %379 = vmatpush.msra.mxu0 0.0
      %380 = vmatpush.msra.mxu0 %v343
      %381 = vmatmul.f32.gmra.mxu0 %v339
      %v382 = vpop.f32.mrf.mxu0
      %v383 = vadd.f32 0.0, %v382
      %384 = vdwg.mxu0
      %v387 = vrot.slane %v383, 4
      %vm388 = vcmask 1043456
      %v389 = vsel %vm388, %v363, %v387
      %vm391 = vcmask 129028
      %vm392 = vmor %vm391, %vm276
      %393 = vst.msk [vmem:[%s210] sm:$0x77] %vm392, %v389
      %p394 = scmp.lt.s32.totalorder %s14, 1
      %s395 = scalar_select %p394, %s14, 1
      %s396 = smul.addr %s395, 2
      %s397 = smul.addr %s396, 4
      %s398 = scalar_lea.vmem %s3, %s397
      // Predicated region
      $region33: #{matt_mamem_forward.3} parent=31 // pred_check
        %p399 = pneg %p110
      $region34: #{matt_mamem_forward.3} parent=31 // pred_check_branch
        %401 = sbr.rel (%p399) target = $region36
      $region35: #{matt_mamem_forward.3} parent=31 // pred_region
        _
      $region36: #{matt_mamem_forward.3} parent=31 // pred_fallthru
        _
    $region32: #{matt_mamem_forward.3} parent=5 // pred_fallthru
      _
    %p402 = scmp.le.s32.totalorder 2, %s9
    // Predicated region
    $region37: #{matt_mamem_forward.3} parent=5 // pred_check
      %p403 = pneg %p402
    $region38: #{matt_mamem_forward.3} parent=5 // pred_check_branch
      %405 = sbr.rel (%p403) target = $region40
    $region39: #{matt_mamem_forward.3} parent=5 // pred_region
      %s406 = ssub.s32 %s9, 2
      // Predicated region
      $region41: #{matt_mamem_forward.3} parent=39 // pred_check
        %p407 = pneg %p116
      $region42: #{matt_mamem_forward.3} parent=39 // pred_check_branch
        %409 = sbr.rel (%p407) target = $region44
      $region43: #{matt_mamem_forward.3} parent=39 // pred_region
        %p410 = scmp.lt.s32.totalorder %s15, 1
        %s411 = scalar_select %p410, %s15, 1
        %s412 = smul.addr %s411, 2
        %s413 = smul.addr %s412, 4
        %s414 = scalar_lea.vmem %s3, %s413
      $region44: #{matt_mamem_forward.3} parent=39 // pred_fallthru
        _
    $region40: #{matt_mamem_forward.3} parent=5 // pred_fallthru
      _
  $region6: #{matt_mamem_forward.3} parent=0 // loop_footer
    %s13 = sadd.s32 1, %s9
  $region7: #{matt_mamem_forward.3} parent=0 // loop_footer_branch
    %8 = sbr.rel target = $region3
  $region8: #{matt_mamem_forward.3} parent=0 // loop_exit
    _

</llo_original>
